<compile_context>
chip_gen: v5e
topology: v5e:2x2
jax: 0.10.0
libtpu: 0.0.40
codegen_flags: <defaults>
</compile_context>

<pallas_src>
from functools import partial

import jax
import jax.numpy as jnp
from jax.experimental import pallas as pl
from jax.experimental.pallas import tpu as pltpu

EPS = 1e-5
VMEM_LIMIT = 40 * 1024 * 1024   # <= ~40 MiB: fits v7x (64 MiB physical), ample on v5e/v6e


def _pick_row_block(H, W, target_rows=512):
    """Largest divisor hb of H with hb*W near `target_rows` matmul rows."""
    cap = max(1, (2 * target_rows) // max(W, 1))
    hb = H
    for cand in range(min(H, cap), 0, -1):
        if H % cand == 0:
            hb = cand
            break
    if hb * W < 64:      # degenerate divisor (e.g. prime H with small W): whole sample
        hb = H
    # TODO(synk): a pl.cdiv + tail-masked grid over H would avoid the whole-sample
    # fallback for awkward H; the divisor form keeps the H-halo logic branch-free.
    return hb


# ---------------------------------------------------------------------------
# Kernel 0: per-channel partial sum / sum-of-squares over rows of (R, C) (bn1 stats)
#           per-block partials, "parallel" grid, reduction finished in XLA
# ---------------------------------------------------------------------------
def _column_stats_kernel(x_ref, psum_ref, psumsq_ref, *, rows_total):
    i = pl.program_id(0)
    br = x_ref.shape[0]
    x = x_ref[...].astype(jnp.float32)
    gid = i * br + jax.lax.broadcasted_iota(jnp.int32, (br, 1), 0)
    x = jnp.where(gid < rows_total, x, 0.0)                 # mask a ragged tail block
    psum_ref[...] = jnp.sum(x, axis=0, keepdims=True)[None]
    psumsq_ref[...] = jnp.sum(x * x, axis=0, keepdims=True)[None]


def column_stats(x2d, block_rows=2048):
    R, C = x2d.shape
    br = min(block_rows, R)
    nb = pl.cdiv(R, br)
    ps, pss = pl.pallas_call(
        partial(_column_stats_kernel, rows_total=R),
        grid=(nb,),
        in_specs=[pl.BlockSpec((br, C), lambda i: (i, 0))],
        out_specs=(pl.BlockSpec((1, 1, C), lambda i: (i, 0, 0)),
                   pl.BlockSpec((1, 1, C), lambda i: (i, 0, 0))),
        out_shape=(jax.ShapeDtypeStruct((nb, 1, C), jnp.float32),
                   jax.ShapeDtypeStruct((nb, 1, C), jnp.float32)),
        compiler_params=pltpu.CompilerParams(
            dimension_semantics=("parallel",),
            vmem_limit_bytes=VMEM_LIMIT),
    )(x2d)
    return jnp.sum(ps, axis=0), jnp.sum(pss, axis=0)        # (1, C) each


# ---------------------------------------------------------------------------
# Kernel 1: fused bn1-affine + ReLU + 1x1 conv (matmul) + per-block bn2 partial stats
# ---------------------------------------------------------------------------
def _bn_relu_conv1x1_stats_kernel(x_ref, scale_ref, shift_ref, w_ref,
                                  o_ref, psum_ref, psumsq_ref, *, rows_total):
    i = pl.program_id(0)
    br = x_ref.shape[0]

    x = x_ref[...].astype(jnp.float32)
    a = jnp.maximum(x * scale_ref[...] + shift_ref[...], 0.0)        # f32 VPU
    y = jnp.dot(a.astype(jnp.bfloat16), w_ref[...],                  # bf16 MXU, f32 acc
                preferred_element_type=jnp.float32)
    o_ref[...] = y.astype(o_ref.dtype)                               # natural-width store

    # bn2 partial statistics (ragged tail rows masked); finished in XLA.
    gid = i * br + jax.lax.broadcasted_iota(jnp.int32, (br, 1), 0)
    ym = jnp.where(gid < rows_total, y, 0.0)
    psum_ref[...] = jnp.sum(ym, axis=0, keepdims=True)[None]
    psumsq_ref[...] = jnp.sum(ym * ym, axis=0, keepdims=True)[None]


def bn_relu_conv1x1(x2d, scale, shift, w_bf16, block_rows=2048):
    R, Cin = x2d.shape
    Ci = w_bf16.shape[1]
    br = min(block_rows, R)
    nb = pl.cdiv(R, br)
    return pl.pallas_call(
        partial(_bn_relu_conv1x1_stats_kernel, rows_total=R),
        grid=(nb,),
        in_specs=[
            pl.BlockSpec((br, Cin), lambda i: (i, 0)),
            pl.BlockSpec((1, Cin), lambda i: (0, 0)),
            pl.BlockSpec((1, Cin), lambda i: (0, 0)),
            pl.BlockSpec((Cin, Ci), lambda i: (0, 0)),
        ],
        out_specs=(pl.BlockSpec((br, Ci), lambda i: (i, 0)),
                   pl.BlockSpec((1, 1, Ci), lambda i: (i, 0, 0)),
                   pl.BlockSpec((1, 1, Ci), lambda i: (i, 0, 0))),
        out_shape=(jax.ShapeDtypeStruct((R, Ci), jnp.bfloat16),
                   jax.ShapeDtypeStruct((nb, 1, Ci), jnp.float32),
                   jax.ShapeDtypeStruct((nb, 1, Ci), jnp.float32)),
        compiler_params=pltpu.CompilerParams(
            dimension_semantics=("parallel",),
            vmem_limit_bytes=VMEM_LIMIT),
    )(x2d, scale, shift, w_bf16)


# ---------------------------------------------------------------------------
# Kernel 2: fused bn2-affine + ReLU + zero-pad + 3x3 conv + channel concat with x
#           grid = (N, H-row-blocks); per-block (hb+2, W, C) window, kx folded into K,
#           3 deep-K bf16 MXU matmuls accumulated in a value, single output store.
# ---------------------------------------------------------------------------
def _bn_relu_conv3x3_concat_kernel(x1_ref, xin_ref, scale_ref, shift_ref, w_ref,
                                   o_ref, awin_ref, *, hb):
    r = pl.program_id(1)
    rb = pl.num_programs(1)
    _, H, W, Ci = x1_ref.shape
    Cout = w_ref.shape[-1]
    K3 = 3 * Ci
    row0 = r * hb

    scale = scale_ref[...]                                   # (1, Ci) f32, loaded once
    shift = shift_ref[...]

    def affine_relu(rows):                                   # (k, W, Ci) -> f32
        return jnp.maximum(rows.astype(jnp.float32) * scale + shift, 0.0)

    # ---- per-block bn2 affine + ReLU window with 1-row H halos (zero padded) ----
    awin_ref[pl.ds(1, hb)] = affine_relu(x1_ref[0, pl.ds(row0, hb)])
    zrow = jnp.zeros((1, W, Ci), jnp.float32)
    awin_ref[pl.ds(0, 1)] = zrow                             # top H halo (zero pad)
    awin_ref[pl.ds(hb + 1, 1)] = zrow                        # bottom H halo (zero pad)

    @pl.when(r > 0)
    def _top_halo():
        awin_ref[pl.ds(0, 1)] = affine_relu(x1_ref[0, pl.ds(row0 - 1, 1)])

    @pl.when(r < rb - 1)
    def _bottom_halo():
        awin_ref[pl.ds(hb + 1, 1)] = affine_relu(x1_ref[0, pl.ds(row0 + hb, 1)])

    # ---- 3x3 conv: kx folded into K via masked W rolls, ky = 3 deep-K matmuls ----
    col = jax.lax.broadcasted_iota(jnp.int32, (hb, W, Ci), 1)
    acc = None
    for ky in range(3):
        rows = awin_ref[pl.ds(ky, hb)]                                       # (hb, W, Ci)
        left = jnp.where(col >= 1, pltpu.roll(rows, shift=1, axis=1), 0.0)       # a[x-1]
        right = jnp.where(col <= W - 2, pltpu.roll(rows, shift=W - 1, axis=1), 0.0)  # a[x+1]
        bcat = jnp.concatenate([left, rows, right], axis=-1)                 # K = (kx, c)
        d = jnp.dot(bcat.reshape(hb * W, K3).astype(jnp.bfloat16), w_ref[ky],
                    preferred_element_type=jnp.float32)
        acc = d if acc is None else acc + d                  # value accumulation, no RMW

    conv = acc.reshape(hb, W, Cout)
    out = jnp.concatenate([xin_ref[0].astype(jnp.float32), conv], axis=-1)
    o_ref[...] = out[None].astype(o_ref.dtype)               # single fused-concat store


def bn_relu_conv3x3_concat(out1_4d, x_nhwc, scale, shift, w_bf16):
    N, H, W, Ci = out1_4d.shape
    Cin = x_nhwc.shape[-1]
    Cout = w_bf16.shape[-1]
    Cc = Cin + Cout
    hb = _pick_row_block(H, W)
    rb = H // hb
    # TODO(synk): for very large H*W (e.g. 224x224 with wide Ci) the whole-sample-resident
    # out1 block should itself be H-tiled (haloed index_map) to stay under the VMEM budget.
    return pl.pallas_call(
        partial(_bn_relu_conv3x3_concat_kernel, hb=hb),
        grid=(N, rb),
        in_specs=[
            # whole sample, constant over r -> DMA'd once per n, stays VMEM resident
            pl.BlockSpec((1, H, W, Ci), lambda n, r: (n, 0, 0, 0)),
            pl.BlockSpec((1, hb, W, Cin), lambda n, r: (n, r, 0, 0)),
            pl.BlockSpec((1, Ci), lambda n, r: (0, 0)),
            pl.BlockSpec((1, Ci), lambda n, r: (0, 0)),
            pl.BlockSpec((3, 3 * Ci, Cout), lambda n, r: (0, 0, 0)),
        ],
        out_specs=pl.BlockSpec((1, hb, W, Cc), lambda n, r: (n, r, 0, 0)),
        out_shape=jax.ShapeDtypeStruct((N, H, W, Cc), jnp.float32),
        scratch_shapes=[pltpu.VMEM((hb + 2, W, Ci), jnp.float32)],
        compiler_params=pltpu.CompilerParams(
            # blocks are fully independent (window rebuilt per block) -> both axes parallel
            dimension_semantics=("parallel", "parallel"),
            vmem_limit_bytes=VMEM_LIMIT),
    )(out1_4d, x_nhwc, scale, shift, w_bf16)


# ---------------------------------------------------------------------------
# Wrapper reproducing BottleneckBlock.forward (visual=1, dropRate=0.0)
# ---------------------------------------------------------------------------
def bottleneck_block_forward_nhwc(x_nhwc, params):
    # TODO(synk): only the visual==1 / dropRate==0.0 path (ctor defaults) is implemented;
    # visual==2/3 use the extra 3x3/5x5 + dilated convs of the reference module.
    N, H, W, Cin = x_nhwc.shape
    Cinter = params["conv1_w"].shape[0]
    R = N * H * W
    x_nhwc = x_nhwc.astype(jnp.float32)
    x2d = x_nhwc.reshape(R, Cin)

    # ---- bn1 batch statistics (training-mode, biased variance) ----
    s1, ss1 = column_stats(x2d)
    mean1 = s1 / R
    var1 = jnp.maximum(ss1 / R - mean1 * mean1, 0.0)
    inv1 = jax.lax.rsqrt(var1 + EPS)
    scale1 = params["bn1_gamma"][None, :] * inv1
    shift1 = params["bn1_beta"][None, :] - mean1 * scale1

    w1 = jnp.transpose(params["conv1_w"][:, :, 0, 0], (1, 0)).astype(jnp.bfloat16)

    # ---- fused bn1-affine + ReLU + conv1(1x1) + bn2 partial statistics ----
    out1, ps, pss = bn_relu_conv1x1(x2d, scale1, shift1, w1)

    # ---- finish bn2 statistics on the tiny per-block partials ----
    mean2 = jnp.sum(ps, axis=0) / R
    var2 = jnp.maximum(jnp.sum(pss, axis=0) / R - mean2 * mean2, 0.0)
    inv2 = jax.lax.rsqrt(var2 + EPS)
    scale2 = params["bn2_gamma"][None, :] * inv2
    shift2 = params["bn2_beta"][None, :] - mean2 * scale2

    w2 = jnp.transpose(params["conv2_w"], (2, 3, 1, 0))          # (ky, kx, Cinter, Cout)
    w2 = w2.reshape(3, 3 * Cinter, w2.shape[-1]).astype(jnp.bfloat16)   # K = (kx, c)

    # ---- fused bn2-affine + ReLU + zero-pad + conv2(3x3) + concat with x ----
    out1_4d = out1.reshape(N, H, W, Cinter)
    return bn_relu_conv3x3_concat(out1_4d, x_nhwc, scale2, shift2, w2)


def bottleneck_block_forward(x_nchw, params):
    # NCHW interface matching the PyTorch module; the NHWC core fuses the concat in-kernel.
    # TODO(synk): keep the surrounding network NHWC end-to-end to drop these two boundary
    # transposes entirely (use bottleneck_block_forward_nhwc directly).
    x_nhwc = jnp.transpose(x_nchw, (0, 2, 3, 1))
    y = bottleneck_block_forward_nhwc(x_nhwc, params)
    return jnp.transpose(y, (0, 3, 1, 2))


# ---------------------------------------------------------------------------
# Parameter init + pure-XLA reference (correctness check)
# ---------------------------------------------------------------------------
def init_params(key, in_planes, out_planes):
    inter = out_planes * 4
    k1, k2, k3, k4, k5, k6 = jax.random.split(key, 6)
    return {
        "bn1_gamma": 1.0 + 0.1 * jax.random.normal(k1, (in_planes,), jnp.float32),
        "bn1_beta": 0.1 * jax.random.normal(k2, (in_planes,), jnp.float32),
        "conv1_w": 0.2 * jax.random.normal(k3, (inter, in_planes, 1, 1), jnp.float32),
        "bn2_gamma": 1.0 + 0.1 * jax.random.normal(k4, (inter,), jnp.float32),
        "bn2_beta": 0.1 * jax.random.normal(k5, (inter,), jnp.float32),
        "conv2_w": 0.1 * jax.random.normal(k6, (out_planes, inter, 3, 3), jnp.float32),
    }


def _reference_forward(x_nchw, params):
    x = x_nchw.astype(jnp.float32)

    def bn(v, gamma, beta):
        mean = jnp.mean(v, axis=(0, 2, 3), keepdims=True)
        var = jnp.mean((v - mean) ** 2, axis=(0, 2, 3), keepdims=True)
        return ((v - mean) / jnp.sqrt(var + EPS)) * gamma[None, :, None, None] \
            + beta[None, :, None, None]

    a1 = jax.nn.relu(bn(x, params["bn1_gamma"], params["bn1_beta"]))
    out1 = jax.lax.conv_general_dilated(
        a1, params["conv1_w"], (1, 1), "VALID",
        dimension_numbers=("NCHW", "OIHW", "NCHW"))
    a2 = jax.nn.relu(bn(out1, params["bn2_gamma"], params["bn2_beta"]))
    out2 = jax.lax.conv_general_dilated(
        a2, params["conv2_w"], (1, 1), ((1, 1), (1, 1)),
        dimension_numbers=("NCHW", "OIHW", "NCHW"))
    return jnp.concatenate([x, out2], axis=1)


if __name__ == "__main__":
    in_planes, out_planes = 4, 8
    key = jax.random.PRNGKey(0)
    kx1, kx2, kp = jax.random.split(key, 3)
    params = init_params(kp, in_planes, out_planes)
    fwd = jax.jit(bottleneck_block_forward)

    # Case 1: single H row block per sample (hb == H).
    x = jax.random.normal(kx1, (2, in_planes, 16, 16), jnp.float32)
    out = fwd(x, params)
    jax.block_until_ready(out)
    assert out.shape == (2, in_planes + out_planes, 16, 16), out.shape
    assert bool(jnp.all(jnp.isfinite(out)))
    assert bool(jnp.allclose(out[:, :in_planes], x)), "passthrough mismatch"
    ref = _reference_forward(x, params)
    err = float(jnp.max(jnp.abs(out - ref)))
    assert bool(jnp.allclose(out, ref, atol=5e-2, rtol=5e-2)), f"max abs err {err}"

    # Case 2: multiple H row blocks per sample (hb=32, rb=2) -> exercises the halo path.
    x2 = jax.random.normal(kx2, (1, in_planes, 64, 32), jnp.float32)
    out2 = fwd(x2, params)
    jax.block_until_ready(out2)
    assert bool(jnp.allclose(out2[:, :in_planes], x2)), "passthrough mismatch (case 2)"
    ref2 = _reference_forward(x2, params)
    err2 = float(jnp.max(jnp.abs(out2 - ref2)))
    assert bool(jnp.allclose(out2, ref2, atol=5e-2, rtol=5e-2)), f"max abs err {err2}"

    print("KERNEL_OK")
</pallas_src>

<mosaic_0001>
module attributes {stable_mosaic.version = 11 : i64} {
  func.func @_bn_relu_conv3x3_concat_kernel(%arg0: i32, %arg1: i32, %arg2: memref<1x16x16x32xbf16, #tpu.memory_space<vmem>>, %arg3: memref<1x16x16x4xf32, #tpu.memory_space<vmem>>, %arg4: memref<1x32xf32, #tpu.memory_space<vmem>>, %arg5: memref<1x32xf32, #tpu.memory_space<vmem>>, %arg6: memref<3x96x8xbf16, #tpu.memory_space<vmem>>, %arg7: memref<1x16x16x12xf32, #tpu.memory_space<vmem>>, %arg8: memref<18x16x32xf32, #tpu.memory_space<vmem>>) attributes {dimension_semantics = [#tpu.dimension_semantics<parallel>, #tpu.dimension_semantics<parallel>], iteration_bounds = array<i64: 2, 1>, scalar_prefetch = 0 : i64, scratch_operands = 1 : i64, tpu.core_type = #tpu.core_type<tc>, window_params = [{transform_indices = @transform_0, window_bounds = array<i64: 1, 16, 16, 32>}, {transform_indices = @transform_1, window_bounds = array<i64: 1, 16, 16, 4>}, {pipeline_mode = #tpu.pipeline_mode<synchronous>, transform_indices = @transform_2, window_bounds = array<i64: 1, 32>}, {pipeline_mode = #tpu.pipeline_mode<synchronous>, transform_indices = @transform_3, window_bounds = array<i64: 1, 32>}, {pipeline_mode = #tpu.pipeline_mode<synchronous>, transform_indices = @transform_4, window_bounds = array<i64: 3, 96, 8>}, {transform_indices = @transform_5, window_bounds = array<i64: 1, 16, 16, 12>}]} {
    %c16_i32 = arith.constant 16 : i32
    %0 = arith.muli %arg1, %c16_i32 : i32
    %c0 = arith.constant 0 : index
    %c0_0 = arith.constant 0 : index
    %1 = vector.load %arg4[%c0, %c0_0] : memref<1x32xf32, #tpu.memory_space<vmem>>, vector<1x32xf32>
    %c0_1 = arith.constant 0 : index
    %c0_2 = arith.constant 0 : index
    %2 = vector.load %arg5[%c0_1, %c0_2] : memref<1x32xf32, #tpu.memory_space<vmem>>, vector<1x32xf32>
    %c0_3 = arith.constant 0 : index
    %3 = arith.index_cast %0 : i32 to index
    %c0_4 = arith.constant 0 : index
    %c0_5 = arith.constant 0 : index
    %4 = vector.load %arg2[%c0_3, %3, %c0_4, %c0_5] : memref<1x16x16x32xbf16, #tpu.memory_space<vmem>>, vector<1x16x16x32xbf16>
    %5 = vector.shape_cast %4 : vector<1x16x16x32xbf16> to vector<16x16x32xbf16>
    %6 = arith.extf %5 : vector<16x16x32xbf16> to vector<16x16x32xf32>
    %7 = vector.shape_cast %1 : vector<1x32xf32> to vector<1x1x32xf32>
    %8 = vector.broadcast %7 : vector<1x1x32xf32> to vector<16x16x32xf32>
    %9 = arith.mulf %6, %8 : vector<16x16x32xf32>
    %10 = vector.shape_cast %2 : vector<1x32xf32> to vector<1x1x32xf32>
    %11 = vector.broadcast %10 : vector<1x1x32xf32> to vector<16x16x32xf32>
    %12 = arith.addf %9, %11 : vector<16x16x32xf32>
    %cst = arith.constant 0.000000e+00 : f32
    %13 = vector.broadcast %cst : f32 to vector<16x16x32xf32>
    %14 = arith.maximumf %12, %13 : vector<16x16x32xf32>
    %c1 = arith.constant 1 : index
    %c0_6 = arith.constant 0 : index
    %c0_7 = arith.constant 0 : index
    %15 = vector.load %arg8[%c1, %c0_6, %c0_7] : memref<18x16x32xf32, #tpu.memory_space<vmem>>, vector<16x16x32xf32>
    tpu.vector_store %arg8[%c1, %c0_6, %c0_7], %14 {strides = array<i32>} : memref<18x16x32xf32, #tpu.memory_space<vmem>>, vector<16x16x32xf32>,
    %cst_8 = arith.constant 0.000000e+00 : f32
    %16 = vector.broadcast %cst_8 : f32 to vector<1x16x32xf32>
    %c0_9 = arith.constant 0 : index
    %c0_10 = arith.constant 0 : index
    %c0_11 = arith.constant 0 : index
    %17 = vector.load %arg8[%c0_9, %c0_10, %c0_11] : memref<18x16x32xf32, #tpu.memory_space<vmem>>, vector<1x16x32xf32>
    tpu.vector_store %arg8[%c0_9, %c0_10, %c0_11], %16 {strides = array<i32>} : memref<18x16x32xf32, #tpu.memory_space<vmem>>, vector<1x16x32xf32>,
    %c17 = arith.constant 17 : index
    %c0_12 = arith.constant 0 : index
    %c0_13 = arith.constant 0 : index
    %18 = vector.load %arg8[%c17, %c0_12, %c0_13] : memref<18x16x32xf32, #tpu.memory_space<vmem>>, vector<1x16x32xf32>
    tpu.vector_store %arg8[%c17, %c0_12, %c0_13], %16 {strides = array<i32>} : memref<18x16x32xf32, #tpu.memory_space<vmem>>, vector<1x16x32xf32>,
    %c0_i32 = arith.constant 0 : i32
    %19 = arith.cmpi sgt, %arg1, %c0_i32 : i32
    %20 = arith.extui %19 : i1 to i32
    %c0_i32_14 = arith.constant 0 : i32
    %21 = arith.cmpi ne, %20, %c0_i32_14 : i32
    scf.if %21 {
      %c1_i32_60 = arith.constant 1 : i32
      %85 = arith.subi %0, %c1_i32_60 : i32
      %c0_61 = arith.constant 0 : index
      %86 = arith.index_cast %85 : i32 to index
      %c0_62 = arith.constant 0 : index
      %c0_63 = arith.constant 0 : index
      %87 = vector.load %arg2[%c0_61, %86, %c0_62, %c0_63] : memref<1x16x16x32xbf16, #tpu.memory_space<vmem>>, vector<1x1x16x32xbf16>
      %88 = vector.shape_cast %87 : vector<1x1x16x32xbf16> to vector<1x16x32xbf16>
      %89 = arith.extf %88 : vector<1x16x32xbf16> to vector<1x16x32xf32>
      %90 = vector.shape_cast %1 : vector<1x32xf32> to vector<1x1x32xf32>
      %91 = vector.broadcast %90 : vector<1x1x32xf32> to vector<1x16x32xf32>
      %92 = arith.mulf %89, %91 : vector<1x16x32xf32>
      %93 = vector.shape_cast %2 : vector<1x32xf32> to vector<1x1x32xf32>
      %94 = vector.broadcast %93 : vector<1x1x32xf32> to vector<1x16x32xf32>
      %95 = arith.addf %92, %94 : vector<1x16x32xf32>
      %cst_64 = arith.constant 0.000000e+00 : f32
      %96 = vector.broadcast %cst_64 : f32 to vector<1x16x32xf32>
      %97 = arith.maximumf %95, %96 : vector<1x16x32xf32>
      %c0_65 = arith.constant 0 : index
      %c0_66 = arith.constant 0 : index
      %c0_67 = arith.constant 0 : index
      %98 = vector.load %arg8[%c0_65, %c0_66, %c0_67] : memref<18x16x32xf32, #tpu.memory_space<vmem>>, vector<1x16x32xf32>
      tpu.vector_store %arg8[%c0_65, %c0_66, %c0_67], %97 {strides = array<i32>} : memref<18x16x32xf32, #tpu.memory_space<vmem>>, vector<1x16x32xf32>,
    } else {
    }
    %c0_i32_15 = arith.constant 0 : i32
    %22 = arith.cmpi slt, %arg1, %c0_i32_15 : i32
    %23 = arith.extui %22 : i1 to i32
    %c0_i32_16 = arith.constant 0 : i32
    %24 = arith.cmpi ne, %23, %c0_i32_16 : i32
    scf.if %24 {
      %c16_i32_60 = arith.constant 16 : i32
      %85 = arith.addi %0, %c16_i32_60 : i32
      %c0_61 = arith.constant 0 : index
      %86 = arith.index_cast %85 : i32 to index
      %c0_62 = arith.constant 0 : index
      %c0_63 = arith.constant 0 : index
      %87 = vector.load %arg2[%c0_61, %86, %c0_62, %c0_63] : memref<1x16x16x32xbf16, #tpu.memory_space<vmem>>, vector<1x1x16x32xbf16>
      %88 = vector.shape_cast %87 : vector<1x1x16x32xbf16> to vector<1x16x32xbf16>
      %89 = arith.extf %88 : vector<1x16x32xbf16> to vector<1x16x32xf32>
      %90 = vector.shape_cast %1 : vector<1x32xf32> to vector<1x1x32xf32>
      %91 = vector.broadcast %90 : vector<1x1x32xf32> to vector<1x16x32xf32>
      %92 = arith.mulf %89, %91 : vector<1x16x32xf32>
      %93 = vector.shape_cast %2 : vector<1x32xf32> to vector<1x1x32xf32>
      %94 = vector.broadcast %93 : vector<1x1x32xf32> to vector<1x16x32xf32>
      %95 = arith.addf %92, %94 : vector<1x16x32xf32>
      %cst_64 = arith.constant 0.000000e+00 : f32
      %96 = vector.broadcast %cst_64 : f32 to vector<1x16x32xf32>
      %97 = arith.maximumf %95, %96 : vector<1x16x32xf32>
      %c17_65 = arith.constant 17 : index
      %c0_66 = arith.constant 0 : index
      %c0_67 = arith.constant 0 : index
      %98 = vector.load %arg8[%c17_65, %c0_66, %c0_67] : memref<18x16x32xf32, #tpu.memory_space<vmem>>, vector<1x16x32xf32>
      tpu.vector_store %arg8[%c17_65, %c0_66, %c0_67], %97 {strides = array<i32>} : memref<18x16x32xf32, #tpu.memory_space<vmem>>, vector<1x16x32xf32>,
    } else {
    }
    %25 = tpu.iota {dimensions = array<i32: 1>} : vector<16x16x32xi32>
    %c0_17 = arith.constant 0 : index
    %c0_18 = arith.constant 0 : index
    %c0_19 = arith.constant 0 : index
    %26 = vector.load %arg8[%c0_17, %c0_18, %c0_19] : memref<18x16x32xf32, #tpu.memory_space<vmem>>, vector<16x16x32xf32>
    %c1_i32 = arith.constant 1 : i32
    %27 = vector.broadcast %c1_i32 : i32 to vector<16x16x32xi32>
    %28 = arith.cmpi sge, %25, %27 : vector<16x16x32xi32>
    %c1_i32_20 = arith.constant 1 : i32
    %29 = tpu.dynamic_rotate %26 by %c1_i32_20 dim 1 : vector<16x16x32xf32>, i32 -> vector<16x16x32xf32>
    %cst_21 = arith.constant 0.000000e+00 : f32
    %30 = vector.broadcast %cst_21 : f32 to vector<16x16x32xf32>
    %31 = arith.select %28, %29, %30 : vector<16x16x32xi1>, vector<16x16x32xf32>
    %c14_i32 = arith.constant 14 : i32
    %32 = vector.broadcast %c14_i32 : i32 to vector<16x16x32xi32>
    %33 = arith.cmpi sle, %25, %32 : vector<16x16x32xi32>
    %c15_i32 = arith.constant 15 : i32
    %34 = tpu.dynamic_rotate %26 by %c15_i32 dim 1 : vector<16x16x32xf32>, i32 -> vector<16x16x32xf32>
    %cst_22 = arith.constant 0.000000e+00 : f32
    %35 = vector.broadcast %cst_22 : f32 to vector<16x16x32xf32>
    %36 = arith.select %33, %34, %35 : vector<16x16x32xi1>, vector<16x16x32xf32>
    %37 = tpu.concatenate %31, %26, %36 in 2 : vector<16x16x32xf32>, vector<16x16x32xf32>, vector<16x16x32xf32> -> vector<16x16x96xf32>
    %38 = vector.shape_cast %37 : vector<16x16x96xf32> to vector<256x96xf32>
    %39 = arith.truncf %38 : vector<256x96xf32> to vector<256x96xbf16>
    %c0_23 = arith.constant 0 : index
    %c0_24 = arith.constant 0 : index
    %c0_25 = arith.constant 0 : index
    %40 = vector.load %arg6[%c0_23, %c0_24, %c0_25] : memref<3x96x8xbf16, #tpu.memory_space<vmem>>, vector<1x96x8xbf16>
    %41 = vector.shape_cast %40 : vector<1x96x8xbf16> to vector<96x8xbf16>
    %cst_26 = arith.constant dense<0.000000e+00> : vector<256x8xf32>
    %42 = tpu.matmul %39, %41, %cst_26 {dimension_numbers = #tpu.dot_dimension_numbers<[1], [0], [0], [1], [0, 0, 1, 1], [], []>} : vector<256x96xbf16>, vector<96x8xbf16>, vector<256x8xf32> -> vector<256x8xf32>
    %c1_27 = arith.constant 1 : index
    %c0_28 = arith.constant 0 : index
    %c0_29 = arith.constant 0 : index
    %43 = vector.load %arg8[%c1_27, %c0_28, %c0_29] : memref<18x16x32xf32, #tpu.memory_space<vmem>>, vector<16x16x32xf32>
    %c1_i32_30 = arith.constant 1 : i32
    %44 = vector.broadcast %c1_i32_30 : i32 to vector<16x16x32xi32>
    %45 = arith.cmpi sge, %25, %44 : vector<16x16x32xi32>
    %c1_i32_31 = arith.constant 1 : i32
    %46 = tpu.dynamic_rotate %43 by %c1_i32_31 dim 1 : vector<16x16x32xf32>, i32 -> vector<16x16x32xf32>
    %cst_32 = arith.constant 0.000000e+00 : f32
    %47 = vector.broadcast %cst_32 : f32 to vector<16x16x32xf32>
    %48 = arith.select %45, %46, %47 : vector<16x16x32xi1>, vector<16x16x32xf32>
    %c14_i32_33 = arith.constant 14 : i32
    %49 = vector.broadcast %c14_i32_33 : i32 to vector<16x16x32xi32>
    %50 = arith.cmpi sle, %25, %49 : vector<16x16x32xi32>
    %c15_i32_34 = arith.constant 15 : i32
    %51 = tpu.dynamic_rotate %43 by %c15_i32_34 dim 1 : vector<16x16x32xf32>, i32 -> vector<16x16x32xf32>
    %cst_35 = arith.constant 0.000000e+00 : f32
    %52 = vector.broadcast %cst_35 : f32 to vector<16x16x32xf32>
    %53 = arith.select %50, %51, %52 : vector<16x16x32xi1>, vector<16x16x32xf32>
    %54 = tpu.concatenate %48, %43, %53 in 2 : vector<16x16x32xf32>, vector<16x16x32xf32>, vector<16x16x32xf32> -> vector<16x16x96xf32>
    %55 = vector.shape_cast %54 : vector<16x16x96xf32> to vector<256x96xf32>
    %56 = arith.truncf %55 : vector<256x96xf32> to vector<256x96xbf16>
    %c1_36 = arith.constant 1 : index
    %c0_37 = arith.constant 0 : index
    %c0_38 = arith.constant 0 : index
    %57 = vector.load %arg6[%c1_36, %c0_37, %c0_38] : memref<3x96x8xbf16, #tpu.memory_space<vmem>>, vector<1x96x8xbf16>
    %58 = vector.shape_cast %57 : vector<1x96x8xbf16> to vector<96x8xbf16>
    %cst_39 = arith.constant dense<0.000000e+00> : vector<256x8xf32>
    %59 = tpu.matmul %56, %58, %cst_39 {dimension_numbers = #tpu.dot_dimension_numbers<[1], [0], [0], [1], [0, 0, 1, 1], [], []>} : vector<256x96xbf16>, vector<96x8xbf16>, vector<256x8xf32> -> vector<256x8xf32>
    %60 = arith.addf %42, %59 : vector<256x8xf32>
    %c2 = arith.constant 2 : index
    %c0_40 = arith.constant 0 : index
    %c0_41 = arith.constant 0 : index
    %61 = vector.load %arg8[%c2, %c0_40, %c0_41] : memref<18x16x32xf32, #tpu.memory_space<vmem>>, vector<16x16x32xf32>
    %c1_i32_42 = arith.constant 1 : i32
    %62 = vector.broadcast %c1_i32_42 : i32 to vector<16x16x32xi32>
    %63 = arith.cmpi sge, %25, %62 : vector<16x16x32xi32>
    %c1_i32_43 = arith.constant 1 : i32
    %64 = tpu.dynamic_rotate %61 by %c1_i32_43 dim 1 : vector<16x16x32xf32>, i32 -> vector<16x16x32xf32>
    %cst_44 = arith.constant 0.000000e+00 : f32
    %65 = vector.broadcast %cst_44 : f32 to vector<16x16x32xf32>
    %66 = arith.select %63, %64, %65 : vector<16x16x32xi1>, vector<16x16x32xf32>
    %c14_i32_45 = arith.constant 14 : i32
    %67 = vector.broadcast %c14_i32_45 : i32 to vector<16x16x32xi32>
    %68 = arith.cmpi sle, %25, %67 : vector<16x16x32xi32>
    %c15_i32_46 = arith.constant 15 : i32
    %69 = tpu.dynamic_rotate %61 by %c15_i32_46 dim 1 : vector<16x16x32xf32>, i32 -> vector<16x16x32xf32>
    %cst_47 = arith.constant 0.000000e+00 : f32
    %70 = vector.broadcast %cst_47 : f32 to vector<16x16x32xf32>
    %71 = arith.select %68, %69, %70 : vector<16x16x32xi1>, vector<16x16x32xf32>
    %72 = tpu.concatenate %66, %61, %71 in 2 : vector<16x16x32xf32>, vector<16x16x32xf32>, vector<16x16x32xf32> -> vector<16x16x96xf32>
    %73 = vector.shape_cast %72 : vector<16x16x96xf32> to vector<256x96xf32>
    %74 = arith.truncf %73 : vector<256x96xf32> to vector<256x96xbf16>
    %c2_48 = arith.constant 2 : index
    %c0_49 = arith.constant 0 : index
    %c0_50 = arith.constant 0 : index
    %75 = vector.load %arg6[%c2_48, %c0_49, %c0_50] : memref<3x96x8xbf16, #tpu.memory_space<vmem>>, vector<1x96x8xbf16>
    %76 = vector.shape_cast %75 : vector<1x96x8xbf16> to vector<96x8xbf16>
    %cst_51 = arith.constant dense<0.000000e+00> : vector<256x8xf32>
    %77 = tpu.matmul %74, %76, %cst_51 {dimension_numbers = #tpu.dot_dimension_numbers<[1], [0], [0], [1], [0, 0, 1, 1], [], []>} : vector<256x96xbf16>, vector<96x8xbf16>, vector<256x8xf32> -> vector<256x8xf32>
    %78 = arith.addf %60, %77 : vector<256x8xf32>
    %79 = vector.shape_cast %78 : vector<256x8xf32> to vector<16x16x8xf32>
    %c0_52 = arith.constant 0 : index
    %c0_53 = arith.constant 0 : index
    %c0_54 = arith.constant 0 : index
    %c0_55 = arith.constant 0 : index
    %80 = vector.load %arg3[%c0_52, %c0_53, %c0_54, %c0_55] : memref<1x16x16x4xf32, #tpu.memory_space<vmem>>, vector<1x16x16x4xf32>
    %81 = vector.shape_cast %80 : vector<1x16x16x4xf32> to vector<16x16x4xf32>
    %82 = tpu.concatenate %81, %79 in 2 : vector<16x16x4xf32>, vector<16x16x8xf32> -> vector<16x16x12xf32>
    %83 = vector.shape_cast %82 : vector<16x16x12xf32> to vector<1x16x16x12xf32>
    %c0_56 = arith.constant 0 : index
    %c0_57 = arith.constant 0 : index
    %c0_58 = arith.constant 0 : index
    %c0_59 = arith.constant 0 : index
    %84 = vector.load %arg7[%c0_56, %c0_57, %c0_58, %c0_59] : memref<1x16x16x12xf32, #tpu.memory_space<vmem>>, vector<1x16x16x12xf32>
    tpu.vector_store %arg7[%c0_56, %c0_57, %c0_58, %c0_59], %83 {strides = array<i32>} : memref<1x16x16x12xf32, #tpu.memory_space<vmem>>, vector<1x16x16x12xf32>,
    return
  }
  func.func @transform_0(%arg0: i32, %arg1: i32) -> (i32, i32, i32, i32) {
    %c0_i32 = arith.constant 0 : i32
    %c0_i32_0 = arith.constant 0 : i32
    %c0_i32_1 = arith.constant 0 : i32
    %c0_i32_2 = arith.constant 0 : i32
    return %arg0, %c0_i32, %c0_i32_0, %c0_i32_1 : i32, i32, i32, i32
  }
  func.func @transform_1(%arg0: i32, %arg1: i32) -> (i32, i32, i32, i32) {
    %c0_i32 = arith.constant 0 : i32
    %c0_i32_0 = arith.constant 0 : i32
    %c0_i32_1 = arith.constant 0 : i32
    return %arg0, %arg1, %c0_i32, %c0_i32_0 : i32, i32, i32, i32
  }
  func.func @transform_2(%arg0: i32, %arg1: i32) -> (i32, i32) {
    %c0_i32 = arith.constant 0 : i32
    %c0_i32_0 = arith.constant 0 : i32
    %c0_i32_1 = arith.constant 0 : i32
    return %c0_i32, %c0_i32_0 : i32, i32
  }
  func.func @transform_3(%arg0: i32, %arg1: i32) -> (i32, i32) {
    %c0_i32 = arith.constant 0 : i32
    %c0_i32_0 = arith.constant 0 : i32
    %c0_i32_1 = arith.constant 0 : i32
    return %c0_i32, %c0_i32_0 : i32, i32
  }
  func.func @transform_4(%arg0: i32, %arg1: i32) -> (i32, i32, i32) {
    %c0_i32 = arith.constant 0 : i32
    %c0_i32_0 = arith.constant 0 : i32
    %c0_i32_1 = arith.constant 0 : i32
    %c0_i32_2 = arith.constant 0 : i32
    return %c0_i32, %c0_i32_0, %c0_i32_1 : i32, i32, i32
  }
  func.func @transform_5(%arg0: i32, %arg1: i32) -> (i32, i32, i32, i32) {
    %c0_i32 = arith.constant 0 : i32
    %c0_i32_0 = arith.constant 0 : i32
    %c0_i32_1 = arith.constant 0 : i32
    return %arg0, %arg1, %c0_i32, %c0_i32_0 : i32, i32, i32, i32
  }
}

module attributes {stable_mosaic.version = 11 : i64} {
  func.func @_column_stats_kernel(%arg0: i32, %arg1: memref<512x4xf32, #tpu.memory_space<vmem>>, %arg2: memref<1x1x4xf32, #tpu.memory_space<vmem>>, %arg3: memref<1x1x4xf32, #tpu.memory_space<vmem>>) attributes {dimension_semantics = [#tpu.dimension_semantics<parallel>], iteration_bounds = array<i64: 1>, scalar_prefetch = 0 : i64, scratch_operands = 0 : i64, tpu.core_type = #tpu.core_type<tc>, window_params = [{transform_indices = @transform_0, window_bounds = array<i64: 512, 4>}, {transform_indices = @transform_1, window_bounds = array<i64: 1, 1, 4>}, {transform_indices = @transform_2, window_bounds = array<i64: 1, 1, 4>}]} {
    %c0 = arith.constant 0 : index
    %c0_0 = arith.constant 0 : index
    %0 = vector.load %arg1[%c0, %c0_0] : memref<512x4xf32, #tpu.memory_space<vmem>>, vector<512x4xf32>
    %c512_i32 = arith.constant 512 : i32
    %1 = arith.muli %arg0, %c512_i32 : i32
    %2 = tpu.iota {dimensions = array<i32: 0>} : vector<512x1xi32>
    %3 = vector.broadcast %1 : i32 to vector<512x1xi32>
    %4 = arith.addi %3, %2 : vector<512x1xi32>
    %c512_i32_1 = arith.constant 512 : i32
    %5 = vector.broadcast %c512_i32_1 : i32 to vector<512x1xi32>
    %6 = arith.cmpi slt, %4, %5 : vector<512x1xi32>
    %cst = arith.constant 0.000000e+00 : f32
    %7 = vector.shape_cast %6 : vector<512x1xi1> to vector<512x1xi1>
    %8 = vector.broadcast %7 : vector<512x1xi1> to vector<512x4xi1>
    %9 = vector.broadcast %cst : f32 to vector<512x4xf32>
    %10 = arith.select %8, %0, %9 : vector<512x4xi1>, vector<512x4xf32>
    %cst_2 = arith.constant dense<0.000000e+00> : vector<4xf32>
    %11 = vector.multi_reduction <add>, %10, %cst_2 [0] : vector<512x4xf32> to vector<4xf32>
    %12 = vector.shape_cast %11 : vector<4xf32> to vector<1x4xf32>
    %13 = vector.shape_cast %12 : vector<1x4xf32> to vector<1x1x4xf32>
    %c0_3 = arith.constant 0 : index
    %c0_4 = arith.constant 0 : index
    %c0_5 = arith.constant 0 : index
    %14 = vector.load %arg2[%c0_3, %c0_4, %c0_5] : memref<1x1x4xf32, #tpu.memory_space<vmem>>, vector<1x1x4xf32>
    tpu.vector_store %arg2[%c0_3, %c0_4, %c0_5], %13 {strides = array<i32>} : memref<1x1x4xf32, #tpu.memory_space<vmem>>, vector<1x1x4xf32>,
    %15 = arith.mulf %10, %10 : vector<512x4xf32>
    %cst_6 = arith.constant dense<0.000000e+00> : vector<4xf32>
    %16 = vector.multi_reduction <add>, %15, %cst_6 [0] : vector<512x4xf32> to vector<4xf32>
    %17 = vector.shape_cast %16 : vector<4xf32> to vector<1x4xf32>
    %18 = vector.shape_cast %17 : vector<1x4xf32> to vector<1x1x4xf32>
    %c0_7 = arith.constant 0 : index
    %c0_8 = arith.constant 0 : index
    %c0_9 = arith.constant 0 : index
    %19 = vector.load %arg3[%c0_7, %c0_8, %c0_9] : memref<1x1x4xf32, #tpu.memory_space<vmem>>, vector<1x1x4xf32>
    tpu.vector_store %arg3[%c0_7, %c0_8, %c0_9], %18 {strides = array<i32>} : memref<1x1x4xf32, #tpu.memory_space<vmem>>, vector<1x1x4xf32>,
    return
  }
  func.func @transform_0(%arg0: i32) -> (i32, i32) {
    %c0_i32 = arith.constant 0 : i32
    %c0_i32_0 = arith.constant 0 : i32
    return %arg0, %c0_i32 : i32, i32
  }
  func.func @transform_1(%arg0: i32) -> (i32, i32, i32) {
    %c0_i32 = arith.constant 0 : i32
    %c0_i32_0 = arith.constant 0 : i32
    %c0_i32_1 = arith.constant 0 : i32
    return %arg0, %c0_i32, %c0_i32_0 : i32, i32, i32
  }
  func.func @transform_2(%arg0: i32) -> (i32, i32, i32) {
    %c0_i32 = arith.constant 0 : i32
    %c0_i32_0 = arith.constant 0 : i32
    %c0_i32_1 = arith.constant 0 : i32
    return %arg0, %c0_i32, %c0_i32_0 : i32, i32, i32
  }
}

module attributes {stable_mosaic.version = 11 : i64} {
  func.func @_bn_relu_conv1x1_stats_kernel(%arg0: i32, %arg1: memref<512x4xf32, #tpu.memory_space<vmem>>, %arg2: memref<1x4xf32, #tpu.memory_space<vmem>>, %arg3: memref<1x4xf32, #tpu.memory_space<vmem>>, %arg4: memref<4x32xbf16, #tpu.memory_space<vmem>>, %arg5: memref<512x32xbf16, #tpu.memory_space<vmem>>, %arg6: memref<1x1x32xf32, #tpu.memory_space<vmem>>, %arg7: memref<1x1x32xf32, #tpu.memory_space<vmem>>) attributes {dimension_semantics = [#tpu.dimension_semantics<parallel>], iteration_bounds = array<i64: 1>, scalar_prefetch = 0 : i64, scratch_operands = 0 : i64, tpu.core_type = #tpu.core_type<tc>, window_params = [{transform_indices = @transform_0, window_bounds = array<i64: 512, 4>}, {pipeline_mode = #tpu.pipeline_mode<synchronous>, transform_indices = @transform_1, window_bounds = array<i64: 1, 4>}, {pipeline_mode = #tpu.pipeline_mode<synchronous>, transform_indices = @transform_2, window_bounds = array<i64: 1, 4>}, {pipeline_mode = #tpu.pipeline_mode<synchronous>, transform_indices = @transform_3, window_bounds = array<i64: 4, 32>}, {transform_indices = @transform_4, window_bounds = array<i64: 512, 32>}, {transform_indices = @transform_5, window_bounds = array<i64: 1, 1, 32>}, {transform_indices = @transform_6, window_bounds = array<i64: 1, 1, 32>}]} {
    %c0 = arith.constant 0 : index
    %c0_0 = arith.constant 0 : index
    %0 = vector.load %arg1[%c0, %c0_0] : memref<512x4xf32, #tpu.memory_space<vmem>>, vector<512x4xf32>
    %c0_1 = arith.constant 0 : index
    %c0_2 = arith.constant 0 : index
    %1 = vector.load %arg2[%c0_1, %c0_2] : memref<1x4xf32, #tpu.memory_space<vmem>>, vector<1x4xf32>
    %2 = vector.broadcast %1 : vector<1x4xf32> to vector<512x4xf32>
    %3 = arith.mulf %0, %2 : vector<512x4xf32>
    %c0_3 = arith.constant 0 : index
    %c0_4 = arith.constant 0 : index
    %4 = vector.load %arg3[%c0_3, %c0_4] : memref<1x4xf32, #tpu.memory_space<vmem>>, vector<1x4xf32>
    %5 = vector.broadcast %4 : vector<1x4xf32> to vector<512x4xf32>
    %6 = arith.addf %3, %5 : vector<512x4xf32>
    %cst = arith.constant 0.000000e+00 : f32
    %7 = vector.broadcast %cst : f32 to vector<512x4xf32>
    %8 = arith.maximumf %6, %7 : vector<512x4xf32>
    %9 = arith.truncf %8 : vector<512x4xf32> to vector<512x4xbf16>
    %c0_5 = arith.constant 0 : index
    %c0_6 = arith.constant 0 : index
    %10 = vector.load %arg4[%c0_5, %c0_6] : memref<4x32xbf16, #tpu.memory_space<vmem>>, vector<4x32xbf16>
    %cst_7 = arith.constant dense<0.000000e+00> : vector<512x32xf32>
    %11 = tpu.matmul %9, %10, %cst_7 {dimension_numbers = #tpu.dot_dimension_numbers<[1], [0], [0], [1], [0, 0, 1, 1], [], []>} : vector<512x4xbf16>, vector<4x32xbf16>, vector<512x32xf32> -> vector<512x32xf32>
    %12 = arith.truncf %11 : vector<512x32xf32> to vector<512x32xbf16>
    %c0_8 = arith.constant 0 : index
    %c0_9 = arith.constant 0 : index
    %13 = vector.load %arg5[%c0_8, %c0_9] : memref<512x32xbf16, #tpu.memory_space<vmem>>, vector<512x32xbf16>
    tpu.vector_store %arg5[%c0_8, %c0_9], %12 {strides = array<i32>} : memref<512x32xbf16, #tpu.memory_space<vmem>>, vector<512x32xbf16>,
    %c512_i32 = arith.constant 512 : i32
    %14 = arith.muli %arg0, %c512_i32 : i32
    %15 = tpu.iota {dimensions = array<i32: 0>} : vector<512x1xi32>
    %16 = vector.broadcast %14 : i32 to vector<512x1xi32>
    %17 = arith.addi %16, %15 : vector<512x1xi32>
    %c512_i32_10 = arith.constant 512 : i32
    %18 = vector.broadcast %c512_i32_10 : i32 to vector<512x1xi32>
    %19 = arith.cmpi slt, %17, %18 : vector<512x1xi32>
    %cst_11 = arith.constant 0.000000e+00 : f32
    %20 = vector.shape_cast %19 : vector<512x1xi1> to vector<512x1xi1>
    %21 = vector.broadcast %20 : vector<512x1xi1> to vector<512x32xi1>
    %22 = vector.broadcast %cst_11 : f32 to vector<512x32xf32>
    %23 = arith.select %21, %11, %22 : vector<512x32xi1>, vector<512x32xf32>
    %cst_12 = arith.constant dense<0.000000e+00> : vector<32xf32>
    %24 = vector.multi_reduction <add>, %23, %cst_12 [0] : vector<512x32xf32> to vector<32xf32>
    %25 = vector.shape_cast %24 : vector<32xf32> to vector<1x32xf32>
    %26 = vector.shape_cast %25 : vector<1x32xf32> to vector<1x1x32xf32>
    %c0_13 = arith.constant 0 : index
    %c0_14 = arith.constant 0 : index
    %c0_15 = arith.constant 0 : index
    %27 = vector.load %arg6[%c0_13, %c0_14, %c0_15] : memref<1x1x32xf32, #tpu.memory_space<vmem>>, vector<1x1x32xf32>
    tpu.vector_store %arg6[%c0_13, %c0_14, %c0_15], %26 {strides = array<i32>} : memref<1x1x32xf32, #tpu.memory_space<vmem>>, vector<1x1x32xf32>,
    %28 = arith.mulf %23, %23 : vector<512x32xf32>
    %cst_16 = arith.constant dense<0.000000e+00> : vector<32xf32>
    %29 = vector.multi_reduction <add>, %28, %cst_16 [0] : vector<512x32xf32> to vector<32xf32>
    %30 = vector.shape_cast %29 : vector<32xf32> to vector<1x32xf32>
    %31 = vector.shape_cast %30 : vector<1x32xf32> to vector<1x1x32xf32>
    %c0_17 = arith.constant 0 : index
    %c0_18 = arith.constant 0 : index
    %c0_19 = arith.constant 0 : index
    %32 = vector.load %arg7[%c0_17, %c0_18, %c0_19] : memref<1x1x32xf32, #tpu.memory_space<vmem>>, vector<1x1x32xf32>
    tpu.vector_store %arg7[%c0_17, %c0_18, %c0_19], %31 {strides = array<i32>} : memref<1x1x32xf32, #tpu.memory_space<vmem>>, vector<1x1x32xf32>,
    return
  }
  func.func @transform_0(%arg0: i32) -> (i32, i32) {
    %c0_i32 = arith.constant 0 : i32
    %c0_i32_0 = arith.constant 0 : i32
    return %arg0, %c0_i32 : i32, i32
  }
  func.func @transform_1(%arg0: i32) -> (i32, i32) {
    %c0_i32 = arith.constant 0 : i32
    %c0_i32_0 = arith.constant 0 : i32
    %c0_i32_1 = arith.constant 0 : i32
    return %c0_i32, %c0_i32_0 : i32, i32
  }
  func.func @transform_2(%arg0: i32) -> (i32, i32) {
    %c0_i32 = arith.constant 0 : i32
    %c0_i32_0 = arith.constant 0 : i32
    %c0_i32_1 = arith.constant 0 : i32
    return %c0_i32, %c0_i32_0 : i32, i32
  }
  func.func @transform_3(%arg0: i32) -> (i32, i32) {
    %c0_i32 = arith.constant 0 : i32
    %c0_i32_0 = arith.constant 0 : i32
    %c0_i32_1 = arith.constant 0 : i32
    return %c0_i32, %c0_i32_0 : i32, i32
  }
  func.func @transform_4(%arg0: i32) -> (i32, i32) {
    %c0_i32 = arith.constant 0 : i32
    %c0_i32_0 = arith.constant 0 : i32
    return %arg0, %c0_i32 : i32, i32
  }
  func.func @transform_5(%arg0: i32) -> (i32, i32, i32) {
    %c0_i32 = arith.constant 0 : i32
    %c0_i32_0 = arith.constant 0 : i32
    %c0_i32_1 = arith.constant 0 : i32
    return %arg0, %c0_i32, %c0_i32_0 : i32, i32, i32
  }
  func.func @transform_6(%arg0: i32) -> (i32, i32, i32) {
    %c0_i32 = arith.constant 0 : i32
    %c0_i32_0 = arith.constant 0 : i32
    %c0_i32_1 = arith.constant 0 : i32
    return %arg0, %c0_i32, %c0_i32_0 : i32, i32, i32
  }
}

</mosaic_0001>

<llo_original>
// kernel: bottleneck_block_forward.3
$region0: #{bottleneck_block_forward.3}
  #allocation0 [shape = 'u32[]', space=smem, size = 0x4, offset = 0x4, fixed_abs, tag = 'smem constant byte address 0x4 - core index']
  #allocation1 [shape = 'u32[72,128]{1,0:T(1,128)}', space=vmem, size = 0x9000, scoped, tag = 'internal scratch']
  %s0 = inlined_call_operand.vmem [shape: f32[512,4], index: 0, kind: input, shape index: {}]
  %s1 = inlined_call_operand.vmem [shape: f32[1,1,4], index: 1, kind: output, shape index: {0}]
  %s2 = inlined_call_operand.vmem [shape: f32[1,1,4], index: 2, kind: output, shape index: {1}]
  %3 = xla_tuple %s1, %s2
  %s4 = sld [smem:[#allocation0]]
  $region22: #{bottleneck_block_forward.3} parent=0
    _
  %s6 = ssub.s32 1, %s4
  %s7 = scalar_select 0, %s6, %s4
  // Predicated region
  $region2: #{bottleneck_block_forward.3} parent=0 // pred_check
    _
  $region3: #{bottleneck_block_forward.3} parent=0 // pred_check_branch
    %9 = sbr.rel (0) target = $region5
  $region4: #{bottleneck_block_forward.3} parent=0 // pred_region
    _
  $region5: #{bottleneck_block_forward.3} parent=0 // pred_fallthru
    _
  %v10 = vld [vmem:[%s0] sm:$0xff]
  %v11 = vld [vmem:[%s0 + $0x8] sm:$0xff]
  %v12 = vld [vmem:[%s0 + $0x10] sm:$0xff]
  %v13 = vld [vmem:[%s0 + $0x18] sm:$0xff]
  %v14 = vld [vmem:[%s0 + $0x20] sm:$0xff]
  %v15 = vld [vmem:[%s0 + $0x28] sm:$0xff]
  %v16 = vld [vmem:[%s0 + $0x30] sm:$0xff]
  %v17 = vld [vmem:[%s0 + $0x38] sm:$0xff]
  %v18 = vld [vmem:[%s0 + $0x40] sm:$0xff]
  %v19 = vld [vmem:[%s0 + $0x48] sm:$0xff]
  %v20 = vld [vmem:[%s0 + $0x50] sm:$0xff]
  %v21 = vld [vmem:[%s0 + $0x58] sm:$0xff]
  %v22 = vld [vmem:[%s0 + $0x60] sm:$0xff]
  %v23 = vld [vmem:[%s0 + $0x68] sm:$0xff]
  %v24 = vld [vmem:[%s0 + $0x70] sm:$0xff]
  %v25 = vld [vmem:[%s0 + $0x78] sm:$0xff]
  %v26 = vld [vmem:[%s0 + $0x80] sm:$0xff]
  %v27 = vld [vmem:[%s0 + $0x88] sm:$0xff]
  %v28 = vld [vmem:[%s0 + $0x90] sm:$0xff]
  %v29 = vld [vmem:[%s0 + $0x98] sm:$0xff]
  %v30 = vld [vmem:[%s0 + $0xa0] sm:$0xff]
  %v31 = vld [vmem:[%s0 + $0xa8] sm:$0xff]
  %v32 = vld [vmem:[%s0 + $0xb0] sm:$0xff]
  %v33 = vld [vmem:[%s0 + $0xb8] sm:$0xff]
  %v34 = vld [vmem:[%s0 + $0xc0] sm:$0xff]
  %v35 = vld [vmem:[%s0 + $0xc8] sm:$0xff]
  %v36 = vld [vmem:[%s0 + $0xd0] sm:$0xff]
  %v37 = vld [vmem:[%s0 + $0xd8] sm:$0xff]
  %v38 = vld [vmem:[%s0 + $0xe0] sm:$0xff]
  %v39 = vld [vmem:[%s0 + $0xe8] sm:$0xff]
  %v40 = vld [vmem:[%s0 + $0xf0] sm:$0xff]
  %v41 = vld [vmem:[%s0 + $0xf8] sm:$0xff]
  %v42 = vld [vmem:[%s0 + $0x100] sm:$0xff]
  %v43 = vld [vmem:[%s0 + $0x108] sm:$0xff]
  %v44 = vld [vmem:[%s0 + $0x110] sm:$0xff]
  %v45 = vld [vmem:[%s0 + $0x118] sm:$0xff]
  %v46 = vld [vmem:[%s0 + $0x120] sm:$0xff]
  %v47 = vld [vmem:[%s0 + $0x128] sm:$0xff]
  %v48 = vld [vmem:[%s0 + $0x130] sm:$0xff]
  %v49 = vld [vmem:[%s0 + $0x138] sm:$0xff]
  %v50 = vld [vmem:[%s0 + $0x140] sm:$0xff]
  %v51 = vld [vmem:[%s0 + $0x148] sm:$0xff]
  %v52 = vld [vmem:[%s0 + $0x150] sm:$0xff]
  %v53 = vld [vmem:[%s0 + $0x158] sm:$0xff]
  %v54 = vld [vmem:[%s0 + $0x160] sm:$0xff]
  %v55 = vld [vmem:[%s0 + $0x168] sm:$0xff]
  %v56 = vld [vmem:[%s0 + $0x170] sm:$0xff]
  %v57 = vld [vmem:[%s0 + $0x178] sm:$0xff]
  %v58 = vld [vmem:[%s0 + $0x180] sm:$0xff]
  %v59 = vld [vmem:[%s0 + $0x188] sm:$0xff]
  %v60 = vld [vmem:[%s0 + $0x190] sm:$0xff]
  %v61 = vld [vmem:[%s0 + $0x198] sm:$0xff]
  %v62 = vld [vmem:[%s0 + $0x1a0] sm:$0xff]
  %v63 = vld [vmem:[%s0 + $0x1a8] sm:$0xff]
  %v64 = vld [vmem:[%s0 + $0x1b0] sm:$0xff]
  %v65 = vld [vmem:[%s0 + $0x1b8] sm:$0xff]
  %v66 = vld [vmem:[%s0 + $0x1c0] sm:$0xff]
  %v67 = vld [vmem:[%s0 + $0x1c8] sm:$0xff]
  %v68 = vld [vmem:[%s0 + $0x1d0] sm:$0xff]
  %v69 = vld [vmem:[%s0 + $0x1d8] sm:$0xff]
  %v70 = vld [vmem:[%s0 + $0x1e0] sm:$0xff]
  %v71 = vld [vmem:[%s0 + $0x1e8] sm:$0xff]
  %v72 = vld [vmem:[%s0 + $0x1f0] sm:$0xff]
  %v73 = vld [vmem:[%s0 + $0x1f8] sm:$0xff]
  %s74 = smul.u32 0, 512
  %v75 = vlaneseq
  %v76 = vshrl.u32 %v75, 7
  %v77 = vadd.s32 %v76, 8
  %v78 = vadd.s32 %v76, 16
  %v79 = vadd.s32 %v76, 24
  %v80 = vadd.s32 %v76, 32
  %v81 = vadd.s32 %v76, 40
  %v82 = vadd.s32 %v76, 48
  %v83 = vadd.s32 %v76, 56
  %v84 = vadd.s32 %v76, 64
  %v85 = vadd.s32 %v76, 72
  %v86 = vadd.s32 %v76, 80
  %v87 = vadd.s32 %v76, 88
  %v88 = vadd.s32 %v76, 96
  %v89 = vadd.s32 %v76, 104
  %v90 = vadd.s32 %v76, 112
  %v91 = vadd.s32 %v76, 120
  %v92 = vadd.s32 %v76, 128
  %v93 = vadd.s32 %v76, 136
  %v94 = vadd.s32 %v76, 144
  %v95 = vadd.s32 %v76, 152
  %v96 = vadd.s32 %v76, 160
  %v97 = vadd.s32 %v76, 168
  %v98 = vadd.s32 %v76, 176
  %v99 = vadd.s32 %v76, 184
  %v100 = vadd.s32 %v76, 192
  %v101 = vadd.s32 %v76, 200
  %v102 = vadd.s32 %v76, 208
  %v103 = vadd.s32 %v76, 216
  %v104 = vadd.s32 %v76, 224
  %v105 = vadd.s32 %v76, 232
  %v106 = vadd.s32 %v76, 240
  %v107 = vadd.s32 %v76, 248
  %v108 = vadd.s32 %v76, 256
  %v109 = vadd.s32 %v76, 264
  %v110 = vadd.s32 %v76, 272
  %v111 = vadd.s32 %v76, 280
  %v112 = vadd.s32 %v76, 288
  %v113 = vadd.s32 %v76, 296
  %v114 = vadd.s32 %v76, 304
  %v115 = vadd.s32 %v76, 312
  %v116 = vadd.s32 %v76, 320
  %v117 = vadd.s32 %v76, 328
  %v118 = vadd.s32 %v76, 336
  %v119 = vadd.s32 %v76, 344
  %v120 = vadd.s32 %v76, 352
  %v121 = vadd.s32 %v76, 360
  %v122 = vadd.s32 %v76, 368
  %v123 = vadd.s32 %v76, 376
  %v124 = vadd.s32 %v76, 384
  %v125 = vadd.s32 %v76, 392
  %v126 = vadd.s32 %v76, 400
  %v127 = vadd.s32 %v76, 408
  %v128 = vadd.s32 %v76, 416
  %v129 = vadd.s32 %v76, 424
  %v130 = vadd.s32 %v76, 432
  %v131 = vadd.s32 %v76, 440
  %v132 = vadd.s32 %v76, 448
  %v133 = vadd.s32 %v76, 456
  %v134 = vadd.s32 %v76, 464
  %v135 = vadd.s32 %v76, 472
  %v136 = vadd.s32 %v76, 480
  %v137 = vadd.s32 %v76, 488
  %v138 = vadd.s32 %v76, 496
  %v139 = vadd.s32 %v76, 504
  %v140 = vstv %s74
  %v141 = vadd.s32 %v140, %v76
  %v142 = vadd.s32 %v140, %v77
  %v143 = vadd.s32 %v140, %v78
  %v144 = vadd.s32 %v140, %v79
  %v145 = vadd.s32 %v140, %v80
  %v146 = vadd.s32 %v140, %v81
  %v147 = vadd.s32 %v140, %v82
  %v148 = vadd.s32 %v140, %v83
  %v149 = vadd.s32 %v140, %v84
  %v150 = vadd.s32 %v140, %v85
  %v151 = vadd.s32 %v140, %v86
  %v152 = vadd.s32 %v140, %v87
  %v153 = vadd.s32 %v140, %v88
  %v154 = vadd.s32 %v140, %v89
  %v155 = vadd.s32 %v140, %v90
  %v156 = vadd.s32 %v140, %v91
  %v157 = vadd.s32 %v140, %v92
  %v158 = vadd.s32 %v140, %v93
  %v159 = vadd.s32 %v140, %v94
  %v160 = vadd.s32 %v140, %v95
  %v161 = vadd.s32 %v140, %v96
  %v162 = vadd.s32 %v140, %v97
  %v163 = vadd.s32 %v140, %v98
  %v164 = vadd.s32 %v140, %v99
  %v165 = vadd.s32 %v140, %v100
  %v166 = vadd.s32 %v140, %v101
  %v167 = vadd.s32 %v140, %v102
  %v168 = vadd.s32 %v140, %v103
  %v169 = vadd.s32 %v140, %v104
  %v170 = vadd.s32 %v140, %v105
  %v171 = vadd.s32 %v140, %v106
  %v172 = vadd.s32 %v140, %v107
  %v173 = vadd.s32 %v140, %v108
  %v174 = vadd.s32 %v140, %v109
  %v175 = vadd.s32 %v140, %v110
  %v176 = vadd.s32 %v140, %v111
  %v177 = vadd.s32 %v140, %v112
  %v178 = vadd.s32 %v140, %v113
  %v179 = vadd.s32 %v140, %v114
  %v180 = vadd.s32 %v140, %v115
  %v181 = vadd.s32 %v140, %v116
  %v182 = vadd.s32 %v140, %v117
  %v183 = vadd.s32 %v140, %v118
  %v184 = vadd.s32 %v140, %v119
  %v185 = vadd.s32 %v140, %v120
  %v186 = vadd.s32 %v140, %v121
  %v187 = vadd.s32 %v140, %v122
  %v188 = vadd.s32 %v140, %v123
  %v189 = vadd.s32 %v140, %v124
  %v190 = vadd.s32 %v140, %v125
  %v191 = vadd.s32 %v140, %v126
  %v192 = vadd.s32 %v140, %v127
  %v193 = vadd.s32 %v140, %v128
  %v194 = vadd.s32 %v140, %v129
  %v195 = vadd.s32 %v140, %v130
  %v196 = vadd.s32 %v140, %v131
  %v197 = vadd.s32 %v140, %v132
  %v198 = vadd.s32 %v140, %v133
  %v199 = vadd.s32 %v140, %v134
  %v200 = vadd.s32 %v140, %v135
  %v201 = vadd.s32 %v140, %v136
  %v202 = vadd.s32 %v140, %v137
  %v203 = vadd.s32 %v140, %v138
  %v204 = vadd.s32 %v140, %v139
  %vm205 = vcmp.lt.s32.totalorder %v141, 512
  %vm206 = vcmp.lt.s32.totalorder %v142, 512
  %vm207 = vcmp.lt.s32.totalorder %v143, 512
  %vm208 = vcmp.lt.s32.totalorder %v144, 512
  %vm209 = vcmp.lt.s32.totalorder %v145, 512
  %vm210 = vcmp.lt.s32.totalorder %v146, 512
  %vm211 = vcmp.lt.s32.totalorder %v147, 512
  %vm212 = vcmp.lt.s32.totalorder %v148, 512
  %vm213 = vcmp.lt.s32.totalorder %v149, 512
  %vm214 = vcmp.lt.s32.totalorder %v150, 512
  %vm215 = vcmp.lt.s32.totalorder %v151, 512
  %vm216 = vcmp.lt.s32.totalorder %v152, 512
  %vm217 = vcmp.lt.s32.totalorder %v153, 512
  %vm218 = vcmp.lt.s32.totalorder %v154, 512
  %vm219 = vcmp.lt.s32.totalorder %v155, 512
  %vm220 = vcmp.lt.s32.totalorder %v156, 512
  %vm221 = vcmp.lt.s32.totalorder %v157, 512
  %vm222 = vcmp.lt.s32.totalorder %v158, 512
  %vm223 = vcmp.lt.s32.totalorder %v159, 512
  %vm224 = vcmp.lt.s32.totalorder %v160, 512
  %vm225 = vcmp.lt.s32.totalorder %v161, 512
  %vm226 = vcmp.lt.s32.totalorder %v162, 512
  %vm227 = vcmp.lt.s32.totalorder %v163, 512
  %vm228 = vcmp.lt.s32.totalorder %v164, 512
  %vm229 = vcmp.lt.s32.totalorder %v165, 512
  %vm230 = vcmp.lt.s32.totalorder %v166, 512
  %vm231 = vcmp.lt.s32.totalorder %v167, 512
  %vm232 = vcmp.lt.s32.totalorder %v168, 512
  %vm233 = vcmp.lt.s32.totalorder %v169, 512
  %vm234 = vcmp.lt.s32.totalorder %v170, 512
  %vm235 = vcmp.lt.s32.totalorder %v171, 512
  %vm236 = vcmp.lt.s32.totalorder %v172, 512
  %vm237 = vcmp.lt.s32.totalorder %v173, 512
  %vm238 = vcmp.lt.s32.totalorder %v174, 512
  %vm239 = vcmp.lt.s32.totalorder %v175, 512
  %vm240 = vcmp.lt.s32.totalorder %v176, 512
  %vm241 = vcmp.lt.s32.totalorder %v177, 512
  %vm242 = vcmp.lt.s32.totalorder %v178, 512
  %vm243 = vcmp.lt.s32.totalorder %v179, 512
  %vm244 = vcmp.lt.s32.totalorder %v180, 512
  %vm245 = vcmp.lt.s32.totalorder %v181, 512
  %vm246 = vcmp.lt.s32.totalorder %v182, 512
  %vm247 = vcmp.lt.s32.totalorder %v183, 512
  %vm248 = vcmp.lt.s32.totalorder %v184, 512
  %vm249 = vcmp.lt.s32.totalorder %v185, 512
  %vm250 = vcmp.lt.s32.totalorder %v186, 512
  %vm251 = vcmp.lt.s32.totalorder %v187, 512
  %vm252 = vcmp.lt.s32.totalorder %v188, 512
  %vm253 = vcmp.lt.s32.totalorder %v189, 512
  %vm254 = vcmp.lt.s32.totalorder %v190, 512
  %vm255 = vcmp.lt.s32.totalorder %v191, 512
  %vm256 = vcmp.lt.s32.totalorder %v192, 512
  %vm257 = vcmp.lt.s32.totalorder %v193, 512
  %vm258 = vcmp.lt.s32.totalorder %v194, 512
  %vm259 = vcmp.lt.s32.totalorder %v195, 512
  %vm260 = vcmp.lt.s32.totalorder %v196, 512
  %vm261 = vcmp.lt.s32.totalorder %v197, 512
  %vm262 = vcmp.lt.s32.totalorder %v198, 512
  %vm263 = vcmp.lt.s32.totalorder %v199, 512
  %vm264 = vcmp.lt.s32.totalorder %v200, 512
  %vm265 = vcmp.lt.s32.totalorder %v201, 512
  %vm266 = vcmp.lt.s32.totalorder %v202, 512
  %vm267 = vcmp.lt.s32.totalorder %v203, 512
  %vm268 = vcmp.lt.s32.totalorder %v204, 512
  %v269 = vsel %vm205, 1, 0
  %v270 = vsel %vm206, 1, 0
  %v271 = vsel %vm207, 1, 0
  %v272 = vsel %vm208, 1, 0
  %v273 = vsel %vm209, 1, 0
  %v274 = vsel %vm210, 1, 0
  %v275 = vsel %vm211, 1, 0
  %v276 = vsel %vm212, 1, 0
  %v277 = vsel %vm213, 1, 0
  %v278 = vsel %vm214, 1, 0
  %v279 = vsel %vm215, 1, 0
  %v280 = vsel %vm216, 1, 0
  %v281 = vsel %vm217, 1, 0
  %v282 = vsel %vm218, 1, 0
  %v283 = vsel %vm219, 1, 0
  %v284 = vsel %vm220, 1, 0
  %v285 = vsel %vm221, 1, 0
  %v286 = vsel %vm222, 1, 0
  %v287 = vsel %vm223, 1, 0
  %v288 = vsel %vm224, 1, 0
  %v289 = vsel %vm225, 1, 0
  %v290 = vsel %vm226, 1, 0
  %v291 = vsel %vm227, 1, 0
  %v292 = vsel %vm228, 1, 0
  %v293 = vsel %vm229, 1, 0
  %v294 = vsel %vm230, 1, 0
  %v295 = vsel %vm231, 1, 0
  %v296 = vsel %vm232, 1, 0
  %v297 = vsel %vm233, 1, 0
  %v298 = vsel %vm234, 1, 0
  %v299 = vsel %vm235, 1, 0
  %v300 = vsel %vm236, 1, 0
  %v301 = vsel %vm237, 1, 0
  %v302 = vsel %vm238, 1, 0
  %v303 = vsel %vm239, 1, 0
  %v304 = vsel %vm240, 1, 0
  %v305 = vsel %vm241, 1, 0
  %v306 = vsel %vm242, 1, 0
  %v307 = vsel %vm243, 1, 0
  %v308 = vsel %vm244, 1, 0
  %v309 = vsel %vm245, 1, 0
  %v310 = vsel %vm246, 1, 0
  %v311 = vsel %vm247, 1, 0
  %v312 = vsel %vm248, 1, 0
  %v313 = vsel %vm249, 1, 0
  %v314 = vsel %vm250, 1, 0
  %v315 = vsel %vm251, 1, 0
  %v316 = vsel %vm252, 1, 0
  %v317 = vsel %vm253, 1, 0
  %v318 = vsel %vm254, 1, 0
  %v319 = vsel %vm255, 1, 0
  %v320 = vsel %vm256, 1, 0
  %v321 = vsel %vm257, 1, 0
  %v322 = vsel %vm258, 1, 0
  %v323 = vsel %vm259, 1, 0
  %v324 = vsel %vm260, 1, 0
  %v325 = vsel %vm261, 1, 0
  %v326 = vsel %vm262, 1, 0
  %v327 = vsel %vm263, 1, 0
  %v328 = vsel %vm264, 1, 0
  %v329 = vsel %vm265, 1, 0
  %v330 = vsel %vm266, 1, 0
  %v331 = vsel %vm267, 1, 0
  %v332 = vsel %vm268, 1, 0
  %vm333 = vcmp.eq.s32.totalorder %v269, 1
  %vm334 = vcmp.eq.s32.totalorder %v270, 1
  %vm335 = vcmp.eq.s32.totalorder %v271, 1
  %vm336 = vcmp.eq.s32.totalorder %v272, 1
  %vm337 = vcmp.eq.s32.totalorder %v273, 1
  %vm338 = vcmp.eq.s32.totalorder %v274, 1
  %vm339 = vcmp.eq.s32.totalorder %v275, 1
  %vm340 = vcmp.eq.s32.totalorder %v276, 1
  %vm341 = vcmp.eq.s32.totalorder %v277, 1
  %vm342 = vcmp.eq.s32.totalorder %v278, 1
  %vm343 = vcmp.eq.s32.totalorder %v279, 1
  %vm344 = vcmp.eq.s32.totalorder %v280, 1
  %vm345 = vcmp.eq.s32.totalorder %v281, 1
  %vm346 = vcmp.eq.s32.totalorder %v282, 1
  %vm347 = vcmp.eq.s32.totalorder %v283, 1
  %vm348 = vcmp.eq.s32.totalorder %v284, 1
  %vm349 = vcmp.eq.s32.totalorder %v285, 1
  %vm350 = vcmp.eq.s32.totalorder %v286, 1
  %vm351 = vcmp.eq.s32.totalorder %v287, 1
  %vm352 = vcmp.eq.s32.totalorder %v288, 1
  %vm353 = vcmp.eq.s32.totalorder %v289, 1
  %vm354 = vcmp.eq.s32.totalorder %v290, 1
  %vm355 = vcmp.eq.s32.totalorder %v291, 1
  %vm356 = vcmp.eq.s32.totalorder %v292, 1
  %vm357 = vcmp.eq.s32.totalorder %v293, 1
  %vm358 = vcmp.eq.s32.totalorder %v294, 1
  %vm359 = vcmp.eq.s32.totalorder %v295, 1
  %vm360 = vcmp.eq.s32.totalorder %v296, 1
  %vm361 = vcmp.eq.s32.totalorder %v297, 1
  %vm362 = vcmp.eq.s32.totalorder %v298, 1
  %vm363 = vcmp.eq.s32.totalorder %v299, 1
  %vm364 = vcmp.eq.s32.totalorder %v300, 1
  %vm365 = vcmp.eq.s32.totalorder %v301, 1
  %vm366 = vcmp.eq.s32.totalorder %v302, 1
  %vm367 = vcmp.eq.s32.totalorder %v303, 1
  %vm368 = vcmp.eq.s32.totalorder %v304, 1
  %vm369 = vcmp.eq.s32.totalorder %v305, 1
  %vm370 = vcmp.eq.s32.totalorder %v306, 1
  %vm371 = vcmp.eq.s32.totalorder %v307, 1
  %vm372 = vcmp.eq.s32.totalorder %v308, 1
  %vm373 = vcmp.eq.s32.totalorder %v309, 1
  %vm374 = vcmp.eq.s32.totalorder %v310, 1
  %vm375 = vcmp.eq.s32.totalorder %v311, 1
  %vm376 = vcmp.eq.s32.totalorder %v312, 1
  %vm377 = vcmp.eq.s32.totalorder %v313, 1
  %vm378 = vcmp.eq.s32.totalorder %v314, 1
  %vm379 = vcmp.eq.s32.totalorder %v315, 1
  %vm380 = vcmp.eq.s32.totalorder %v316, 1
  %vm381 = vcmp.eq.s32.totalorder %v317, 1
  %vm382 = vcmp.eq.s32.totalorder %v318, 1
  %vm383 = vcmp.eq.s32.totalorder %v319, 1
  %vm384 = vcmp.eq.s32.totalorder %v320, 1
  %vm385 = vcmp.eq.s32.totalorder %v321, 1
  %vm386 = vcmp.eq.s32.totalorder %v322, 1
  %vm387 = vcmp.eq.s32.totalorder %v323, 1
  %vm388 = vcmp.eq.s32.totalorder %v324, 1
  %vm389 = vcmp.eq.s32.totalorder %v325, 1
  %vm390 = vcmp.eq.s32.totalorder %v326, 1
  %vm391 = vcmp.eq.s32.totalorder %v327, 1
  %vm392 = vcmp.eq.s32.totalorder %v328, 1
  %vm393 = vcmp.eq.s32.totalorder %v329, 1
  %vm394 = vcmp.eq.s32.totalorder %v330, 1
  %vm395 = vcmp.eq.s32.totalorder %v331, 1
  %vm396 = vcmp.eq.s32.totalorder %v332, 1
  %v397 = vsel %vm333, %v10, 0.0
  %v398 = vsel %vm334, %v11, 0.0
  %v399 = vsel %vm335, %v12, 0.0
  %v400 = vsel %vm336, %v13, 0.0
  %v401 = vsel %vm337, %v14, 0.0
  %v402 = vsel %vm338, %v15, 0.0
  %v403 = vsel %vm339, %v16, 0.0
  %v404 = vsel %vm340, %v17, 0.0
  %v405 = vsel %vm341, %v18, 0.0
  %v406 = vsel %vm342, %v19, 0.0
  %v407 = vsel %vm343, %v20, 0.0
  %v408 = vsel %vm344, %v21, 0.0
  %v409 = vsel %vm345, %v22, 0.0
  %v410 = vsel %vm346, %v23, 0.0
  %v411 = vsel %vm347, %v24, 0.0
  %v412 = vsel %vm348, %v25, 0.0
  %v413 = vsel %vm349, %v26, 0.0
  %v414 = vsel %vm350, %v27, 0.0
  %v415 = vsel %vm351, %v28, 0.0
  %v416 = vsel %vm352, %v29, 0.0
  %v417 = vsel %vm353, %v30, 0.0
  %v418 = vsel %vm354, %v31, 0.0
  %v419 = vsel %vm355, %v32, 0.0
  %v420 = vsel %vm356, %v33, 0.0
  %v421 = vsel %vm357, %v34, 0.0
  %v422 = vsel %vm358, %v35, 0.0
  %v423 = vsel %vm359, %v36, 0.0
  %v424 = vsel %vm360, %v37, 0.0
  %v425 = vsel %vm361, %v38, 0.0
  %v426 = vsel %vm362, %v39, 0.0
  %v427 = vsel %vm363, %v40, 0.0
  %v428 = vsel %vm364, %v41, 0.0
  %v429 = vsel %vm365, %v42, 0.0
  %v430 = vsel %vm366, %v43, 0.0
  %v431 = vsel %vm367, %v44, 0.0
  %v432 = vsel %vm368, %v45, 0.0
  %v433 = vsel %vm369, %v46, 0.0
  %v434 = vsel %vm370, %v47, 0.0
  %v435 = vsel %vm371, %v48, 0.0
  %v436 = vsel %vm372, %v49, 0.0
  %v437 = vsel %vm373, %v50, 0.0
  %v438 = vsel %vm374, %v51, 0.0
  %v439 = vsel %vm375, %v52, 0.0
  %v440 = vsel %vm376, %v53, 0.0
  %v441 = vsel %vm377, %v54, 0.0
  %v442 = vsel %vm378, %v55, 0.0
  %v443 = vsel %vm379, %v56, 0.0
  %v444 = vsel %vm380, %v57, 0.0
  %v445 = vsel %vm381, %v58, 0.0
  %v446 = vsel %vm382, %v59, 0.0
  %v447 = vsel %vm383, %v60, 0.0
  %v448 = vsel %vm384, %v61, 0.0
  %v449 = vsel %vm385, %v62, 0.0
  %v450 = vsel %vm386, %v63, 0.0
  %v451 = vsel %vm387, %v64, 0.0
  %v452 = vsel %vm388, %v65, 0.0
  %v453 = vsel %vm389, %v66, 0.0
  %v454 = vsel %vm390, %v67, 0.0
  %v455 = vsel %vm391, %v68, 0.0
  %v456 = vsel %vm392, %v69, 0.0
  %v457 = vsel %vm393, %v70, 0.0
  %v458 = vsel %vm394, %v71, 0.0
  %v459 = vsel %vm395, %v72, 0.0
  %v460 = vsel %vm396, %v73, 0.0
  %vm461 = vcmask 31744
  %v462 = vsel %vm461, %v397, 0.0
  %v463 = vsel %vm461, %v398, 0.0
  %v464 = vadd.f32 %v462, %v463
  %v465 = vsel %vm461, %v399, 0.0
  %v466 = vadd.f32 %v464, %v465
  %v467 = vsel %vm461, %v400, 0.0
  %v468 = vadd.f32 %v466, %v467
  %v469 = vsel %vm461, %v401, 0.0
  %v470 = vadd.f32 %v468, %v469
  %v471 = vsel %vm461, %v402, 0.0
  %v472 = vadd.f32 %v470, %v471
  %v473 = vsel %vm461, %v403, 0.0
  %v474 = vadd.f32 %v472, %v473
  %v475 = vsel %vm461, %v404, 0.0
  %v476 = vadd.f32 %v474, %v475
  %v477 = vsel %vm461, %v405, 0.0
  %v478 = vadd.f32 %v476, %v477
  %v479 = vsel %vm461, %v406, 0.0
  %v480 = vadd.f32 %v478, %v479
  %v481 = vsel %vm461, %v407, 0.0
  %v482 = vadd.f32 %v480, %v481
  %v483 = vsel %vm461, %v408, 0.0
  %v484 = vadd.f32 %v482, %v483
  %v485 = vsel %vm461, %v409, 0.0
  %v486 = vadd.f32 %v484, %v485
  %v487 = vsel %vm461, %v410, 0.0
  %v488 = vadd.f32 %v486, %v487
  %v489 = vsel %vm461, %v411, 0.0
  %v490 = vadd.f32 %v488, %v489
  %v491 = vsel %vm461, %v412, 0.0
  %v492 = vadd.f32 %v490, %v491
  %v493 = vsel %vm461, %v413, 0.0
  %v494 = vadd.f32 %v492, %v493
  %v495 = vsel %vm461, %v414, 0.0
  %v496 = vadd.f32 %v494, %v495
  %v497 = vsel %vm461, %v415, 0.0
  %v498 = vadd.f32 %v496, %v497
  %v499 = vsel %vm461, %v416, 0.0
  %v500 = vadd.f32 %v498, %v499
  %v501 = vsel %vm461, %v417, 0.0
  %v502 = vadd.f32 %v500, %v501
  %v503 = vsel %vm461, %v418, 0.0
  %v504 = vadd.f32 %v502, %v503
  %v505 = vsel %vm461, %v419, 0.0
  %v506 = vadd.f32 %v504, %v505
  %v507 = vsel %vm461, %v420, 0.0
  %v508 = vadd.f32 %v506, %v507
  %v509 = vsel %vm461, %v421, 0.0
  %v510 = vadd.f32 %v508, %v509
  %v511 = vsel %vm461, %v422, 0.0
  %v512 = vadd.f32 %v510, %v511
  %v513 = vsel %vm461, %v423, 0.0
  %v514 = vadd.f32 %v512, %v513
  %v515 = vsel %vm461, %v424, 0.0
  %v516 = vadd.f32 %v514, %v515
  %v517 = vsel %vm461, %v425, 0.0
  %v518 = vadd.f32 %v516, %v517
  %v519 = vsel %vm461, %v426, 0.0
  %v520 = vadd.f32 %v518, %v519
  %v521 = vsel %vm461, %v427, 0.0
  %v522 = vadd.f32 %v520, %v521
  %v523 = vsel %vm461, %v428, 0.0
  %v524 = vadd.f32 %v522, %v523
  %v525 = vsel %vm461, %v429, 0.0
  %v526 = vadd.f32 %v524, %v525
  %v527 = vsel %vm461, %v430, 0.0
  %v528 = vadd.f32 %v526, %v527
  %v529 = vsel %vm461, %v431, 0.0
  %v530 = vadd.f32 %v528, %v529
  %v531 = vsel %vm461, %v432, 0.0
  %v532 = vadd.f32 %v530, %v531
  %v533 = vsel %vm461, %v433, 0.0
  %v534 = vadd.f32 %v532, %v533
  %v535 = vsel %vm461, %v434, 0.0
  %v536 = vadd.f32 %v534, %v535
  %v537 = vsel %vm461, %v435, 0.0
  %v538 = vadd.f32 %v536, %v537
  %v539 = vsel %vm461, %v436, 0.0
  %v540 = vadd.f32 %v538, %v539
  %v541 = vsel %vm461, %v437, 0.0
  %v542 = vadd.f32 %v540, %v541
  %v543 = vsel %vm461, %v438, 0.0
  %v544 = vadd.f32 %v542, %v543
  %v545 = vsel %vm461, %v439, 0.0
  %v546 = vadd.f32 %v544, %v545
  %v547 = vsel %vm461, %v440, 0.0
  %v548 = vadd.f32 %v546, %v547
  %v549 = vsel %vm461, %v441, 0.0
  %v550 = vadd.f32 %v548, %v549
  %v551 = vsel %vm461, %v442, 0.0
  %v552 = vadd.f32 %v550, %v551
  %v553 = vsel %vm461, %v443, 0.0
  %v554 = vadd.f32 %v552, %v553
  %v555 = vsel %vm461, %v444, 0.0
  %v556 = vadd.f32 %v554, %v555
  %v557 = vsel %vm461, %v445, 0.0
  %v558 = vadd.f32 %v556, %v557
  %v559 = vsel %vm461, %v446, 0.0
  %v560 = vadd.f32 %v558, %v559
  %v561 = vsel %vm461, %v447, 0.0
  %v562 = vadd.f32 %v560, %v561
  %v563 = vsel %vm461, %v448, 0.0
  %v564 = vadd.f32 %v562, %v563
  %v565 = vsel %vm461, %v449, 0.0
  %v566 = vadd.f32 %v564, %v565
  %v567 = vsel %vm461, %v450, 0.0
  %v568 = vadd.f32 %v566, %v567
  %v569 = vsel %vm461, %v451, 0.0
  %v570 = vadd.f32 %v568, %v569
  %v571 = vsel %vm461, %v452, 0.0
  %v572 = vadd.f32 %v570, %v571
  %v573 = vsel %vm461, %v453, 0.0
  %v574 = vadd.f32 %v572, %v573
  %v575 = vsel %vm461, %v454, 0.0
  %v576 = vadd.f32 %v574, %v575
  %v577 = vsel %vm461, %v455, 0.0
  %v578 = vadd.f32 %v576, %v577
  %v579 = vsel %vm461, %v456, 0.0
  %v580 = vadd.f32 %v578, %v579
  %v581 = vsel %vm461, %v457, 0.0
  %v582 = vadd.f32 %v580, %v581
  %v583 = vsel %vm461, %v458, 0.0
  %v584 = vadd.f32 %v582, %v583
  %v585 = vsel %vm461, %v459, 0.0
  %v586 = vadd.f32 %v584, %v585
  %v587 = vsel %vm461, %v460, 0.0
  %v588 = vadd.f32 %v586, %v587
  %v589 = vrot.slane %v588, 4
  %v590 = vadd.f32 %v588, %v589
  %v591 = vrot.slane %v590, 2
  %v592 = vadd.f32 %v590, %v591
  %v593 = vrot.slane %v592, 1
  %v594 = vadd.f32 %v592, %v593
  %vm595 = vcmask 24576
  %596 = vst.msk [vmem:[%s1] sm:$0x1] %vm595, %v594
  %v597 = vmul.f32 %v397, %v397
  %v598 = vmul.f32 %v398, %v398
  %v599 = vmul.f32 %v399, %v399
  %v600 = vmul.f32 %v400, %v400
  %v601 = vmul.f32 %v401, %v401
  %v602 = vmul.f32 %v402, %v402
  %v603 = vmul.f32 %v403, %v403
  %v604 = vmul.f32 %v404, %v404
  %v605 = vmul.f32 %v405, %v405
  %v606 = vmul.f32 %v406, %v406
  %v607 = vmul.f32 %v407, %v407
  %v608 = vmul.f32 %v408, %v408
  %v609 = vmul.f32 %v409, %v409
  %v610 = vmul.f32 %v410, %v410
  %v611 = vmul.f32 %v411, %v411
  %v612 = vmul.f32 %v412, %v412
  %v613 = vmul.f32 %v413, %v413
  %v614 = vmul.f32 %v414, %v414
  %v615 = vmul.f32 %v415, %v415
  %v616 = vmul.f32 %v416, %v416
  %v617 = vmul.f32 %v417, %v417
  %v618 = vmul.f32 %v418, %v418
  %v619 = vmul.f32 %v419, %v419
  %v620 = vmul.f32 %v420, %v420
  %v621 = vmul.f32 %v421, %v421
  %v622 = vmul.f32 %v422, %v422
  %v623 = vmul.f32 %v423, %v423
  %v624 = vmul.f32 %v424, %v424
  %v625 = vmul.f32 %v425, %v425
  %v626 = vmul.f32 %v426, %v426
  %v627 = vmul.f32 %v427, %v427
  %v628 = vmul.f32 %v428, %v428
  %v629 = vmul.f32 %v429, %v429
  %v630 = vmul.f32 %v430, %v430
  %v631 = vmul.f32 %v431, %v431
  %v632 = vmul.f32 %v432, %v432
  %v633 = vmul.f32 %v433, %v433
  %v634 = vmul.f32 %v434, %v434
  %v635 = vmul.f32 %v435, %v435
  %v636 = vmul.f32 %v436, %v436
  %v637 = vmul.f32 %v437, %v437
  %v638 = vmul.f32 %v438, %v438
  %v639 = vmul.f32 %v439, %v439
  %v640 = vmul.f32 %v440, %v440
  %v641 = vmul.f32 %v441, %v441
  %v642 = vmul.f32 %v442, %v442
  %v643 = vmul.f32 %v443, %v443
  %v644 = vmul.f32 %v444, %v444
  %v645 = vmul.f32 %v445, %v445
  %v646 = vmul.f32 %v446, %v446
  %v647 = vmul.f32 %v447, %v447
  %v648 = vmul.f32 %v448, %v448
  %v649 = vmul.f32 %v449, %v449
  %v650 = vmul.f32 %v450, %v450
  %v651 = vmul.f32 %v451, %v451
  %v652 = vmul.f32 %v452, %v452
  %v653 = vmul.f32 %v453, %v453
  %v654 = vmul.f32 %v454, %v454
  %v655 = vmul.f32 %v455, %v455
  %v656 = vmul.f32 %v456, %v456
  %v657 = vmul.f32 %v457, %v457
  %v658 = vmul.f32 %v458, %v458
  %v659 = vmul.f32 %v459, %v459
  %v660 = vmul.f32 %v460, %v460
  %v661 = vsel %vm461, %v597, 0.0
  %v662 = vsel %vm461, %v598, 0.0
  %v663 = vadd.f32 %v661, %v662
  %v664 = vsel %vm461, %v599, 0.0
  %v665 = vadd.f32 %v663, %v664
  %v666 = vsel %vm461, %v600, 0.0
  %v667 = vadd.f32 %v665, %v666
  %v668 = vsel %vm461, %v601, 0.0
  %v669 = vadd.f32 %v667, %v668
  %v670 = vsel %vm461, %v602, 0.0
  %v671 = vadd.f32 %v669, %v670
  %v672 = vsel %vm461, %v603, 0.0
  %v673 = vadd.f32 %v671, %v672
  %v674 = vsel %vm461, %v604, 0.0
  %v675 = vadd.f32 %v673, %v674
  %v676 = vsel %vm461, %v605, 0.0
  %v677 = vadd.f32 %v675, %v676
  %v678 = vsel %vm461, %v606, 0.0
  %v679 = vadd.f32 %v677, %v678
  %v680 = vsel %vm461, %v607, 0.0
  %v681 = vadd.f32 %v679, %v680
  %v682 = vsel %vm461, %v608, 0.0
  %v683 = vadd.f32 %v681, %v682
  %v684 = vsel %vm461, %v609, 0.0
  %v685 = vadd.f32 %v683, %v684
  %v686 = vsel %vm461, %v610, 0.0
  %v687 = vadd.f32 %v685, %v686
  %v688 = vsel %vm461, %v611, 0.0
  %v689 = vadd.f32 %v687, %v688
  %v690 = vsel %vm461, %v612, 0.0
  %v691 = vadd.f32 %v689, %v690
  %v692 = vsel %vm461, %v613, 0.0
  %v693 = vadd.f32 %v691, %v692
  %v694 = vsel %vm461, %v614, 0.0
  %v695 = vadd.f32 %v693, %v694
  %v696 = vsel %vm461, %v615, 0.0
  %v697 = vadd.f32 %v695, %v696
  %v698 = vsel %vm461, %v616, 0.0
  %v699 = vadd.f32 %v697, %v698
  %v700 = vsel %vm461, %v617, 0.0
  %v701 = vadd.f32 %v699, %v700
  %v702 = vsel %vm461, %v618, 0.0
  %v703 = vadd.f32 %v701, %v702
  %v704 = vsel %vm461, %v619, 0.0
  %v705 = vadd.f32 %v703, %v704
  %v706 = vsel %vm461, %v620, 0.0
  %v707 = vadd.f32 %v705, %v706
  %v708 = vsel %vm461, %v621, 0.0
  %v709 = vadd.f32 %v707, %v708
  %v710 = vsel %vm461, %v622, 0.0
  %v711 = vadd.f32 %v709, %v710
  %v712 = vsel %vm461, %v623, 0.0
  %v713 = vadd.f32 %v711, %v712
  %v714 = vsel %vm461, %v624, 0.0
  %v715 = vadd.f32 %v713, %v714
  %v716 = vsel %vm461, %v625, 0.0
  %v717 = vadd.f32 %v715, %v716
  %v718 = vsel %vm461, %v626, 0.0
  %v719 = vadd.f32 %v717, %v718
  %v720 = vsel %vm461, %v627, 0.0
  %v721 = vadd.f32 %v719, %v720
  %v722 = vsel %vm461, %v628, 0.0
  %v723 = vadd.f32 %v721, %v722
  %v724 = vsel %vm461, %v629, 0.0
  %v725 = vadd.f32 %v723, %v724
  %v726 = vsel %vm461, %v630, 0.0
  %v727 = vadd.f32 %v725, %v726
  %v728 = vsel %vm461, %v631, 0.0
  %v729 = vadd.f32 %v727, %v728
  %v730 = vsel %vm461, %v632, 0.0
  %v731 = vadd.f32 %v729, %v730
  %v732 = vsel %vm461, %v633, 0.0
  %v733 = vadd.f32 %v731, %v732
  %v734 = vsel %vm461, %v634, 0.0
  %v735 = vadd.f32 %v733, %v734
  %v736 = vsel %vm461, %v635, 0.0
  %v737 = vadd.f32 %v735, %v736
  %v738 = vsel %vm461, %v636, 0.0
  %v739 = vadd.f32 %v737, %v738
  %v740 = vsel %vm461, %v637, 0.0
  %v741 = vadd.f32 %v739, %v740
  %v742 = vsel %vm461, %v638, 0.0
  %v743 = vadd.f32 %v741, %v742
  %v744 = vsel %vm461, %v639, 0.0
  %v745 = vadd.f32 %v743, %v744
  %v746 = vsel %vm461, %v640, 0.0
  %v747 = vadd.f32 %v745, %v746
  %v748 = vsel %vm461, %v641, 0.0
  %v749 = vadd.f32 %v747, %v748
  %v750 = vsel %vm461, %v642, 0.0
  %v751 = vadd.f32 %v749, %v750
  %v752 = vsel %vm461, %v643, 0.0
  %v753 = vadd.f32 %v751, %v752
  %v754 = vsel %vm461, %v644, 0.0
  %v755 = vadd.f32 %v753, %v754
  %v756 = vsel %vm461, %v645, 0.0
  %v757 = vadd.f32 %v755, %v756
  %v758 = vsel %vm461, %v646, 0.0
  %v759 = vadd.f32 %v757, %v758
  %v760 = vsel %vm461, %v647, 0.0
  %v761 = vadd.f32 %v759, %v760
  %v762 = vsel %vm461, %v648, 0.0
  %v763 = vadd.f32 %v761, %v762
  %v764 = vsel %vm461, %v649, 0.0
  %v765 = vadd.f32 %v763, %v764
  %v766 = vsel %vm461, %v650, 0.0
  %v767 = vadd.f32 %v765, %v766
  %v768 = vsel %vm461, %v651, 0.0
  %v769 = vadd.f32 %v767, %v768
  %v770 = vsel %vm461, %v652, 0.0
  %v771 = vadd.f32 %v769, %v770
  %v772 = vsel %vm461, %v653, 0.0
  %v773 = vadd.f32 %v771, %v772
  %v774 = vsel %vm461, %v654, 0.0
  %v775 = vadd.f32 %v773, %v774
  %v776 = vsel %vm461, %v655, 0.0
  %v777 = vadd.f32 %v775, %v776
  %v778 = vsel %vm461, %v656, 0.0
  %v779 = vadd.f32 %v777, %v778
  %v780 = vsel %vm461, %v657, 0.0
  %v781 = vadd.f32 %v779, %v780
  %v782 = vsel %vm461, %v658, 0.0
  %v783 = vadd.f32 %v781, %v782
  %v784 = vsel %vm461, %v659, 0.0
  %v785 = vadd.f32 %v783, %v784
  %v786 = vsel %vm461, %v660, 0.0
  %v787 = vadd.f32 %v785, %v786
  %v788 = vrot.slane %v787, 4
  %v789 = vadd.f32 %v787, %v788
  %v790 = vrot.slane %v789, 2
  %v791 = vadd.f32 %v789, %v790
  %v792 = vrot.slane %v791, 1
  %v793 = vadd.f32 %v791, %v792
  %794 = vst.msk [vmem:[%s2] sm:$0x1] %vm595, %v793
  // Predicated region
  $region6: #{bottleneck_block_forward.3} parent=0 // pred_check
    _
  $region7: #{bottleneck_block_forward.3} parent=0 // pred_check_branch
    %796 = sbr.rel (0) target = $region9
  $region8: #{bottleneck_block_forward.3} parent=0 // pred_region
    _
  $region9: #{bottleneck_block_forward.3} parent=0 // pred_fallthru
    _
  // Predicated region
  $region10: #{bottleneck_block_forward.3} parent=0 // pred_check
    _
  $region11: #{bottleneck_block_forward.3} parent=0 // pred_check_branch
    %798 = sbr.rel (0) target = $region13
  $region12: #{bottleneck_block_forward.3} parent=0 // pred_region
    _
  $region13: #{bottleneck_block_forward.3} parent=0 // pred_fallthru
    _
  // Predicated region
  $region14: #{bottleneck_block_forward.3} parent=0 // pred_check
    _
  $region15: #{bottleneck_block_forward.3} parent=0 // pred_check_branch
    %800 = sbr.rel (0) target = $region17
  $region16: #{bottleneck_block_forward.3} parent=0 // pred_region
    _
  $region17: #{bottleneck_block_forward.3} parent=0 // pred_fallthru
    _
  // Predicated region
  $region18: #{bottleneck_block_forward.3} parent=0 // pred_check
    _
  $region19: #{bottleneck_block_forward.3} parent=0 // pred_check_branch
    %802 = sbr.rel (0) target = $region21
  $region20: #{bottleneck_block_forward.3} parent=0 // pred_region
    _
  $region21: #{bottleneck_block_forward.3} parent=0 // pred_fallthru
    _

// kernel: bottleneck_block_forward.4
$region0: #{bottleneck_block_forward.4}
  #allocation0 [shape = 'u32[]', space=smem, size = 0x4, offset = 0x4, fixed_abs, tag = 'smem constant byte address 0x4 - core index']
  #allocation1 [shape = 'u32[72,128]{1,0:T(1,128)}', space=vmem, size = 0x9000, scoped, tag = 'internal scratch']
  %s0 = inlined_call_operand.vmem [shape: f32[512,4], index: 0, kind: input, shape index: {}]
  %s1 = inlined_call_operand.vmem [shape: f32[1,4], index: 1, kind: input, shape index: {}]
  %s2 = inlined_call_operand.vmem [shape: f32[1,4], index: 2, kind: input, shape index: {}]
  %s3 = inlined_call_operand.vmem [shape: bf16[4,32], index: 3, kind: input, shape index: {}]
  %s4 = inlined_call_operand.vmem [shape: bf16[512,32], index: 4, kind: output, shape index: {0}]
  %s5 = inlined_call_operand.vmem [shape: f32[1,1,32], index: 5, kind: output, shape index: {1}]
  %s6 = inlined_call_operand.vmem [shape: f32[1,1,32], index: 6, kind: output, shape index: {2}]
  %7 = xla_tuple %s4, %s5, %s6
  %s8 = sld [smem:[#allocation0]]
  $region42: #{bottleneck_block_forward.4} parent=0
    _
  %s10 = ssub.s32 1, %s8
  %s11 = scalar_select 0, %s10, %s8
  // Predicated region
  $region2: #{bottleneck_block_forward.4} parent=0 // pred_check
    _
  $region3: #{bottleneck_block_forward.4} parent=0 // pred_check_branch
    %13 = sbr.rel (0) target = $region5
  $region4: #{bottleneck_block_forward.4} parent=0 // pred_region
    _
  $region5: #{bottleneck_block_forward.4} parent=0 // pred_fallthru
    _
  // Predicated region
  $region6: #{bottleneck_block_forward.4} parent=0 // pred_check
    _
  $region7: #{bottleneck_block_forward.4} parent=0 // pred_check_branch
    %15 = sbr.rel (0) target = $region9
  $region8: #{bottleneck_block_forward.4} parent=0 // pred_region
    _
  $region9: #{bottleneck_block_forward.4} parent=0 // pred_fallthru
    _
  // Predicated region
  $region10: #{bottleneck_block_forward.4} parent=0 // pred_check
    _
  $region11: #{bottleneck_block_forward.4} parent=0 // pred_check_branch
    %17 = sbr.rel (0) target = $region13
  $region12: #{bottleneck_block_forward.4} parent=0 // pred_region
    _
  $region13: #{bottleneck_block_forward.4} parent=0 // pred_fallthru
    _
  // Predicated region
  $region14: #{bottleneck_block_forward.4} parent=0 // pred_check
    _
  $region15: #{bottleneck_block_forward.4} parent=0 // pred_check_branch
    %19 = sbr.rel (0) target = $region17
  $region16: #{bottleneck_block_forward.4} parent=0 // pred_region
    _
  $region17: #{bottleneck_block_forward.4} parent=0 // pred_fallthru
    _
  %v21 = vld [vmem:[%s0] sm:$0xff]
  %v22 = vld [vmem:[%s0 + $0x8] sm:$0xff]
  %v23 = vld [vmem:[%s0 + $0x10] sm:$0xff]
  %v24 = vld [vmem:[%s0 + $0x18] sm:$0xff]
  %v25 = vld [vmem:[%s0 + $0x20] sm:$0xff]
  %v26 = vld [vmem:[%s0 + $0x28] sm:$0xff]
  %v27 = vld [vmem:[%s0 + $0x30] sm:$0xff]
  %v28 = vld [vmem:[%s0 + $0x38] sm:$0xff]
  %v29 = vld [vmem:[%s0 + $0x40] sm:$0xff]
  %v30 = vld [vmem:[%s0 + $0x48] sm:$0xff]
  %v31 = vld [vmem:[%s0 + $0x50] sm:$0xff]
  %v32 = vld [vmem:[%s0 + $0x58] sm:$0xff]
  %v33 = vld [vmem:[%s0 + $0x60] sm:$0xff]
  %v34 = vld [vmem:[%s0 + $0x68] sm:$0xff]
  %v35 = vld [vmem:[%s0 + $0x70] sm:$0xff]
  %v36 = vld [vmem:[%s0 + $0x78] sm:$0xff]
  %v37 = vld [vmem:[%s0 + $0x80] sm:$0xff]
  %v38 = vld [vmem:[%s0 + $0x88] sm:$0xff]
  %v39 = vld [vmem:[%s0 + $0x90] sm:$0xff]
  %v40 = vld [vmem:[%s0 + $0x98] sm:$0xff]
  %v41 = vld [vmem:[%s0 + $0xa0] sm:$0xff]
  %v42 = vld [vmem:[%s0 + $0xa8] sm:$0xff]
  %v43 = vld [vmem:[%s0 + $0xb0] sm:$0xff]
  %v44 = vld [vmem:[%s0 + $0xb8] sm:$0xff]
  %v45 = vld [vmem:[%s0 + $0xc0] sm:$0xff]
  %v46 = vld [vmem:[%s0 + $0xc8] sm:$0xff]
  %v47 = vld [vmem:[%s0 + $0xd0] sm:$0xff]
  %v48 = vld [vmem:[%s0 + $0xd8] sm:$0xff]
  %v49 = vld [vmem:[%s0 + $0xe0] sm:$0xff]
  %v50 = vld [vmem:[%s0 + $0xe8] sm:$0xff]
  %v51 = vld [vmem:[%s0 + $0xf0] sm:$0xff]
  %v52 = vld [vmem:[%s0 + $0xf8] sm:$0xff]
  %v53 = vld [vmem:[%s0 + $0x100] sm:$0xff]
  %v54 = vld [vmem:[%s0 + $0x108] sm:$0xff]
  %v55 = vld [vmem:[%s0 + $0x110] sm:$0xff]
  %v56 = vld [vmem:[%s0 + $0x118] sm:$0xff]
  %v57 = vld [vmem:[%s0 + $0x120] sm:$0xff]
  %v58 = vld [vmem:[%s0 + $0x128] sm:$0xff]
  %v59 = vld [vmem:[%s0 + $0x130] sm:$0xff]
  %v60 = vld [vmem:[%s0 + $0x138] sm:$0xff]
  %v61 = vld [vmem:[%s0 + $0x140] sm:$0xff]
  %v62 = vld [vmem:[%s0 + $0x148] sm:$0xff]
  %v63 = vld [vmem:[%s0 + $0x150] sm:$0xff]
  %v64 = vld [vmem:[%s0 + $0x158] sm:$0xff]
  %v65 = vld [vmem:[%s0 + $0x160] sm:$0xff]
  %v66 = vld [vmem:[%s0 + $0x168] sm:$0xff]
  %v67 = vld [vmem:[%s0 + $0x170] sm:$0xff]
  %v68 = vld [vmem:[%s0 + $0x178] sm:$0xff]
  %v69 = vld [vmem:[%s0 + $0x180] sm:$0xff]
  %v70 = vld [vmem:[%s0 + $0x188] sm:$0xff]
  %v71 = vld [vmem:[%s0 + $0x190] sm:$0xff]
  %v72 = vld [vmem:[%s0 + $0x198] sm:$0xff]
  %v73 = vld [vmem:[%s0 + $0x1a0] sm:$0xff]
  %v74 = vld [vmem:[%s0 + $0x1a8] sm:$0xff]
  %v75 = vld [vmem:[%s0 + $0x1b0] sm:$0xff]
  %v76 = vld [vmem:[%s0 + $0x1b8] sm:$0xff]
  %v77 = vld [vmem:[%s0 + $0x1c0] sm:$0xff]
  %v78 = vld [vmem:[%s0 + $0x1c8] sm:$0xff]
  %v79 = vld [vmem:[%s0 + $0x1d0] sm:$0xff]
  %v80 = vld [vmem:[%s0 + $0x1d8] sm:$0xff]
  %v81 = vld [vmem:[%s0 + $0x1e0] sm:$0xff]
  %v82 = vld [vmem:[%s0 + $0x1e8] sm:$0xff]
  %v83 = vld [vmem:[%s0 + $0x1f0] sm:$0xff]
  %v84 = vld [vmem:[%s0 + $0x1f8] sm:$0xff]
  %v85 = vld [vmem:[%s1] sm:$0x1]
  %v87 = vperm.slane %v85, 0
  %v89 = vmul.f32 %v21, %v87
  %v90 = vmul.f32 %v22, %v87
  %v91 = vmul.f32 %v23, %v87
  %v92 = vmul.f32 %v24, %v87
  %v93 = vmul.f32 %v25, %v87
  %v94 = vmul.f32 %v26, %v87
  %v95 = vmul.f32 %v27, %v87
  %v96 = vmul.f32 %v28, %v87
  %v97 = vmul.f32 %v29, %v87
  %v98 = vmul.f32 %v30, %v87
  %v99 = vmul.f32 %v31, %v87
  %v100 = vmul.f32 %v32, %v87
  %v101 = vmul.f32 %v33, %v87
  %v102 = vmul.f32 %v34, %v87
  %v103 = vmul.f32 %v35, %v87
  %v104 = vmul.f32 %v36, %v87
  %v105 = vmul.f32 %v37, %v87
  %v106 = vmul.f32 %v38, %v87
  %v107 = vmul.f32 %v39, %v87
  %v108 = vmul.f32 %v40, %v87
  %v109 = vmul.f32 %v41, %v87
  %v110 = vmul.f32 %v42, %v87
  %v111 = vmul.f32 %v43, %v87
  %v112 = vmul.f32 %v44, %v87
  %v113 = vmul.f32 %v45, %v87
  %v114 = vmul.f32 %v46, %v87
  %v115 = vmul.f32 %v47, %v87
  %v116 = vmul.f32 %v48, %v87
  %v117 = vmul.f32 %v49, %v87
  %v118 = vmul.f32 %v50, %v87
  %v119 = vmul.f32 %v51, %v87
  %v120 = vmul.f32 %v52, %v87
  %v121 = vmul.f32 %v53, %v87
  %v122 = vmul.f32 %v54, %v87
  %v123 = vmul.f32 %v55, %v87
  %v124 = vmul.f32 %v56, %v87
  %v125 = vmul.f32 %v57, %v87
  %v126 = vmul.f32 %v58, %v87
  %v127 = vmul.f32 %v59, %v87
  %v128 = vmul.f32 %v60, %v87
  %v129 = vmul.f32 %v61, %v87
  %v130 = vmul.f32 %v62, %v87
  %v131 = vmul.f32 %v63, %v87
  %v132 = vmul.f32 %v64, %v87
  %v133 = vmul.f32 %v65, %v87
  %v134 = vmul.f32 %v66, %v87
  %v135 = vmul.f32 %v67, %v87
  %v136 = vmul.f32 %v68, %v87
  %v137 = vmul.f32 %v69, %v87
  %v138 = vmul.f32 %v70, %v87
  %v139 = vmul.f32 %v71, %v87
  %v140 = vmul.f32 %v72, %v87
  %v141 = vmul.f32 %v73, %v87
  %v142 = vmul.f32 %v74, %v87
  %v143 = vmul.f32 %v75, %v87
  %v144 = vmul.f32 %v76, %v87
  %v145 = vmul.f32 %v77, %v87
  %v146 = vmul.f32 %v78, %v87
  %v147 = vmul.f32 %v79, %v87
  %v148 = vmul.f32 %v80, %v87
  %v149 = vmul.f32 %v81, %v87
  %v150 = vmul.f32 %v82, %v87
  %v151 = vmul.f32 %v83, %v87
  %v152 = vmul.f32 %v84, %v87
  %v153 = vld [vmem:[%s2] sm:$0x1]
  %v155 = vperm.slane %v153, 0
  %v157 = vadd.f32 %v89, %v155
  %v158 = vadd.f32 %v90, %v155
  %v159 = vadd.f32 %v91, %v155
  %v160 = vadd.f32 %v92, %v155
  %v161 = vadd.f32 %v93, %v155
  %v162 = vadd.f32 %v94, %v155
  %v163 = vadd.f32 %v95, %v155
  %v164 = vadd.f32 %v96, %v155
  %v165 = vadd.f32 %v97, %v155
  %v166 = vadd.f32 %v98, %v155
  %v167 = vadd.f32 %v99, %v155
  %v168 = vadd.f32 %v100, %v155
  %v169 = vadd.f32 %v101, %v155
  %v170 = vadd.f32 %v102, %v155
  %v171 = vadd.f32 %v103, %v155
  %v172 = vadd.f32 %v104, %v155
  %v173 = vadd.f32 %v105, %v155
  %v174 = vadd.f32 %v106, %v155
  %v175 = vadd.f32 %v107, %v155
  %v176 = vadd.f32 %v108, %v155
  %v177 = vadd.f32 %v109, %v155
  %v178 = vadd.f32 %v110, %v155
  %v179 = vadd.f32 %v111, %v155
  %v180 = vadd.f32 %v112, %v155
  %v181 = vadd.f32 %v113, %v155
  %v182 = vadd.f32 %v114, %v155
  %v183 = vadd.f32 %v115, %v155
  %v184 = vadd.f32 %v116, %v155
  %v185 = vadd.f32 %v117, %v155
  %v186 = vadd.f32 %v118, %v155
  %v187 = vadd.f32 %v119, %v155
  %v188 = vadd.f32 %v120, %v155
  %v189 = vadd.f32 %v121, %v155
  %v190 = vadd.f32 %v122, %v155
  %v191 = vadd.f32 %v123, %v155
  %v192 = vadd.f32 %v124, %v155
  %v193 = vadd.f32 %v125, %v155
  %v194 = vadd.f32 %v126, %v155
  %v195 = vadd.f32 %v127, %v155
  %v196 = vadd.f32 %v128, %v155
  %v197 = vadd.f32 %v129, %v155
  %v198 = vadd.f32 %v130, %v155
  %v199 = vadd.f32 %v131, %v155
  %v200 = vadd.f32 %v132, %v155
  %v201 = vadd.f32 %v133, %v155
  %v202 = vadd.f32 %v134, %v155
  %v203 = vadd.f32 %v135, %v155
  %v204 = vadd.f32 %v136, %v155
  %v205 = vadd.f32 %v137, %v155
  %v206 = vadd.f32 %v138, %v155
  %v207 = vadd.f32 %v139, %v155
  %v208 = vadd.f32 %v140, %v155
  %v209 = vadd.f32 %v141, %v155
  %v210 = vadd.f32 %v142, %v155
  %v211 = vadd.f32 %v143, %v155
  %v212 = vadd.f32 %v144, %v155
  %v213 = vadd.f32 %v145, %v155
  %v214 = vadd.f32 %v146, %v155
  %v215 = vadd.f32 %v147, %v155
  %v216 = vadd.f32 %v148, %v155
  %v217 = vadd.f32 %v149, %v155
  %v218 = vadd.f32 %v150, %v155
  %v219 = vadd.f32 %v151, %v155
  %v220 = vadd.f32 %v152, %v155
  %v221 = vmax.f32 %v157, 0.0
  %v222 = vmax.f32 %v158, 0.0
  %v223 = vmax.f32 %v159, 0.0
  %v224 = vmax.f32 %v160, 0.0
  %v225 = vmax.f32 %v161, 0.0
  %v226 = vmax.f32 %v162, 0.0
  %v227 = vmax.f32 %v163, 0.0
  %v228 = vmax.f32 %v164, 0.0
  %v229 = vmax.f32 %v165, 0.0
  %v230 = vmax.f32 %v166, 0.0
  %v231 = vmax.f32 %v167, 0.0
  %v232 = vmax.f32 %v168, 0.0
  %v233 = vmax.f32 %v169, 0.0
  %v234 = vmax.f32 %v170, 0.0
  %v235 = vmax.f32 %v171, 0.0
  %v236 = vmax.f32 %v172, 0.0
  %v237 = vmax.f32 %v173, 0.0
  %v238 = vmax.f32 %v174, 0.0
  %v239 = vmax.f32 %v175, 0.0
  %v240 = vmax.f32 %v176, 0.0
  %v241 = vmax.f32 %v177, 0.0
  %v242 = vmax.f32 %v178, 0.0
  %v243 = vmax.f32 %v179, 0.0
  %v244 = vmax.f32 %v180, 0.0
  %v245 = vmax.f32 %v181, 0.0
  %v246 = vmax.f32 %v182, 0.0
  %v247 = vmax.f32 %v183, 0.0
  %v248 = vmax.f32 %v184, 0.0
  %v249 = vmax.f32 %v185, 0.0
  %v250 = vmax.f32 %v186, 0.0
  %v251 = vmax.f32 %v187, 0.0
  %v252 = vmax.f32 %v188, 0.0
  %v253 = vmax.f32 %v189, 0.0
  %v254 = vmax.f32 %v190, 0.0
  %v255 = vmax.f32 %v191, 0.0
  %v256 = vmax.f32 %v192, 0.0
  %v257 = vmax.f32 %v193, 0.0
  %v258 = vmax.f32 %v194, 0.0
  %v259 = vmax.f32 %v195, 0.0
  %v260 = vmax.f32 %v196, 0.0
  %v261 = vmax.f32 %v197, 0.0
  %v262 = vmax.f32 %v198, 0.0
  %v263 = vmax.f32 %v199, 0.0
  %v264 = vmax.f32 %v200, 0.0
  %v265 = vmax.f32 %v201, 0.0
  %v266 = vmax.f32 %v202, 0.0
  %v267 = vmax.f32 %v203, 0.0
  %v268 = vmax.f32 %v204, 0.0
  %v269 = vmax.f32 %v205, 0.0
  %v270 = vmax.f32 %v206, 0.0
  %v271 = vmax.f32 %v207, 0.0
  %v272 = vmax.f32 %v208, 0.0
  %v273 = vmax.f32 %v209, 0.0
  %v274 = vmax.f32 %v210, 0.0
  %v275 = vmax.f32 %v211, 0.0
  %v276 = vmax.f32 %v212, 0.0
  %v277 = vmax.f32 %v213, 0.0
  %v278 = vmax.f32 %v214, 0.0
  %v279 = vmax.f32 %v215, 0.0
  %v280 = vmax.f32 %v216, 0.0
  %v281 = vmax.f32 %v217, 0.0
  %v282 = vmax.f32 %v218, 0.0
  %v283 = vmax.f32 %v219, 0.0
  %v284 = vmax.f32 %v220, 0.0
  %v285 = vpack.c.bf16 %v222, %v221
  %v286 = vpack.c.bf16 %v224, %v223
  %v287 = vpack.c.bf16 %v226, %v225
  %v288 = vpack.c.bf16 %v228, %v227
  %v289 = vpack.c.bf16 %v230, %v229
  %v290 = vpack.c.bf16 %v232, %v231
  %v291 = vpack.c.bf16 %v234, %v233
  %v292 = vpack.c.bf16 %v236, %v235
  %v293 = vpack.c.bf16 %v238, %v237
  %v294 = vpack.c.bf16 %v240, %v239
  %v295 = vpack.c.bf16 %v242, %v241
  %v296 = vpack.c.bf16 %v244, %v243
  %v297 = vpack.c.bf16 %v246, %v245
  %v298 = vpack.c.bf16 %v248, %v247
  %v299 = vpack.c.bf16 %v250, %v249
  %v300 = vpack.c.bf16 %v252, %v251
  %v301 = vpack.c.bf16 %v254, %v253
  %v302 = vpack.c.bf16 %v256, %v255
  %v303 = vpack.c.bf16 %v258, %v257
  %v304 = vpack.c.bf16 %v260, %v259
  %v305 = vpack.c.bf16 %v262, %v261
  %v306 = vpack.c.bf16 %v264, %v263
  %v307 = vpack.c.bf16 %v266, %v265
  %v308 = vpack.c.bf16 %v268, %v267
  %v309 = vpack.c.bf16 %v270, %v269
  %v310 = vpack.c.bf16 %v272, %v271
  %v311 = vpack.c.bf16 %v274, %v273
  %v312 = vpack.c.bf16 %v276, %v275
  %v313 = vpack.c.bf16 %v278, %v277
  %v314 = vpack.c.bf16 %v280, %v279
  %v315 = vpack.c.bf16 %v282, %v281
  %v316 = vpack.c.bf16 %v284, %v283
  %v317 = vld [vmem:[%s3] sm:$0x3]
  %vm318 = vcmask 31744
  %v320 = vsel %vm318, %v285, 0
  %v323 = vsel %vm318, %v286, 0
  %v326 = vsel %vm318, %v287, 0
  %v329 = vsel %vm318, %v288, 0
  %v332 = vsel %vm318, %v289, 0
  %v335 = vsel %vm318, %v290, 0
  %v338 = vsel %vm318, %v291, 0
  %v341 = vsel %vm318, %v292, 0
  %v344 = vsel %vm318, %v293, 0
  %v347 = vsel %vm318, %v294, 0
  %v350 = vsel %vm318, %v295, 0
  %v353 = vsel %vm318, %v296, 0
  %v356 = vsel %vm318, %v297, 0
  %v359 = vsel %vm318, %v298, 0
  %v362 = vsel %vm318, %v299, 0
  %v365 = vsel %vm318, %v300, 0
  %v368 = vsel %vm318, %v301, 0
  %v371 = vsel %vm318, %v302, 0
  %v374 = vsel %vm318, %v303, 0
  %v377 = vsel %vm318, %v304, 0
  %v380 = vsel %vm318, %v305, 0
  %v383 = vsel %vm318, %v306, 0
  %v386 = vsel %vm318, %v307, 0
  %v389 = vsel %vm318, %v308, 0
  %v392 = vsel %vm318, %v309, 0
  %v395 = vsel %vm318, %v310, 0
  %v398 = vsel %vm318, %v311, 0
  %v401 = vsel %vm318, %v312, 0
  %v404 = vsel %vm318, %v313, 0
  %v407 = vsel %vm318, %v314, 0
  %v410 = vsel %vm318, %v315, 0
  %v413 = vsel %vm318, %v316, 0
  %vm415 = vcmask 1041408
  %v417 = vsel %vm415, %v317, 0
  %419 = vmatpush.bf16.msra.mxu0 0
  %420 = vmatpush.bf16.msra.mxu0 0
  %421 = vmatpush.bf16.msra.mxu0 0
  %422 = vmatpush.bf16.msra.mxu0 0
  %423 = vmatpush.bf16.msra.mxu0 0
  %424 = vmatpush.bf16.msra.mxu0 0
  %425 = vmatpush.bf16.msra.mxu0 0
  %426 = vmatpush.bf16.msra.mxu0 %v417
  %427 = vmatmul.bf16.gmra.mxu0 %v320
  %v428 = vpop.f32.mrf.mxu0
  %v429 = vadd.f32 0.0, %v428
  %v430 = vpop.f32.mrf.mxu0
  %v431 = vadd.f32 0.0, %v430
  %432 = vmatmul.bf16.gmra.mxu0 %v323
  %v433 = vpop.f32.mrf.mxu0
  %v434 = vadd.f32 0.0, %v433
  %v435 = vpop.f32.mrf.mxu0
  %v436 = vadd.f32 0.0, %v435
  %437 = vmatmul.bf16.gmra.mxu0 %v326
  %v438 = vpop.f32.mrf.mxu0
  %v439 = vadd.f32 0.0, %v438
  %v440 = vpop.f32.mrf.mxu0
  %v441 = vadd.f32 0.0, %v440
  %442 = vmatmul.bf16.gmra.mxu0 %v329
  %v443 = vpop.f32.mrf.mxu0
  %v444 = vadd.f32 0.0, %v443
  %v445 = vpop.f32.mrf.mxu0
  %v446 = vadd.f32 0.0, %v445
  %447 = vmatmul.bf16.gmra.mxu0 %v332
  %v448 = vpop.f32.mrf.mxu0
  %v449 = vadd.f32 0.0, %v448
  %v450 = vpop.f32.mrf.mxu0
  %v451 = vadd.f32 0.0, %v450
  %452 = vmatmul.bf16.gmra.mxu0 %v335
  %v453 = vpop.f32.mrf.mxu0
  %v454 = vadd.f32 0.0, %v453
  %v455 = vpop.f32.mrf.mxu0
  %v456 = vadd.f32 0.0, %v455
  %457 = vmatmul.bf16.gmra.mxu0 %v338
  %v458 = vpop.f32.mrf.mxu0
  %v459 = vadd.f32 0.0, %v458
  %v460 = vpop.f32.mrf.mxu0
  %v461 = vadd.f32 0.0, %v460
  %462 = vmatmul.bf16.gmra.mxu0 %v341
  %v463 = vpop.f32.mrf.mxu0
  %v464 = vadd.f32 0.0, %v463
  %v465 = vpop.f32.mrf.mxu0
  %v466 = vadd.f32 0.0, %v465
  %467 = vmatmul.bf16.gmra.mxu0 %v344
  %v468 = vpop.f32.mrf.mxu0
  %v469 = vadd.f32 0.0, %v468
  %v470 = vpop.f32.mrf.mxu0
  %v471 = vadd.f32 0.0, %v470
  %472 = vmatmul.bf16.gmra.mxu0 %v347
  %v473 = vpop.f32.mrf.mxu0
  %v474 = vadd.f32 0.0, %v473
  %v475 = vpop.f32.mrf.mxu0
  %v476 = vadd.f32 0.0, %v475
  %477 = vmatmul.bf16.gmra.mxu0 %v350
  %v478 = vpop.f32.mrf.mxu0
  %v479 = vadd.f32 0.0, %v478
  %v480 = vpop.f32.mrf.mxu0
  %v481 = vadd.f32 0.0, %v480
  %482 = vmatmul.bf16.gmra.mxu0 %v353
  %v483 = vpop.f32.mrf.mxu0
  %v484 = vadd.f32 0.0, %v483
  %v485 = vpop.f32.mrf.mxu0
  %v486 = vadd.f32 0.0, %v485
  %487 = vmatmul.bf16.gmra.mxu0 %v356
  %v488 = vpop.f32.mrf.mxu0
  %v489 = vadd.f32 0.0, %v488
  %v490 = vpop.f32.mrf.mxu0
  %v491 = vadd.f32 0.0, %v490
  %492 = vmatmul.bf16.gmra.mxu0 %v359
  %v493 = vpop.f32.mrf.mxu0
  %v494 = vadd.f32 0.0, %v493
  %v495 = vpop.f32.mrf.mxu0
  %v496 = vadd.f32 0.0, %v495
  %497 = vmatmul.bf16.gmra.mxu0 %v362
  %v498 = vpop.f32.mrf.mxu0
  %v499 = vadd.f32 0.0, %v498
  %v500 = vpop.f32.mrf.mxu0
  %v501 = vadd.f32 0.0, %v500
  %502 = vmatmul.bf16.gmra.mxu0 %v365
  %v503 = vpop.f32.mrf.mxu0
  %v504 = vadd.f32 0.0, %v503
  %v505 = vpop.f32.mrf.mxu0
  %v506 = vadd.f32 0.0, %v505
  %507 = vmatmul.bf16.gmra.mxu0 %v368
  %v508 = vpop.f32.mrf.mxu0
  %v509 = vadd.f32 0.0, %v508
  %v510 = vpop.f32.mrf.mxu0
  %v511 = vadd.f32 0.0, %v510
  %512 = vmatmul.bf16.gmra.mxu0 %v371
  %v513 = vpop.f32.mrf.mxu0
  %v514 = vadd.f32 0.0, %v513
  %v515 = vpop.f32.mrf.mxu0
  %v516 = vadd.f32 0.0, %v515
  %517 = vmatmul.bf16.gmra.mxu0 %v374
  %v518 = vpop.f32.mrf.mxu0
  %v519 = vadd.f32 0.0, %v518
  %v520 = vpop.f32.mrf.mxu0
  %v521 = vadd.f32 0.0, %v520
  %522 = vmatmul.bf16.gmra.mxu0 %v377
  %v523 = vpop.f32.mrf.mxu0
  %v524 = vadd.f32 0.0, %v523
  %v525 = vpop.f32.mrf.mxu0
  %v526 = vadd.f32 0.0, %v525
  %527 = vmatmul.bf16.gmra.mxu0 %v380
  %v528 = vpop.f32.mrf.mxu0
  %v529 = vadd.f32 0.0, %v528
  %v530 = vpop.f32.mrf.mxu0
  %v531 = vadd.f32 0.0, %v530
  %532 = vmatmul.bf16.gmra.mxu0 %v383
  %v533 = vpop.f32.mrf.mxu0
  %v534 = vadd.f32 0.0, %v533
  %v535 = vpop.f32.mrf.mxu0
  %v536 = vadd.f32 0.0, %v535
  %537 = vmatmul.bf16.gmra.mxu0 %v386
  %v538 = vpop.f32.mrf.mxu0
  %v539 = vadd.f32 0.0, %v538
  %v540 = vpop.f32.mrf.mxu0
  %v541 = vadd.f32 0.0, %v540
  %542 = vmatmul.bf16.gmra.mxu0 %v389
  %v543 = vpop.f32.mrf.mxu0
  %v544 = vadd.f32 0.0, %v543
  %v545 = vpop.f32.mrf.mxu0
  %v546 = vadd.f32 0.0, %v545
  %547 = vmatmul.bf16.gmra.mxu0 %v392
  %v548 = vpop.f32.mrf.mxu0
  %v549 = vadd.f32 0.0, %v548
  %v550 = vpop.f32.mrf.mxu0
  %v551 = vadd.f32 0.0, %v550
  %552 = vmatmul.bf16.gmra.mxu0 %v395
  %v553 = vpop.f32.mrf.mxu0
  %v554 = vadd.f32 0.0, %v553
  %v555 = vpop.f32.mrf.mxu0
  %v556 = vadd.f32 0.0, %v555
  %557 = vmatmul.bf16.gmra.mxu0 %v398
  %v558 = vpop.f32.mrf.mxu0
  %v559 = vadd.f32 0.0, %v558
  %v560 = vpop.f32.mrf.mxu0
  %v561 = vadd.f32 0.0, %v560
  %562 = vmatmul.bf16.gmra.mxu0 %v401
  %v563 = vpop.f32.mrf.mxu0
  %v564 = vadd.f32 0.0, %v563
  %v565 = vpop.f32.mrf.mxu0
  %v566 = vadd.f32 0.0, %v565
  %567 = vmatmul.bf16.gmra.mxu0 %v404
  %v568 = vpop.f32.mrf.mxu0
  %v569 = vadd.f32 0.0, %v568
  %v570 = vpop.f32.mrf.mxu0
  %v571 = vadd.f32 0.0, %v570
  %572 = vmatmul.bf16.gmra.mxu0 %v407
  %v573 = vpop.f32.mrf.mxu0
  %v574 = vadd.f32 0.0, %v573
  %v575 = vpop.f32.mrf.mxu0
  %v576 = vadd.f32 0.0, %v575
  %577 = vmatmul.bf16.gmra.mxu0 %v410
  %v578 = vpop.f32.mrf.mxu0
  %v579 = vadd.f32 0.0, %v578
  %v580 = vpop.f32.mrf.mxu0
  %v581 = vadd.f32 0.0, %v580
  %582 = vmatmul.bf16.gmra.mxu0 %v413
  %v583 = vpop.f32.mrf.mxu0
  %v584 = vadd.f32 0.0, %v583
  %v585 = vpop.f32.mrf.mxu0
  %v586 = vadd.f32 0.0, %v585
  %587 = vdwg.mxu0
  %v588 = vpack.c.bf16 %v429, %v429
  %v589 = vpack.c.bf16 %v431, %v431
  %v590 = vpack.c.bf16 %v434, %v434
  %v591 = vpack.c.bf16 %v436, %v436
  %v592 = vpack.c.bf16 %v439, %v439
  %v593 = vpack.c.bf16 %v441, %v441
  %v594 = vpack.c.bf16 %v444, %v444
  %v595 = vpack.c.bf16 %v446, %v446
  %v596 = vpack.c.bf16 %v449, %v449
  %v597 = vpack.c.bf16 %v451, %v451
  %v598 = vpack.c.bf16 %v454, %v454
  %v599 = vpack.c.bf16 %v456, %v456
  %v600 = vpack.c.bf16 %v459, %v459
  %v601 = vpack.c.bf16 %v461, %v461
  %v602 = vpack.c.bf16 %v464, %v464
  %v603 = vpack.c.bf16 %v466, %v466
  %v604 = vpack.c.bf16 %v469, %v469
  %v605 = vpack.c.bf16 %v471, %v471
  %v606 = vpack.c.bf16 %v474, %v474
  %v607 = vpack.c.bf16 %v476, %v476
  %v608 = vpack.c.bf16 %v479, %v479
  %v609 = vpack.c.bf16 %v481, %v481
  %v610 = vpack.c.bf16 %v484, %v484
  %v611 = vpack.c.bf16 %v486, %v486
  %v612 = vpack.c.bf16 %v489, %v489
  %v613 = vpack.c.bf16 %v491, %v491
  %v614 = vpack.c.bf16 %v494, %v494
  %v615 = vpack.c.bf16 %v496, %v496
  %v616 = vpack.c.bf16 %v499, %v499
  %v617 = vpack.c.bf16 %v501, %v501
  %v618 = vpack.c.bf16 %v504, %v504
  %v619 = vpack.c.bf16 %v506, %v506
  %v620 = vpack.c.bf16 %v509, %v509
  %v621 = vpack.c.bf16 %v511, %v511
  %v622 = vpack.c.bf16 %v514, %v514
  %v623 = vpack.c.bf16 %v516, %v516
  %v624 = vpack.c.bf16 %v519, %v519
  %v625 = vpack.c.bf16 %v521, %v521
  %v626 = vpack.c.bf16 %v524, %v524
  %v627 = vpack.c.bf16 %v526, %v526
  %v628 = vpack.c.bf16 %v529, %v529
  %v629 = vpack.c.bf16 %v531, %v531
  %v630 = vpack.c.bf16 %v534, %v534
  %v631 = vpack.c.bf16 %v536, %v536
  %v632 = vpack.c.bf16 %v539, %v539
  %v633 = vpack.c.bf16 %v541, %v541
  %v634 = vpack.c.bf16 %v544, %v544
  %v635 = vpack.c.bf16 %v546, %v546
  %v636 = vpack.c.bf16 %v549, %v549
  %v637 = vpack.c.bf16 %v551, %v551
  %v638 = vpack.c.bf16 %v554, %v554
  %v639 = vpack.c.bf16 %v556, %v556
  %v640 = vpack.c.bf16 %v559, %v559
  %v641 = vpack.c.bf16 %v561, %v561
  %v642 = vpack.c.bf16 %v564, %v564
  %v643 = vpack.c.bf16 %v566, %v566
  %v644 = vpack.c.bf16 %v569, %v569
  %v645 = vpack.c.bf16 %v571, %v571
  %v646 = vpack.c.bf16 %v574, %v574
  %v647 = vpack.c.bf16 %v576, %v576
  %v648 = vpack.c.bf16 %v579, %v579
  %v649 = vpack.c.bf16 %v581, %v581
  %v650 = vpack.c.bf16 %v584, %v584
  %v651 = vpack.c.bf16 %v586, %v586
  %vm652 = vcmask 257024
  %653 = vst.msk [vmem:[%s4] sm:$0xf] %vm652, %v588
  %654 = vst.msk [vmem:[%s4 + $0x4] sm:$0xf] %vm652, %v589
  %655 = vst.msk [vmem:[%s4 + $0x8] sm:$0xf] %vm652, %v590
  %656 = vst.msk [vmem:[%s4 + $0xc] sm:$0xf] %vm652, %v591
  %657 = vst.msk [vmem:[%s4 + $0x10] sm:$0xf] %vm652, %v592
  %658 = vst.msk [vmem:[%s4 + $0x14] sm:$0xf] %vm652, %v593
  %659 = vst.msk [vmem:[%s4 + $0x18] sm:$0xf] %vm652, %v594
  %660 = vst.msk [vmem:[%s4 + $0x1c] sm:$0xf] %vm652, %v595
  %661 = vst.msk [vmem:[%s4 + $0x20] sm:$0xf] %vm652, %v596
  %662 = vst.msk [vmem:[%s4 + $0x24] sm:$0xf] %vm652, %v597
  %663 = vst.msk [vmem:[%s4 + $0x28] sm:$0xf] %vm652, %v598
  %664 = vst.msk [vmem:[%s4 + $0x2c] sm:$0xf] %vm652, %v599
  %665 = vst.msk [vmem:[%s4 + $0x30] sm:$0xf] %vm652, %v600
  %666 = vst.msk [vmem:[%s4 + $0x34] sm:$0xf] %vm652, %v601
  %667 = vst.msk [vmem:[%s4 + $0x38] sm:$0xf] %vm652, %v602
  %668 = vst.msk [vmem:[%s4 + $0x3c] sm:$0xf] %vm652, %v603
  %669 = vst.msk [vmem:[%s4 + $0x40] sm:$0xf] %vm652, %v604
  %670 = vst.msk [vmem:[%s4 + $0x44] sm:$0xf] %vm652, %v605
  %671 = vst.msk [vmem:[%s4 + $0x48] sm:$0xf] %vm652, %v606
  %672 = vst.msk [vmem:[%s4 + $0x4c] sm:$0xf] %vm652, %v607
  %673 = vst.msk [vmem:[%s4 + $0x50] sm:$0xf] %vm652, %v608
  %674 = vst.msk [vmem:[%s4 + $0x54] sm:$0xf] %vm652, %v609
  %675 = vst.msk [vmem:[%s4 + $0x58] sm:$0xf] %vm652, %v610
  %676 = vst.msk [vmem:[%s4 + $0x5c] sm:$0xf] %vm652, %v611
  %677 = vst.msk [vmem:[%s4 + $0x60] sm:$0xf] %vm652, %v612
  %678 = vst.msk [vmem:[%s4 + $0x64] sm:$0xf] %vm652, %v613
  %679 = vst.msk [vmem:[%s4 + $0x68] sm:$0xf] %vm652, %v614
  %680 = vst.msk [vmem:[%s4 + $0x6c] sm:$0xf] %vm652, %v615
  %681 = vst.msk [vmem:[%s4 + $0x70] sm:$0xf] %vm652, %v616
  %682 = vst.msk [vmem:[%s4 + $0x74] sm:$0xf] %vm652, %v617
  %683 = vst.msk [vmem:[%s4 + $0x78] sm:$0xf] %vm652, %v618
  %684 = vst.msk [vmem:[%s4 + $0x7c] sm:$0xf] %vm652, %v619
  %685 = vst.msk [vmem:[%s4 + $0x80] sm:$0xf] %vm652, %v620
  %686 = vst.msk [vmem:[%s4 + $0x84] sm:$0xf] %vm652, %v621
  %687 = vst.msk [vmem:[%s4 + $0x88] sm:$0xf] %vm652, %v622
  %688 = vst.msk [vmem:[%s4 + $0x8c] sm:$0xf] %vm652, %v623
  %689 = vst.msk [vmem:[%s4 + $0x90] sm:$0xf] %vm652, %v624
  %690 = vst.msk [vmem:[%s4 + $0x94] sm:$0xf] %vm652, %v625
  %691 = vst.msk [vmem:[%s4 + $0x98] sm:$0xf] %vm652, %v626
  %692 = vst.msk [vmem:[%s4 + $0x9c] sm:$0xf] %vm652, %v627
  %693 = vst.msk [vmem:[%s4 + $0xa0] sm:$0xf] %vm652, %v628
  %694 = vst.msk [vmem:[%s4 + $0xa4] sm:$0xf] %vm652, %v629
  %695 = vst.msk [vmem:[%s4 + $0xa8] sm:$0xf] %vm652, %v630
  %696 = vst.msk [vmem:[%s4 + $0xac] sm:$0xf] %vm652, %v631
  %697 = vst.msk [vmem:[%s4 + $0xb0] sm:$0xf] %vm652, %v632
  %698 = vst.msk [vmem:[%s4 + $0xb4] sm:$0xf] %vm652, %v633
  %699 = vst.msk [vmem:[%s4 + $0xb8] sm:$0xf] %vm652, %v634
  %700 = vst.msk [vmem:[%s4 + $0xbc] sm:$0xf] %vm652, %v635
  %701 = vst.msk [vmem:[%s4 + $0xc0] sm:$0xf] %vm652, %v636
  %702 = vst.msk [vmem:[%s4 + $0xc4] sm:$0xf] %vm652, %v637
  %703 = vst.msk [vmem:[%s4 + $0xc8] sm:$0xf] %vm652, %v638
  %704 = vst.msk [vmem:[%s4 + $0xcc] sm:$0xf] %vm652, %v639
  %705 = vst.msk [vmem:[%s4 + $0xd0] sm:$0xf] %vm652, %v640
  %706 = vst.msk [vmem:[%s4 + $0xd4] sm:$0xf] %vm652, %v641
  %707 = vst.msk [vmem:[%s4 + $0xd8] sm:$0xf] %vm652, %v642
  %708 = vst.msk [vmem:[%s4 + $0xdc] sm:$0xf] %vm652, %v643
  %709 = vst.msk [vmem:[%s4 + $0xe0] sm:$0xf] %vm652, %v644
  %710 = vst.msk [vmem:[%s4 + $0xe4] sm:$0xf] %vm652, %v645
  %711 = vst.msk [vmem:[%s4 + $0xe8] sm:$0xf] %vm652, %v646
  %712 = vst.msk [vmem:[%s4 + $0xec] sm:$0xf] %vm652, %v647
  %713 = vst.msk [vmem:[%s4 + $0xf0] sm:$0xf] %vm652, %v648
  %714 = vst.msk [vmem:[%s4 + $0xf4] sm:$0xf] %vm652, %v649
  %715 = vst.msk [vmem:[%s4 + $0xf8] sm:$0xf] %vm652, %v650
  %716 = vst.msk [vmem:[%s4 + $0xfc] sm:$0xf] %vm652, %v651
  %s717 = smul.u32 0, 512
  %v718 = vlaneseq
  %v719 = vshrl.u32 %v718, 7
  %v720 = vadd.s32 %v719, 8
  %v721 = vadd.s32 %v719, 16
  %v722 = vadd.s32 %v719, 24
  %v723 = vadd.s32 %v719, 32
  %v724 = vadd.s32 %v719, 40
  %v725 = vadd.s32 %v719, 48
  %v726 = vadd.s32 %v719, 56
  %v727 = vadd.s32 %v719, 64
  %v728 = vadd.s32 %v719, 72
  %v729 = vadd.s32 %v719, 80
  %v730 = vadd.s32 %v719, 88
  %v731 = vadd.s32 %v719, 96
  %v732 = vadd.s32 %v719, 104
  %v733 = vadd.s32 %v719, 112
  %v734 = vadd.s32 %v719, 120
  %v735 = vadd.s32 %v719, 128
  %v736 = vadd.s32 %v719, 136
  %v737 = vadd.s32 %v719, 144
  %v738 = vadd.s32 %v719, 152
  %v739 = vadd.s32 %v719, 160
  %v740 = vadd.s32 %v719, 168
  %v741 = vadd.s32 %v719, 176
  %v742 = vadd.s32 %v719, 184
  %v743 = vadd.s32 %v719, 192
  %v744 = vadd.s32 %v719, 200
  %v745 = vadd.s32 %v719, 208
  %v746 = vadd.s32 %v719, 216
  %v747 = vadd.s32 %v719, 224
  %v748 = vadd.s32 %v719, 232
  %v749 = vadd.s32 %v719, 240
  %v750 = vadd.s32 %v719, 248
  %v751 = vadd.s32 %v719, 256
  %v752 = vadd.s32 %v719, 264
  %v753 = vadd.s32 %v719, 272
  %v754 = vadd.s32 %v719, 280
  %v755 = vadd.s32 %v719, 288
  %v756 = vadd.s32 %v719, 296
  %v757 = vadd.s32 %v719, 304
  %v758 = vadd.s32 %v719, 312
  %v759 = vadd.s32 %v719, 320
  %v760 = vadd.s32 %v719, 328
  %v761 = vadd.s32 %v719, 336
  %v762 = vadd.s32 %v719, 344
  %v763 = vadd.s32 %v719, 352
  %v764 = vadd.s32 %v719, 360
  %v765 = vadd.s32 %v719, 368
  %v766 = vadd.s32 %v719, 376
  %v767 = vadd.s32 %v719, 384
  %v768 = vadd.s32 %v719, 392
  %v769 = vadd.s32 %v719, 400
  %v770 = vadd.s32 %v719, 408
  %v771 = vadd.s32 %v719, 416
  %v772 = vadd.s32 %v719, 424
  %v773 = vadd.s32 %v719, 432
  %v774 = vadd.s32 %v719, 440
  %v775 = vadd.s32 %v719, 448
  %v776 = vadd.s32 %v719, 456
  %v777 = vadd.s32 %v719, 464
  %v778 = vadd.s32 %v719, 472
  %v779 = vadd.s32 %v719, 480
  %v780 = vadd.s32 %v719, 488
  %v781 = vadd.s32 %v719, 496
  %v782 = vadd.s32 %v719, 504
  %v783 = vstv %s717
  %v784 = vadd.s32 %v783, %v719
  %v785 = vadd.s32 %v783, %v720
  %v786 = vadd.s32 %v783, %v721
  %v787 = vadd.s32 %v783, %v722
  %v788 = vadd.s32 %v783, %v723
  %v789 = vadd.s32 %v783, %v724
  %v790 = vadd.s32 %v783, %v725
  %v791 = vadd.s32 %v783, %v726
  %v792 = vadd.s32 %v783, %v727
  %v793 = vadd.s32 %v783, %v728
  %v794 = vadd.s32 %v783, %v729
  %v795 = vadd.s32 %v783, %v730
  %v796 = vadd.s32 %v783, %v731
  %v797 = vadd.s32 %v783, %v732
  %v798 = vadd.s32 %v783, %v733
  %v799 = vadd.s32 %v783, %v734
  %v800 = vadd.s32 %v783, %v735
  %v801 = vadd.s32 %v783, %v736
  %v802 = vadd.s32 %v783, %v737
  %v803 = vadd.s32 %v783, %v738
  %v804 = vadd.s32 %v783, %v739
  %v805 = vadd.s32 %v783, %v740
  %v806 = vadd.s32 %v783, %v741
  %v807 = vadd.s32 %v783, %v742
  %v808 = vadd.s32 %v783, %v743
  %v809 = vadd.s32 %v783, %v744
  %v810 = vadd.s32 %v783, %v745
  %v811 = vadd.s32 %v783, %v746
  %v812 = vadd.s32 %v783, %v747
  %v813 = vadd.s32 %v783, %v748
  %v814 = vadd.s32 %v783, %v749
  %v815 = vadd.s32 %v783, %v750
  %v816 = vadd.s32 %v783, %v751
  %v817 = vadd.s32 %v783, %v752
  %v818 = vadd.s32 %v783, %v753
  %v819 = vadd.s32 %v783, %v754
  %v820 = vadd.s32 %v783, %v755
  %v821 = vadd.s32 %v783, %v756
  %v822 = vadd.s32 %v783, %v757
  %v823 = vadd.s32 %v783, %v758
  %v824 = vadd.s32 %v783, %v759
  %v825 = vadd.s32 %v783, %v760
  %v826 = vadd.s32 %v783, %v761
  %v827 = vadd.s32 %v783, %v762
  %v828 = vadd.s32 %v783, %v763
  %v829 = vadd.s32 %v783, %v764
  %v830 = vadd.s32 %v783, %v765
  %v831 = vadd.s32 %v783, %v766
  %v832 = vadd.s32 %v783, %v767
  %v833 = vadd.s32 %v783, %v768
  %v834 = vadd.s32 %v783, %v769
  %v835 = vadd.s32 %v783, %v770
  %v836 = vadd.s32 %v783, %v771
  %v837 = vadd.s32 %v783, %v772
  %v838 = vadd.s32 %v783, %v773
  %v839 = vadd.s32 %v783, %v774
  %v840 = vadd.s32 %v783, %v775
  %v841 = vadd.s32 %v783, %v776
  %v842 = vadd.s32 %v783, %v777
  %v843 = vadd.s32 %v783, %v778
  %v844 = vadd.s32 %v783, %v779
  %v845 = vadd.s32 %v783, %v780
  %v846 = vadd.s32 %v783, %v781
  %v847 = vadd.s32 %v783, %v782
  %vm848 = vcmp.lt.s32.totalorder %v784, 512
  %vm849 = vcmp.lt.s32.totalorder %v785, 512
  %vm850 = vcmp.lt.s32.totalorder %v786, 512
  %vm851 = vcmp.lt.s32.totalorder %v787, 512
  %vm852 = vcmp.lt.s32.totalorder %v788, 512
  %vm853 = vcmp.lt.s32.totalorder %v789, 512
  %vm854 = vcmp.lt.s32.totalorder %v790, 512
  %vm855 = vcmp.lt.s32.totalorder %v791, 512
  %vm856 = vcmp.lt.s32.totalorder %v792, 512
  %vm857 = vcmp.lt.s32.totalorder %v793, 512
  %vm858 = vcmp.lt.s32.totalorder %v794, 512
  %vm859 = vcmp.lt.s32.totalorder %v795, 512
  %vm860 = vcmp.lt.s32.totalorder %v796, 512
  %vm861 = vcmp.lt.s32.totalorder %v797, 512
  %vm862 = vcmp.lt.s32.totalorder %v798, 512
  %vm863 = vcmp.lt.s32.totalorder %v799, 512
  %vm864 = vcmp.lt.s32.totalorder %v800, 512
  %vm865 = vcmp.lt.s32.totalorder %v801, 512
  %vm866 = vcmp.lt.s32.totalorder %v802, 512
  %vm867 = vcmp.lt.s32.totalorder %v803, 512
  %vm868 = vcmp.lt.s32.totalorder %v804, 512
  %vm869 = vcmp.lt.s32.totalorder %v805, 512
  %vm870 = vcmp.lt.s32.totalorder %v806, 512
  %vm871 = vcmp.lt.s32.totalorder %v807, 512
  %vm872 = vcmp.lt.s32.totalorder %v808, 512
  %vm873 = vcmp.lt.s32.totalorder %v809, 512
  %vm874 = vcmp.lt.s32.totalorder %v810, 512
  %vm875 = vcmp.lt.s32.totalorder %v811, 512
  %vm876 = vcmp.lt.s32.totalorder %v812, 512
  %vm877 = vcmp.lt.s32.totalorder %v813, 512
  %vm878 = vcmp.lt.s32.totalorder %v814, 512
  %vm879 = vcmp.lt.s32.totalorder %v815, 512
  %vm880 = vcmp.lt.s32.totalorder %v816, 512
  %vm881 = vcmp.lt.s32.totalorder %v817, 512
  %vm882 = vcmp.lt.s32.totalorder %v818, 512
  %vm883 = vcmp.lt.s32.totalorder %v819, 512
  %vm884 = vcmp.lt.s32.totalorder %v820, 512
  %vm885 = vcmp.lt.s32.totalorder %v821, 512
  %vm886 = vcmp.lt.s32.totalorder %v822, 512
  %vm887 = vcmp.lt.s32.totalorder %v823, 512
  %vm888 = vcmp.lt.s32.totalorder %v824, 512
  %vm889 = vcmp.lt.s32.totalorder %v825, 512
  %vm890 = vcmp.lt.s32.totalorder %v826, 512
  %vm891 = vcmp.lt.s32.totalorder %v827, 512
  %vm892 = vcmp.lt.s32.totalorder %v828, 512
  %vm893 = vcmp.lt.s32.totalorder %v829, 512
  %vm894 = vcmp.lt.s32.totalorder %v830, 512
  %vm895 = vcmp.lt.s32.totalorder %v831, 512
  %vm896 = vcmp.lt.s32.totalorder %v832, 512
  %vm897 = vcmp.lt.s32.totalorder %v833, 512
  %vm898 = vcmp.lt.s32.totalorder %v834, 512
  %vm899 = vcmp.lt.s32.totalorder %v835, 512
  %vm900 = vcmp.lt.s32.totalorder %v836, 512
  %vm901 = vcmp.lt.s32.totalorder %v837, 512
  %vm902 = vcmp.lt.s32.totalorder %v838, 512
  %vm903 = vcmp.lt.s32.totalorder %v839, 512
  %vm904 = vcmp.lt.s32.totalorder %v840, 512
  %vm905 = vcmp.lt.s32.totalorder %v841, 512
  %vm906 = vcmp.lt.s32.totalorder %v842, 512
  %vm907 = vcmp.lt.s32.totalorder %v843, 512
  %vm908 = vcmp.lt.s32.totalorder %v844, 512
  %vm909 = vcmp.lt.s32.totalorder %v845, 512
  %vm910 = vcmp.lt.s32.totalorder %v846, 512
  %vm911 = vcmp.lt.s32.totalorder %v847, 512
  %v912 = vsel %vm848, 1, 0
  %v913 = vsel %vm849, 1, 0
  %v914 = vsel %vm850, 1, 0
  %v915 = vsel %vm851, 1, 0
  %v916 = vsel %vm852, 1, 0
  %v917 = vsel %vm853, 1, 0
  %v918 = vsel %vm854, 1, 0
  %v919 = vsel %vm855, 1, 0
  %v920 = vsel %vm856, 1, 0
  %v921 = vsel %vm857, 1, 0
  %v922 = vsel %vm858, 1, 0
  %v923 = vsel %vm859, 1, 0
  %v924 = vsel %vm860, 1, 0
  %v925 = vsel %vm861, 1, 0
  %v926 = vsel %vm862, 1, 0
  %v927 = vsel %vm863, 1, 0
  %v928 = vsel %vm864, 1, 0
  %v929 = vsel %vm865, 1, 0
  %v930 = vsel %vm866, 1, 0
  %v931 = vsel %vm867, 1, 0
  %v932 = vsel %vm868, 1, 0
  %v933 = vsel %vm869, 1, 0
  %v934 = vsel %vm870, 1, 0
  %v935 = vsel %vm871, 1, 0
  %v936 = vsel %vm872, 1, 0
  %v937 = vsel %vm873, 1, 0
  %v938 = vsel %vm874, 1, 0
  %v939 = vsel %vm875, 1, 0
  %v940 = vsel %vm876, 1, 0
  %v941 = vsel %vm877, 1, 0
  %v942 = vsel %vm878, 1, 0
  %v943 = vsel %vm879, 1, 0
  %v944 = vsel %vm880, 1, 0
  %v945 = vsel %vm881, 1, 0
  %v946 = vsel %vm882, 1, 0
  %v947 = vsel %vm883, 1, 0
  %v948 = vsel %vm884, 1, 0
  %v949 = vsel %vm885, 1, 0
  %v950 = vsel %vm886, 1, 0
  %v951 = vsel %vm887, 1, 0
  %v952 = vsel %vm888, 1, 0
  %v953 = vsel %vm889, 1, 0
  %v954 = vsel %vm890, 1, 0
  %v955 = vsel %vm891, 1, 0
  %v956 = vsel %vm892, 1, 0
  %v957 = vsel %vm893, 1, 0
  %v958 = vsel %vm894, 1, 0
  %v959 = vsel %vm895, 1, 0
  %v960 = vsel %vm896, 1, 0
  %v961 = vsel %vm897, 1, 0
  %v962 = vsel %vm898, 1, 0
  %v963 = vsel %vm899, 1, 0
  %v964 = vsel %vm900, 1, 0
  %v965 = vsel %vm901, 1, 0
  %v966 = vsel %vm902, 1, 0
  %v967 = vsel %vm903, 1, 0
  %v968 = vsel %vm904, 1, 0
  %v969 = vsel %vm905, 1, 0
  %v970 = vsel %vm906, 1, 0
  %v971 = vsel %vm907, 1, 0
  %v972 = vsel %vm908, 1, 0
  %v973 = vsel %vm909, 1, 0
  %v974 = vsel %vm910, 1, 0
  %v975 = vsel %vm911, 1, 0
  %vm976 = vcmp.eq.s32.totalorder %v912, 1
  %vm977 = vcmp.eq.s32.totalorder %v913, 1
  %vm978 = vcmp.eq.s32.totalorder %v914, 1
  %vm979 = vcmp.eq.s32.totalorder %v915, 1
  %vm980 = vcmp.eq.s32.totalorder %v916, 1
  %vm981 = vcmp.eq.s32.totalorder %v917, 1
  %vm982 = vcmp.eq.s32.totalorder %v918, 1
  %vm983 = vcmp.eq.s32.totalorder %v919, 1
  %vm984 = vcmp.eq.s32.totalorder %v920, 1
  %vm985 = vcmp.eq.s32.totalorder %v921, 1
  %vm986 = vcmp.eq.s32.totalorder %v922, 1
  %vm987 = vcmp.eq.s32.totalorder %v923, 1
  %vm988 = vcmp.eq.s32.totalorder %v924, 1
  %vm989 = vcmp.eq.s32.totalorder %v925, 1
  %vm990 = vcmp.eq.s32.totalorder %v926, 1
  %vm991 = vcmp.eq.s32.totalorder %v927, 1
  %vm992 = vcmp.eq.s32.totalorder %v928, 1
  %vm993 = vcmp.eq.s32.totalorder %v929, 1
  %vm994 = vcmp.eq.s32.totalorder %v930, 1
  %vm995 = vcmp.eq.s32.totalorder %v931, 1
  %vm996 = vcmp.eq.s32.totalorder %v932, 1
  %vm997 = vcmp.eq.s32.totalorder %v933, 1
  %vm998 = vcmp.eq.s32.totalorder %v934, 1
  %vm999 = vcmp.eq.s32.totalorder %v935, 1
  %vm1000 = vcmp.eq.s32.totalorder %v936, 1
  %vm1001 = vcmp.eq.s32.totalorder %v937, 1
  %vm1002 = vcmp.eq.s32.totalorder %v938, 1
  %vm1003 = vcmp.eq.s32.totalorder %v939, 1
  %vm1004 = vcmp.eq.s32.totalorder %v940, 1
  %vm1005 = vcmp.eq.s32.totalorder %v941, 1
  %vm1006 = vcmp.eq.s32.totalorder %v942, 1
  %vm1007 = vcmp.eq.s32.totalorder %v943, 1
  %vm1008 = vcmp.eq.s32.totalorder %v944, 1
  %vm1009 = vcmp.eq.s32.totalorder %v945, 1
  %vm1010 = vcmp.eq.s32.totalorder %v946, 1
  %vm1011 = vcmp.eq.s32.totalorder %v947, 1
  %vm1012 = vcmp.eq.s32.totalorder %v948, 1
  %vm1013 = vcmp.eq.s32.totalorder %v949, 1
  %vm1014 = vcmp.eq.s32.totalorder %v950, 1
  %vm1015 = vcmp.eq.s32.totalorder %v951, 1
  %vm1016 = vcmp.eq.s32.totalorder %v952, 1
  %vm1017 = vcmp.eq.s32.totalorder %v953, 1
  %vm1018 = vcmp.eq.s32.totalorder %v954, 1
  %vm1019 = vcmp.eq.s32.totalorder %v955, 1
  %vm1020 = vcmp.eq.s32.totalorder %v956, 1
  %vm1021 = vcmp.eq.s32.totalorder %v957, 1
  %vm1022 = vcmp.eq.s32.totalorder %v958, 1
  %vm1023 = vcmp.eq.s32.totalorder %v959, 1
  %vm1024 = vcmp.eq.s32.totalorder %v960, 1
  %vm1025 = vcmp.eq.s32.totalorder %v961, 1
  %vm1026 = vcmp.eq.s32.totalorder %v962, 1
  %vm1027 = vcmp.eq.s32.totalorder %v963, 1
  %vm1028 = vcmp.eq.s32.totalorder %v964, 1
  %vm1029 = vcmp.eq.s32.totalorder %v965, 1
  %vm1030 = vcmp.eq.s32.totalorder %v966, 1
  %vm1031 = vcmp.eq.s32.totalorder %v967, 1
  %vm1032 = vcmp.eq.s32.totalorder %v968, 1
  %vm1033 = vcmp.eq.s32.totalorder %v969, 1
  %vm1034 = vcmp.eq.s32.totalorder %v970, 1
  %vm1035 = vcmp.eq.s32.totalorder %v971, 1
  %vm1036 = vcmp.eq.s32.totalorder %v972, 1
  %vm1037 = vcmp.eq.s32.totalorder %v973, 1
  %vm1038 = vcmp.eq.s32.totalorder %v974, 1
  %vm1039 = vcmp.eq.s32.totalorder %v975, 1
  %v1040 = vsel %vm976, %v429, 0.0
  %v1041 = vsel %vm977, %v431, 0.0
  %v1042 = vsel %vm978, %v434, 0.0
  %v1043 = vsel %vm979, %v436, 0.0
  %v1044 = vsel %vm980, %v439, 0.0
  %v1045 = vsel %vm981, %v441, 0.0
  %v1046 = vsel %vm982, %v444, 0.0
  %v1047 = vsel %vm983, %v446, 0.0
  %v1048 = vsel %vm984, %v449, 0.0
  %v1049 = vsel %vm985, %v451, 0.0
  %v1050 = vsel %vm986, %v454, 0.0
  %v1051 = vsel %vm987, %v456, 0.0
  %v1052 = vsel %vm988, %v459, 0.0
  %v1053 = vsel %vm989, %v461, 0.0
  %v1054 = vsel %vm990, %v464, 0.0
  %v1055 = vsel %vm991, %v466, 0.0
  %v1056 = vsel %vm992, %v469, 0.0
  %v1057 = vsel %vm993, %v471, 0.0
  %v1058 = vsel %vm994, %v474, 0.0
  %v1059 = vsel %vm995, %v476, 0.0
  %v1060 = vsel %vm996, %v479, 0.0
  %v1061 = vsel %vm997, %v481, 0.0
  %v1062 = vsel %vm998, %v484, 0.0
  %v1063 = vsel %vm999, %v486, 0.0
  %v1064 = vsel %vm1000, %v489, 0.0
  %v1065 = vsel %vm1001, %v491, 0.0
  %v1066 = vsel %vm1002, %v494, 0.0
  %v1067 = vsel %vm1003, %v496, 0.0
  %v1068 = vsel %vm1004, %v499, 0.0
  %v1069 = vsel %vm1005, %v501, 0.0
  %v1070 = vsel %vm1006, %v504, 0.0
  %v1071 = vsel %vm1007, %v506, 0.0
  %v1072 = vsel %vm1008, %v509, 0.0
  %v1073 = vsel %vm1009, %v511, 0.0
  %v1074 = vsel %vm1010, %v514, 0.0
  %v1075 = vsel %vm1011, %v516, 0.0
  %v1076 = vsel %vm1012, %v519, 0.0
  %v1077 = vsel %vm1013, %v521, 0.0
  %v1078 = vsel %vm1014, %v524, 0.0
  %v1079 = vsel %vm1015, %v526, 0.0
  %v1080 = vsel %vm1016, %v529, 0.0
  %v1081 = vsel %vm1017, %v531, 0.0
  %v1082 = vsel %vm1018, %v534, 0.0
  %v1083 = vsel %vm1019, %v536, 0.0
  %v1084 = vsel %vm1020, %v539, 0.0
  %v1085 = vsel %vm1021, %v541, 0.0
  %v1086 = vsel %vm1022, %v544, 0.0
  %v1087 = vsel %vm1023, %v546, 0.0
  %v1088 = vsel %vm1024, %v549, 0.0
  %v1089 = vsel %vm1025, %v551, 0.0
  %v1090 = vsel %vm1026, %v554, 0.0
  %v1091 = vsel %vm1027, %v556, 0.0
  %v1092 = vsel %vm1028, %v559, 0.0
  %v1093 = vsel %vm1029, %v561, 0.0
  %v1094 = vsel %vm1030, %v564, 0.0
  %v1095 = vsel %vm1031, %v566, 0.0
  %v1096 = vsel %vm1032, %v569, 0.0
  %v1097 = vsel %vm1033, %v571, 0.0
  %v1098 = vsel %vm1034, %v574, 0.0
  %v1099 = vsel %vm1035, %v576, 0.0
  %v1100 = vsel %vm1036, %v579, 0.0
  %v1101 = vsel %vm1037, %v581, 0.0
  %v1102 = vsel %vm1038, %v584, 0.0
  %v1103 = vsel %vm1039, %v586, 0.0
  %vm1104 = vcmask 261120
  %v1105 = vsel %vm1104, %v1040, 0.0
  %v1106 = vsel %vm1104, %v1041, 0.0
  %v1107 = vadd.f32 %v1105, %v1106
  %v1108 = vsel %vm1104, %v1042, 0.0
  %v1109 = vadd.f32 %v1107, %v1108
  %v1110 = vsel %vm1104, %v1043, 0.0
  %v1111 = vadd.f32 %v1109, %v1110
  %v1112 = vsel %vm1104, %v1044, 0.0
  %v1113 = vadd.f32 %v1111, %v1112
  %v1114 = vsel %vm1104, %v1045, 0.0
  %v1115 = vadd.f32 %v1113, %v1114
  %v1116 = vsel %vm1104, %v1046, 0.0
  %v1117 = vadd.f32 %v1115, %v1116
  %v1118 = vsel %vm1104, %v1047, 0.0
  %v1119 = vadd.f32 %v1117, %v1118
  %v1120 = vsel %vm1104, %v1048, 0.0
  %v1121 = vadd.f32 %v1119, %v1120
  %v1122 = vsel %vm1104, %v1049, 0.0
  %v1123 = vadd.f32 %v1121, %v1122
  %v1124 = vsel %vm1104, %v1050, 0.0
  %v1125 = vadd.f32 %v1123, %v1124
  %v1126 = vsel %vm1104, %v1051, 0.0
  %v1127 = vadd.f32 %v1125, %v1126
  %v1128 = vsel %vm1104, %v1052, 0.0
  %v1129 = vadd.f32 %v1127, %v1128
  %v1130 = vsel %vm1104, %v1053, 0.0
  %v1131 = vadd.f32 %v1129, %v1130
  %v1132 = vsel %vm1104, %v1054, 0.0
  %v1133 = vadd.f32 %v1131, %v1132
  %v1134 = vsel %vm1104, %v1055, 0.0
  %v1135 = vadd.f32 %v1133, %v1134
  %v1136 = vsel %vm1104, %v1056, 0.0
  %v1137 = vadd.f32 %v1135, %v1136
  %v1138 = vsel %vm1104, %v1057, 0.0
  %v1139 = vadd.f32 %v1137, %v1138
  %v1140 = vsel %vm1104, %v1058, 0.0
  %v1141 = vadd.f32 %v1139, %v1140
  %v1142 = vsel %vm1104, %v1059, 0.0
  %v1143 = vadd.f32 %v1141, %v1142
  %v1144 = vsel %vm1104, %v1060, 0.0
  %v1145 = vadd.f32 %v1143, %v1144
  %v1146 = vsel %vm1104, %v1061, 0.0
  %v1147 = vadd.f32 %v1145, %v1146
  %v1148 = vsel %vm1104, %v1062, 0.0
  %v1149 = vadd.f32 %v1147, %v1148
  %v1150 = vsel %vm1104, %v1063, 0.0
  %v1151 = vadd.f32 %v1149, %v1150
  %v1152 = vsel %vm1104, %v1064, 0.0
  %v1153 = vadd.f32 %v1151, %v1152
  %v1154 = vsel %vm1104, %v1065, 0.0
  %v1155 = vadd.f32 %v1153, %v1154
  %v1156 = vsel %vm1104, %v1066, 0.0
  %v1157 = vadd.f32 %v1155, %v1156
  %v1158 = vsel %vm1104, %v1067, 0.0
  %v1159 = vadd.f32 %v1157, %v1158
  %v1160 = vsel %vm1104, %v1068, 0.0
  %v1161 = vadd.f32 %v1159, %v1160
  %v1162 = vsel %vm1104, %v1069, 0.0
  %v1163 = vadd.f32 %v1161, %v1162
  %v1164 = vsel %vm1104, %v1070, 0.0
  %v1165 = vadd.f32 %v1163, %v1164
  %v1166 = vsel %vm1104, %v1071, 0.0
  %v1167 = vadd.f32 %v1165, %v1166
  %v1168 = vsel %vm1104, %v1072, 0.0
  %v1169 = vadd.f32 %v1167, %v1168
  %v1170 = vsel %vm1104, %v1073, 0.0
  %v1171 = vadd.f32 %v1169, %v1170
  %v1172 = vsel %vm1104, %v1074, 0.0
  %v1173 = vadd.f32 %v1171, %v1172
  %v1174 = vsel %vm1104, %v1075, 0.0
  %v1175 = vadd.f32 %v1173, %v1174
  %v1176 = vsel %vm1104, %v1076, 0.0
  %v1177 = vadd.f32 %v1175, %v1176
  %v1178 = vsel %vm1104, %v1077, 0.0
  %v1179 = vadd.f32 %v1177, %v1178
  %v1180 = vsel %vm1104, %v1078, 0.0
  %v1181 = vadd.f32 %v1179, %v1180
  %v1182 = vsel %vm1104, %v1079, 0.0
  %v1183 = vadd.f32 %v1181, %v1182
  %v1184 = vsel %vm1104, %v1080, 0.0
  %v1185 = vadd.f32 %v1183, %v1184
  %v1186 = vsel %vm1104, %v1081, 0.0
  %v1187 = vadd.f32 %v1185, %v1186
  %v1188 = vsel %vm1104, %v1082, 0.0
  %v1189 = vadd.f32 %v1187, %v1188
  %v1190 = vsel %vm1104, %v1083, 0.0
  %v1191 = vadd.f32 %v1189, %v1190
  %v1192 = vsel %vm1104, %v1084, 0.0
  %v1193 = vadd.f32 %v1191, %v1192
  %v1194 = vsel %vm1104, %v1085, 0.0
  %v1195 = vadd.f32 %v1193, %v1194
  %v1196 = vsel %vm1104, %v1086, 0.0
  %v1197 = vadd.f32 %v1195, %v1196
  %v1198 = vsel %vm1104, %v1087, 0.0
  %v1199 = vadd.f32 %v1197, %v1198
  %v1200 = vsel %vm1104, %v1088, 0.0
  %v1201 = vadd.f32 %v1199, %v1200
  %v1202 = vsel %vm1104, %v1089, 0.0
  %v1203 = vadd.f32 %v1201, %v1202
  %v1204 = vsel %vm1104, %v1090, 0.0
  %v1205 = vadd.f32 %v1203, %v1204
  %v1206 = vsel %vm1104, %v1091, 0.0
  %v1207 = vadd.f32 %v1205, %v1206
  %v1208 = vsel %vm1104, %v1092, 0.0
  %v1209 = vadd.f32 %v1207, %v1208
  %v1210 = vsel %vm1104, %v1093, 0.0
  %v1211 = vadd.f32 %v1209, %v1210
  %v1212 = vsel %vm1104, %v1094, 0.0
  %v1213 = vadd.f32 %v1211, %v1212
  %v1214 = vsel %vm1104, %v1095, 0.0
  %v1215 = vadd.f32 %v1213, %v1214
  %v1216 = vsel %vm1104, %v1096, 0.0
  %v1217 = vadd.f32 %v1215, %v1216
  %v1218 = vsel %vm1104, %v1097, 0.0
  %v1219 = vadd.f32 %v1217, %v1218
  %v1220 = vsel %vm1104, %v1098, 0.0
  %v1221 = vadd.f32 %v1219, %v1220
  %v1222 = vsel %vm1104, %v1099, 0.0
  %v1223 = vadd.f32 %v1221, %v1222
  %v1224 = vsel %vm1104, %v1100, 0.0
  %v1225 = vadd.f32 %v1223, %v1224
  %v1226 = vsel %vm1104, %v1101, 0.0
  %v1227 = vadd.f32 %v1225, %v1226
  %v1228 = vsel %vm1104, %v1102, 0.0
  %v1229 = vadd.f32 %v1227, %v1228
  %v1230 = vsel %vm1104, %v1103, 0.0
  %v1231 = vadd.f32 %v1229, %v1230
  %v1232 = vrot.slane %v1231, 4
  %v1233 = vadd.f32 %v1231, %v1232
  %v1234 = vrot.slane %v1233, 2
  %v1235 = vadd.f32 %v1233, %v1234
  %v1236 = vrot.slane %v1235, 1
  %v1237 = vadd.f32 %v1235, %v1236
  %vm1238 = vcmask 253952
  %1239 = vst.msk [vmem:[%s5] sm:$0x1] %vm1238, %v1237
  %v1240 = vmul.f32 %v1040, %v1040
  %v1241 = vmul.f32 %v1041, %v1041
  %v1242 = vmul.f32 %v1042, %v1042
  %v1243 = vmul.f32 %v1043, %v1043
  %v1244 = vmul.f32 %v1044, %v1044
  %v1245 = vmul.f32 %v1045, %v1045
  %v1246 = vmul.f32 %v1046, %v1046
  %v1247 = vmul.f32 %v1047, %v1047
  %v1248 = vmul.f32 %v1048, %v1048
  %v1249 = vmul.f32 %v1049, %v1049
  %v1250 = vmul.f32 %v1050, %v1050
  %v1251 = vmul.f32 %v1051, %v1051
  %v1252 = vmul.f32 %v1052, %v1052
  %v1253 = vmul.f32 %v1053, %v1053
  %v1254 = vmul.f32 %v1054, %v1054
  %v1255 = vmul.f32 %v1055, %v1055
  %v1256 = vmul.f32 %v1056, %v1056
  %v1257 = vmul.f32 %v1057, %v1057
  %v1258 = vmul.f32 %v1058, %v1058
  %v1259 = vmul.f32 %v1059, %v1059
  %v1260 = vmul.f32 %v1060, %v1060
  %v1261 = vmul.f32 %v1061, %v1061
  %v1262 = vmul.f32 %v1062, %v1062
  %v1263 = vmul.f32 %v1063, %v1063
  %v1264 = vmul.f32 %v1064, %v1064
  %v1265 = vmul.f32 %v1065, %v1065
  %v1266 = vmul.f32 %v1066, %v1066
  %v1267 = vmul.f32 %v1067, %v1067
  %v1268 = vmul.f32 %v1068, %v1068
  %v1269 = vmul.f32 %v1069, %v1069
  %v1270 = vmul.f32 %v1070, %v1070
  %v1271 = vmul.f32 %v1071, %v1071
  %v1272 = vmul.f32 %v1072, %v1072
  %v1273 = vmul.f32 %v1073, %v1073
  %v1274 = vmul.f32 %v1074, %v1074
  %v1275 = vmul.f32 %v1075, %v1075
  %v1276 = vmul.f32 %v1076, %v1076
  %v1277 = vmul.f32 %v1077, %v1077
  %v1278 = vmul.f32 %v1078, %v1078
  %v1279 = vmul.f32 %v1079, %v1079
  %v1280 = vmul.f32 %v1080, %v1080
  %v1281 = vmul.f32 %v1081, %v1081
  %v1282 = vmul.f32 %v1082, %v1082
  %v1283 = vmul.f32 %v1083, %v1083
  %v1284 = vmul.f32 %v1084, %v1084
  %v1285 = vmul.f32 %v1085, %v1085
  %v1286 = vmul.f32 %v1086, %v1086
  %v1287 = vmul.f32 %v1087, %v1087
  %v1288 = vmul.f32 %v1088, %v1088
  %v1289 = vmul.f32 %v1089, %v1089
  %v1290 = vmul.f32 %v1090, %v1090
  %v1291 = vmul.f32 %v1091, %v1091
  %v1292 = vmul.f32 %v1092, %v1092
  %v1293 = vmul.f32 %v1093, %v1093
  %v1294 = vmul.f32 %v1094, %v1094
  %v1295 = vmul.f32 %v1095, %v1095
  %v1296 = vmul.f32 %v1096, %v1096
  %v1297 = vmul.f32 %v1097, %v1097
  %v1298 = vmul.f32 %v1098, %v1098
  %v1299 = vmul.f32 %v1099, %v1099
  %v1300 = vmul.f32 %v1100, %v1100
  %v1301 = vmul.f32 %v1101, %v1101
  %v1302 = vmul.f32 %v1102, %v1102
  %v1303 = vmul.f32 %v1103, %v1103
  %v1304 = vsel %vm1104, %v1240, 0.0
  %v1305 = vsel %vm1104, %v1241, 0.0
  %v1306 = vadd.f32 %v1304, %v1305
  %v1307 = vsel %vm1104, %v1242, 0.0
  %v1308 = vadd.f32 %v1306, %v1307
  %v1309 = vsel %vm1104, %v1243, 0.0
  %v1310 = vadd.f32 %v1308, %v1309
  %v1311 = vsel %vm1104, %v1244, 0.0
  %v1312 = vadd.f32 %v1310, %v1311
  %v1313 = vsel %vm1104, %v1245, 0.0
  %v1314 = vadd.f32 %v1312, %v1313
  %v1315 = vsel %vm1104, %v1246, 0.0
  %v1316 = vadd.f32 %v1314, %v1315
  %v1317 = vsel %vm1104, %v1247, 0.0
  %v1318 = vadd.f32 %v1316, %v1317
  %v1319 = vsel %vm1104, %v1248, 0.0
  %v1320 = vadd.f32 %v1318, %v1319
  %v1321 = vsel %vm1104, %v1249, 0.0
  %v1322 = vadd.f32 %v1320, %v1321
  %v1323 = vsel %vm1104, %v1250, 0.0
  %v1324 = vadd.f32 %v1322, %v1323
  %v1325 = vsel %vm1104, %v1251, 0.0
  %v1326 = vadd.f32 %v1324, %v1325
  %v1327 = vsel %vm1104, %v1252, 0.0
  %v1328 = vadd.f32 %v1326, %v1327
  %v1329 = vsel %vm1104, %v1253, 0.0
  %v1330 = vadd.f32 %v1328, %v1329
  %v1331 = vsel %vm1104, %v1254, 0.0
  %v1332 = vadd.f32 %v1330, %v1331
  %v1333 = vsel %vm1104, %v1255, 0.0
  %v1334 = vadd.f32 %v1332, %v1333
  %v1335 = vsel %vm1104, %v1256, 0.0
  %v1336 = vadd.f32 %v1334, %v1335
  %v1337 = vsel %vm1104, %v1257, 0.0
  %v1338 = vadd.f32 %v1336, %v1337
  %v1339 = vsel %vm1104, %v1258, 0.0
  %v1340 = vadd.f32 %v1338, %v1339
  %v1341 = vsel %vm1104, %v1259, 0.0
  %v1342 = vadd.f32 %v1340, %v1341
  %v1343 = vsel %vm1104, %v1260, 0.0
  %v1344 = vadd.f32 %v1342, %v1343
  %v1345 = vsel %vm1104, %v1261, 0.0
  %v1346 = vadd.f32 %v1344, %v1345
  %v1347 = vsel %vm1104, %v1262, 0.0
  %v1348 = vadd.f32 %v1346, %v1347
  %v1349 = vsel %vm1104, %v1263, 0.0
  %v1350 = vadd.f32 %v1348, %v1349
  %v1351 = vsel %vm1104, %v1264, 0.0
  %v1352 = vadd.f32 %v1350, %v1351
  %v1353 = vsel %vm1104, %v1265, 0.0
  %v1354 = vadd.f32 %v1352, %v1353
  %v1355 = vsel %vm1104, %v1266, 0.0
  %v1356 = vadd.f32 %v1354, %v1355
  %v1357 = vsel %vm1104, %v1267, 0.0
  %v1358 = vadd.f32 %v1356, %v1357
  %v1359 = vsel %vm1104, %v1268, 0.0
  %v1360 = vadd.f32 %v1358, %v1359
  %v1361 = vsel %vm1104, %v1269, 0.0
  %v1362 = vadd.f32 %v1360, %v1361
  %v1363 = vsel %vm1104, %v1270, 0.0
  %v1364 = vadd.f32 %v1362, %v1363
  %v1365 = vsel %vm1104, %v1271, 0.0
  %v1366 = vadd.f32 %v1364, %v1365
  %v1367 = vsel %vm1104, %v1272, 0.0
  %v1368 = vadd.f32 %v1366, %v1367
  %v1369 = vsel %vm1104, %v1273, 0.0
  %v1370 = vadd.f32 %v1368, %v1369
  %v1371 = vsel %vm1104, %v1274, 0.0
  %v1372 = vadd.f32 %v1370, %v1371
  %v1373 = vsel %vm1104, %v1275, 0.0
  %v1374 = vadd.f32 %v1372, %v1373
  %v1375 = vsel %vm1104, %v1276, 0.0
  %v1376 = vadd.f32 %v1374, %v1375
  %v1377 = vsel %vm1104, %v1277, 0.0
  %v1378 = vadd.f32 %v1376, %v1377
  %v1379 = vsel %vm1104, %v1278, 0.0
  %v1380 = vadd.f32 %v1378, %v1379
  %v1381 = vsel %vm1104, %v1279, 0.0
  %v1382 = vadd.f32 %v1380, %v1381
  %v1383 = vsel %vm1104, %v1280, 0.0
  %v1384 = vadd.f32 %v1382, %v1383
  %v1385 = vsel %vm1104, %v1281, 0.0
  %v1386 = vadd.f32 %v1384, %v1385
  %v1387 = vsel %vm1104, %v1282, 0.0
  %v1388 = vadd.f32 %v1386, %v1387
  %v1389 = vsel %vm1104, %v1283, 0.0
  %v1390 = vadd.f32 %v1388, %v1389
  %v1391 = vsel %vm1104, %v1284, 0.0
  %v1392 = vadd.f32 %v1390, %v1391
  %v1393 = vsel %vm1104, %v1285, 0.0
  %v1394 = vadd.f32 %v1392, %v1393
  %v1395 = vsel %vm1104, %v1286, 0.0
  %v1396 = vadd.f32 %v1394, %v1395
  %v1397 = vsel %vm1104, %v1287, 0.0
  %v1398 = vadd.f32 %v1396, %v1397
  %v1399 = vsel %vm1104, %v1288, 0.0
  %v1400 = vadd.f32 %v1398, %v1399
  %v1401 = vsel %vm1104, %v1289, 0.0
  %v1402 = vadd.f32 %v1400, %v1401
  %v1403 = vsel %vm1104, %v1290, 0.0
  %v1404 = vadd.f32 %v1402, %v1403
  %v1405 = vsel %vm1104, %v1291, 0.0
  %v1406 = vadd.f32 %v1404, %v1405
  %v1407 = vsel %vm1104, %v1292, 0.0
  %v1408 = vadd.f32 %v1406, %v1407
  %v1409 = vsel %vm1104, %v1293, 0.0
  %v1410 = vadd.f32 %v1408, %v1409
  %v1411 = vsel %vm1104, %v1294, 0.0
  %v1412 = vadd.f32 %v1410, %v1411
  %v1413 = vsel %vm1104, %v1295, 0.0
  %v1414 = vadd.f32 %v1412, %v1413
  %v1415 = vsel %vm1104, %v1296, 0.0
  %v1416 = vadd.f32 %v1414, %v1415
  %v1417 = vsel %vm1104, %v1297, 0.0
  %v1418 = vadd.f32 %v1416, %v1417
  %v1419 = vsel %vm1104, %v1298, 0.0
  %v1420 = vadd.f32 %v1418, %v1419
  %v1421 = vsel %vm1104, %v1299, 0.0
  %v1422 = vadd.f32 %v1420, %v1421
  %v1423 = vsel %vm1104, %v1300, 0.0
  %v1424 = vadd.f32 %v1422, %v1423
  %v1425 = vsel %vm1104, %v1301, 0.0
  %v1426 = vadd.f32 %v1424, %v1425
  %v1427 = vsel %vm1104, %v1302, 0.0
  %v1428 = vadd.f32 %v1426, %v1427
  %v1429 = vsel %vm1104, %v1303, 0.0
  %v1430 = vadd.f32 %v1428, %v1429
  %v1431 = vrot.slane %v1430, 4
  %v1432 = vadd.f32 %v1430, %v1431
  %v1433 = vrot.slane %v1432, 2
  %v1434 = vadd.f32 %v1432, %v1433
  %v1435 = vrot.slane %v1434, 1
  %v1436 = vadd.f32 %v1434, %v1435
  %1437 = vst.msk [vmem:[%s6] sm:$0x1] %vm1238, %v1436
  // Predicated region
  $region18: #{bottleneck_block_forward.4} parent=0 // pred_check
    _
  $region19: #{bottleneck_block_forward.4} parent=0 // pred_check_branch
    %1439 = sbr.rel (0) target = $region21
  $region20: #{bottleneck_block_forward.4} parent=0 // pred_region
    _
  $region21: #{bottleneck_block_forward.4} parent=0 // pred_fallthru
    _
  // Predicated region
  $region22: #{bottleneck_block_forward.4} parent=0 // pred_check
    _
  $region23: #{bottleneck_block_forward.4} parent=0 // pred_check_branch
    %1441 = sbr.rel (0) target = $region25
  $region24: #{bottleneck_block_forward.4} parent=0 // pred_region
    _
  $region25: #{bottleneck_block_forward.4} parent=0 // pred_fallthru
    _
  // Predicated region
  $region26: #{bottleneck_block_forward.4} parent=0 // pred_check
    _
  $region27: #{bottleneck_block_forward.4} parent=0 // pred_check_branch
    %1443 = sbr.rel (0) target = $region29
  $region28: #{bottleneck_block_forward.4} parent=0 // pred_region
    _
  $region29: #{bottleneck_block_forward.4} parent=0 // pred_fallthru
    _
  // Predicated region
  $region30: #{bottleneck_block_forward.4} parent=0 // pred_check
    _
  $region31: #{bottleneck_block_forward.4} parent=0 // pred_check_branch
    %1445 = sbr.rel (0) target = $region33
  $region32: #{bottleneck_block_forward.4} parent=0 // pred_region
    _
  $region33: #{bottleneck_block_forward.4} parent=0 // pred_fallthru
    _
  // Predicated region
  $region34: #{bottleneck_block_forward.4} parent=0 // pred_check
    _
  $region35: #{bottleneck_block_forward.4} parent=0 // pred_check_branch
    %1447 = sbr.rel (0) target = $region37
  $region36: #{bottleneck_block_forward.4} parent=0 // pred_region
    _
  $region37: #{bottleneck_block_forward.4} parent=0 // pred_fallthru
    _
  // Predicated region
  $region38: #{bottleneck_block_forward.4} parent=0 // pred_check
    _
  $region39: #{bottleneck_block_forward.4} parent=0 // pred_check_branch
    %1449 = sbr.rel (0) target = $region41
  $region40: #{bottleneck_block_forward.4} parent=0 // pred_region
    _
  $region41: #{bottleneck_block_forward.4} parent=0 // pred_fallthru
    _

// kernel: bottleneck_block_forward.5
$region0: #{bottleneck_block_forward.5}
  #allocation0 [shape = 'u32[]', space=smem, size = 0x4, offset = 0x4, fixed_abs, tag = 'smem constant byte address 0x4 - core index']
  #allocation1 [shape = 'u32[72,128]{1,0:T(1,128)}', space=vmem, size = 0x9000, scoped, tag = 'internal scratch']
  #allocation2 [shape = 'f32[18,16,32]{2,1,0:T(8,128)}', space=vmem, size = 0x24000, scoped, tag = 'scratch operand']
  %s0 = inlined_call_operand.vmem [shape: bf16[2,16,16,32], index: 0, kind: input, shape index: {}]
  %s1 = inlined_call_operand.vmem [shape: f32[2,16,16,4], index: 1, kind: input, shape index: {}]
  %s2 = inlined_call_operand.vmem [shape: f32[1,32], index: 2, kind: input, shape index: {}]
  %s3 = inlined_call_operand.vmem [shape: f32[1,32], index: 3, kind: input, shape index: {}]
  %s4 = inlined_call_operand.vmem [shape: bf16[3,96,8], index: 4, kind: input, shape index: {}]
  %s5 = inlined_call_operand.vmem [shape: f32[2,16,16,12], index: 5, kind: output, shape index: {}]
  %s6 = sld [smem:[#allocation0]]
  $region61: #{bottleneck_block_forward.5} parent=0
    _
  %s8 = ssub.s32 1, %s6
  %s9 = scalar_select 0, %s8, %s6
  loop: start=0, step=1, limit=4
  $region2: #{bottleneck_block_forward.5} parent=0 // loop_pre_header
    _
  $region3: #{bottleneck_block_forward.5} parent=0 // loop_header
    %s11 = sphi 0, %s15
    %p12 = scmp.ge.s32.totalorder %s11, 4
    %s18 = sphi 0, %s30
    %s19 = sphi 0, %s26
    %s20 = sphi 0, %s18
    %s21 = sphi 0, %s19
    %s22 = sphi 0, %s20
    %s23 = sphi 0, %s21
    %s33 = sphi 0, %s35
    %s36 = sphi 0, %s33
    %s37 = sphi 0, %s36
    %s53 = sphi 0, %s37
    %s61 = sphi 0, %s63
    %s64 = sphi 0, %s61
    %s65 = sphi 0, %s64
    %s81 = sphi 0, %s65
    %s85 = sphi 0, %s85
    %s87 = sphi 0, %s85
    %s88 = sphi 0, %s87
    %s102 = sphi 0, %s88
    %s106 = sphi 0, %s106
    %s108 = sphi 0, %s106
    %s109 = sphi 0, %s108
    %s123 = sphi 0, %s109
    %s127 = sphi 0, %s127
    %s129 = sphi 0, %s127
    %s130 = sphi 0, %s129
    %s144 = sphi 0, %s130
    %s152 = sphi 0, %s154
    %s155 = sphi 0, %s152
    %s156 = sphi 0, %s155
    %s172 = sphi 0, %s156
  $region4: #{bottleneck_block_forward.5} parent=0 // loop_header_branch
    %14 = sbr.rel (%p12) target = $region8
  $region5: #{bottleneck_block_forward.5} parent=0 // loop_body
    %s16 = ssub.s32 %s11, 1
    %s17 = ssub.s32 %s11, 2
    %s24 = sadd.s32 1, %s19
    %p25 = scmp.ge.s32.totalorder %s24, 1
    %s26 = scalar_select %p25, 0, %s24
    %s27 = sadd.s32 1, %s18
    %s28 = scalar_select %p25, %s27, %s18
    %p29 = scmp.ge.s32.totalorder %s28, 2
    %s30 = scalar_select %p29, 0, %s28
    %s31 = ssub.s32 %s18, %s30
    %p32 = scmp.eq.s32.totalorder %s31, 0
    %s34 = sadd.s32 %s33, 1
    %s35 = scalar_select %p32, %s33, %s34
    %p38 = pneg %p32
    %p39 = scmp.eq.s32.totalorder %s11, 1
    %p40 = por %p38, %p39
    %p41 = scmp.ne.s32.totalorder %s33, %s36
    %p42 = scmp.eq.s32.totalorder %s11, 0
    %p43 = por %p41, %p42
    %p44 = scmp.ne.s32.totalorder %s33, %s36
    %p45 = scmp.eq.s32.totalorder %s16, 1
    %p46 = por %p44, %p45
    %p47 = scmp.ne.s32.totalorder %s36, %s37
    %p48 = scmp.eq.s32.totalorder %s16, 0
    %p49 = por %p47, %p48
    %p50 = scmp.ne.s32.totalorder %s36, %s37
    %p51 = scmp.eq.s32.totalorder %s17, 1
    %p52 = por %p50, %p51
    %p54 = scmp.ne.s32.totalorder %s37, %s53
    %p55 = scmp.eq.s32.totalorder %s17, 0
    %p56 = por %p54, %p55
    %s57 = ssub.s32 %s18, %s30
    %s58 = ssub.s32 %s19, %s26
    %s59 = sor.u32 %s57, %s58
    %p60 = scmp.eq.s32.totalorder %s59, 0
    %s62 = sadd.s32 %s61, 1
    %s63 = scalar_select %p60, %s61, %s62
    %p66 = pneg %p60
    %p67 = scmp.eq.s32.totalorder %s11, 1
    %p68 = por %p66, %p67
    %p69 = scmp.ne.s32.totalorder %s61, %s64
    %p70 = scmp.eq.s32.totalorder %s11, 0
    %p71 = por %p69, %p70
    %p72 = scmp.ne.s32.totalorder %s61, %s64
    %p73 = scmp.eq.s32.totalorder %s16, 1
    %p74 = por %p72, %p73
    %p75 = scmp.ne.s32.totalorder %s64, %s65
    %p76 = scmp.eq.s32.totalorder %s16, 0
    %p77 = por %p75, %p76
    %p78 = scmp.ne.s32.totalorder %s64, %s65
    %p79 = scmp.eq.s32.totalorder %s17, 1
    %p80 = por %p78, %p79
    %p82 = scmp.ne.s32.totalorder %s65, %s81
    %p83 = scmp.eq.s32.totalorder %s17, 0
    %p84 = por %p82, %p83
    %s86 = sadd.s32 %s85, 1
    %p89 = scmp.eq.s32.totalorder %s11, 1
    %p90 = scmp.ne.s32.totalorder %s85, %s87
    %p91 = scmp.eq.s32.totalorder %s11, 0
    %p92 = por %p90, %p91
    %p93 = scmp.ne.s32.totalorder %s85, %s87
    %p94 = scmp.eq.s32.totalorder %s16, 1
    %p95 = por %p93, %p94
    %p96 = scmp.ne.s32.totalorder %s87, %s88
    %p97 = scmp.eq.s32.totalorder %s16, 0
    %p98 = por %p96, %p97
    %p99 = scmp.ne.s32.totalorder %s87, %s88
    %p100 = scmp.eq.s32.totalorder %s17, 1
    %p101 = por %p99, %p100
    %p103 = scmp.ne.s32.totalorder %s88, %s102
    %p104 = scmp.eq.s32.totalorder %s17, 0
    %p105 = por %p103, %p104
    %s107 = sadd.s32 %s106, 1
    %p110 = scmp.eq.s32.totalorder %s11, 1
    %p111 = scmp.ne.s32.totalorder %s106, %s108
    %p112 = scmp.eq.s32.totalorder %s11, 0
    %p113 = por %p111, %p112
    %p114 = scmp.ne.s32.totalorder %s106, %s108
    %p115 = scmp.eq.s32.totalorder %s16, 1
    %p116 = por %p114, %p115
    %p117 = scmp.ne.s32.totalorder %s108, %s109
    %p118 = scmp.eq.s32.totalorder %s16, 0
    %p119 = por %p117, %p118
    %p120 = scmp.ne.s32.totalorder %s108, %s109
    %p121 = scmp.eq.s32.totalorder %s17, 1
    %p122 = por %p120, %p121
    %p124 = scmp.ne.s32.totalorder %s109, %s123
    %p125 = scmp.eq.s32.totalorder %s17, 0
    %p126 = por %p124, %p125
    %s128 = sadd.s32 %s127, 1
    %p131 = scmp.eq.s32.totalorder %s11, 1
    %p132 = scmp.ne.s32.totalorder %s127, %s129
    %p133 = scmp.eq.s32.totalorder %s11, 0
    %p134 = por %p132, %p133
    %p135 = scmp.ne.s32.totalorder %s127, %s129
    %p136 = scmp.eq.s32.totalorder %s16, 1
    %p137 = por %p135, %p136
    %p138 = scmp.ne.s32.totalorder %s129, %s130
    %p139 = scmp.eq.s32.totalorder %s16, 0
    %p140 = por %p138, %p139
    %p141 = scmp.ne.s32.totalorder %s129, %s130
    %p142 = scmp.eq.s32.totalorder %s17, 1
    %p143 = por %p141, %p142
    %p145 = scmp.ne.s32.totalorder %s130, %s144
    %p146 = scmp.eq.s32.totalorder %s17, 0
    %p147 = por %p145, %p146
    %s148 = ssub.s32 %s18, %s30
    %s149 = ssub.s32 %s19, %s26
    %s150 = sor.u32 %s148, %s149
    %p151 = scmp.eq.s32.totalorder %s150, 0
    %s153 = sadd.s32 %s152, 1
    %s154 = scalar_select %p151, %s152, %s153
    %p157 = pneg %p151
    %p158 = scmp.eq.s32.totalorder %s11, 1
    %p159 = por %p157, %p158
    %p160 = scmp.ne.s32.totalorder %s152, %s155
    %p161 = scmp.eq.s32.totalorder %s11, 0
    %p162 = por %p160, %p161
    %p163 = scmp.ne.s32.totalorder %s152, %s155
    %p164 = scmp.eq.s32.totalorder %s16, 1
    %p165 = por %p163, %p164
    %p166 = scmp.ne.s32.totalorder %s155, %s156
    %p167 = scmp.eq.s32.totalorder %s16, 0
    %p168 = por %p166, %p167
    %p169 = scmp.ne.s32.totalorder %s155, %s156
    %p170 = scmp.eq.s32.totalorder %s17, 1
    %p171 = por %p169, %p170
    %p173 = scmp.ne.s32.totalorder %s156, %s172
    %p174 = scmp.eq.s32.totalorder %s17, 0
    %p175 = por %p173, %p174
    %p176 = scmp.le.s32.totalorder 1, %s11
    %p177 = scmp.lt.s32.totalorder %s11, 3
    %p178 = pnand %p176, %p177
    %p179 = pneg %p178
    // Predicated region
    $region9: #{bottleneck_block_forward.5} parent=5 // pred_check
      _
    $region10: #{bottleneck_block_forward.5} parent=5 // pred_check_branch
      %181 = sbr.rel (%p178) target = $region12
    $region11: #{bottleneck_block_forward.5} parent=5 // pred_region
      %s182 = ssub.s32 %s11, 1
      // Predicated region
      $region13: #{bottleneck_block_forward.5} parent=11 // pred_check
        %p183 = pneg %p98
      $region14: #{bottleneck_block_forward.5} parent=11 // pred_check_branch
        %185 = sbr.rel (%p183) target = $region16
      $region15: #{bottleneck_block_forward.5} parent=11 // pred_region
        _
      $region16: #{bottleneck_block_forward.5} parent=11 // pred_fallthru
        _
      // Predicated region
      $region17: #{bottleneck_block_forward.5} parent=11 // pred_check
        %p186 = pneg %p119
      $region18: #{bottleneck_block_forward.5} parent=11 // pred_check_branch
        %188 = sbr.rel (%p186) target = $region20
      $region19: #{bottleneck_block_forward.5} parent=11 // pred_region
        _
      $region20: #{bottleneck_block_forward.5} parent=11 // pred_fallthru
        _
      // Predicated region
      $region21: #{bottleneck_block_forward.5} parent=11 // pred_check
        %p189 = pneg %p140
      $region22: #{bottleneck_block_forward.5} parent=11 // pred_check_branch
        %191 = sbr.rel (%p189) target = $region24
      $region23: #{bottleneck_block_forward.5} parent=11 // pred_region
        _
      $region24: #{bottleneck_block_forward.5} parent=11 // pred_fallthru
        _
    $region12: #{bottleneck_block_forward.5} parent=5 // pred_fallthru
      _
    %p192 = scmp.lt.s32.totalorder %s11, 2
    // Predicated region
    $region25: #{bottleneck_block_forward.5} parent=5 // pred_check
      %p193 = pneg %p192
    $region26: #{bottleneck_block_forward.5} parent=5 // pred_check_branch
      %195 = sbr.rel (%p193) target = $region28
    $region27: #{bottleneck_block_forward.5} parent=5 // pred_region
      // Predicated region
      $region29: #{bottleneck_block_forward.5} parent=27 // pred_check
        %p196 = pneg %p43
      $region30: #{bottleneck_block_forward.5} parent=27 // pred_check_branch
        %198 = sbr.rel (%p196) target = $region32
      $region31: #{bottleneck_block_forward.5} parent=27 // pred_region
        %p199 = scmp.lt.s32.totalorder %s18, 1
        %s200 = scalar_select %p199, %s18, 1
        %s201 = smul.addr %s200, 32
        %s202 = smul.addr %s201, 4
        %s203 = scalar_lea.vmem %s0, %s202
      $region32: #{bottleneck_block_forward.5} parent=27 // pred_fallthru
        _
      // Predicated region
      $region33: #{bottleneck_block_forward.5} parent=27 // pred_check
        %p204 = pneg %p71
      $region34: #{bottleneck_block_forward.5} parent=27 // pred_check_branch
        %206 = sbr.rel (%p204) target = $region36
      $region35: #{bottleneck_block_forward.5} parent=27 // pred_region
        %s207 = smul.u32 16, %s19
        %p208 = scmp.lt.s32.totalorder %s18, 1
        %s209 = scalar_select %p208, %s18, 1
        %p210 = scmp.lt.s32.totalorder %s207, 15
        %s211 = scalar_select %p210, %s207, 15
        %s212 = smul.addr %s211, 2
        %s213 = smul.addr %s209, 32
        %s214 = sadd.s32 %s212, %s213
        %s215 = smul.addr %s214, 8
        %s216 = scalar_lea.vmem %s1, %s215
        %s217 = smul.u32 16, %s19
      $region36: #{bottleneck_block_forward.5} parent=27 // pred_fallthru
        _
    $region28: #{bottleneck_block_forward.5} parent=5 // pred_fallthru
      _
    %p218 = scmp.le.s32.totalorder 1, %s11
    %p219 = scmp.lt.s32.totalorder %s11, 3
    %p220 = pnand %p218, %p219
    %p221 = pneg %p220
    // Predicated region
    $region37: #{bottleneck_block_forward.5} parent=5 // pred_check
      _
    $region38: #{bottleneck_block_forward.5} parent=5 // pred_check_branch
      %223 = sbr.rel (%p220) target = $region40
    $region39: #{bottleneck_block_forward.5} parent=5 // pred_region
      %s224 = ssub.s32 %s11, 1
      %p225 = scmp.lt.s32.totalorder %s20, 1
      %s226 = scalar_select %p225, %s20, 1
      %s227 = smul.addr %s226, 32
      %s228 = smul.addr %s227, 4
      %s229 = scalar_lea.vmem %s0, %s228
      %p230 = pneg %p49
      %p231 = pneg %p46
      %s232 = smul.u32 16, %s21
      %p233 = scmp.lt.s32.totalorder %s20, 1
      %s234 = scalar_select %p233, %s20, 1
      %p235 = scmp.lt.s32.totalorder %s232, 15
      %s236 = scalar_select %p235, %s232, 15
      %s237 = smul.addr %s236, 2
      %s238 = smul.addr %s234, 32
      %s239 = sadd.s32 %s237, %s238
      %s240 = smul.addr %s239, 8
      %s241 = scalar_lea.vmem %s1, %s240
      %p242 = pneg %p77
      %p243 = pneg %p74
      %p244 = pneg %p98
      %p245 = pneg %p95
      %p246 = pneg %p119
      %p247 = pneg %p116
      %p248 = pneg %p140
      %p249 = pneg %p137
      %p250 = pneg %p168
      %p251 = pneg %p165
      %s252 = smul.u32 16, %s21
      %p253 = scmp.lt.s32.totalorder %s20, 1
      %s254 = scalar_select %p253, %s20, 1
      %p255 = scmp.lt.s32.totalorder %s252, 15
      %s256 = scalar_select %p255, %s252, 15
      %s257 = smul.addr %s256, 2
      %s258 = smul.addr %s254, 32
      %s259 = sadd.s32 %s257, %s258
      %s260 = smul.addr %s259, 8
      %s261 = scalar_lea.vmem %s5, %s260
      %p262 = scmp.lt.s32.totalorder %s20, 1
      %s263 = scalar_select %p262, %s20, 1
      %s264 = smul.addr %s263, 32
      %s265 = smul.addr %s264, 4
      %s266 = scalar_lea.vmem %s0, %s265
      %s267 = smul.u32 16, %s21
      %p268 = scmp.lt.s32.totalorder %s20, 1
      %s269 = scalar_select %p268, %s20, 1
      %p270 = scmp.lt.s32.totalorder %s267, 15
      %s271 = scalar_select %p270, %s267, 15
      %s272 = smul.addr %s271, 2
      %s273 = smul.addr %s269, 32
      %s274 = sadd.s32 %s272, %s273
      %s275 = smul.addr %s274, 8
      %s276 = scalar_lea.vmem %s1, %s275
      %s277 = smul.u32 16, %s21
      %s278 = smul.u32 16, %s21
      %p279 = scmp.lt.s32.totalorder %s20, 1
      %s280 = scalar_select %p279, %s20, 1
      %p281 = scmp.lt.s32.totalorder %s278, 15
      %s282 = scalar_select %p281, %s278, 15
      %s283 = smul.addr %s282, 2
      %s284 = smul.addr %s280, 32
      %s285 = sadd.s32 %s283, %s284
      %s286 = smul.addr %s285, 8
      %s287 = scalar_lea.vmem %s5, %s286
      %s288 = smul.u32 16, %s21
      %s290 = smul.u32 %s21, 16
      %v291 = vld [vmem:[%s2] sm:$0x1]
      %v292 = vld [vmem:[%s3] sm:$0x1]
      %s293 = smul.u32 %s290, 2
      %s294 = smul.addr %s293, 4
      %s295 = scalar_lea.vmem %s266, %s294
      %v296 = vld [vmem:[%s295] sm:$0xf]
      %v297 = vld [vmem:[%s295 + $0x4] sm:$0xf]
      %v298 = vld [vmem:[%s295 + $0x8] sm:$0xf]
      %v299 = vld [vmem:[%s295 + $0xc] sm:$0xf]
      %v300 = vld [vmem:[%s295 + $0x10] sm:$0xf]
      %v301 = vld [vmem:[%s295 + $0x14] sm:$0xf]
      %v302 = vld [vmem:[%s295 + $0x18] sm:$0xf]
      %v303 = vld [vmem:[%s295 + $0x1c] sm:$0xf]
      %v304 = vld [vmem:[%s295 + $0x20] sm:$0xf]
      %v305 = vld [vmem:[%s295 + $0x24] sm:$0xf]
      %v306 = vld [vmem:[%s295 + $0x28] sm:$0xf]
      %v307 = vld [vmem:[%s295 + $0x2c] sm:$0xf]
      %v308 = vld [vmem:[%s295 + $0x30] sm:$0xf]
      %v309 = vld [vmem:[%s295 + $0x34] sm:$0xf]
      %v310 = vld [vmem:[%s295 + $0x38] sm:$0xf]
      %v311 = vld [vmem:[%s295 + $0x3c] sm:$0xf]
      %v312 = vld [vmem:[%s295 + $0x40] sm:$0xf]
      %v313 = vld [vmem:[%s295 + $0x44] sm:$0xf]
      %v314 = vld [vmem:[%s295 + $0x48] sm:$0xf]
      %v315 = vld [vmem:[%s295 + $0x4c] sm:$0xf]
      %v316 = vld [vmem:[%s295 + $0x50] sm:$0xf]
      %v317 = vld [vmem:[%s295 + $0x54] sm:$0xf]
      %v318 = vld [vmem:[%s295 + $0x58] sm:$0xf]
      %v319 = vld [vmem:[%s295 + $0x5c] sm:$0xf]
      %v320 = vld [vmem:[%s295 + $0x60] sm:$0xf]
      %v321 = vld [vmem:[%s295 + $0x64] sm:$0xf]
      %v322 = vld [vmem:[%s295 + $0x68] sm:$0xf]
      %v323 = vld [vmem:[%s295 + $0x6c] sm:$0xf]
      %v324 = vld [vmem:[%s295 + $0x70] sm:$0xf]
      %v325 = vld [vmem:[%s295 + $0x74] sm:$0xf]
      %v326 = vld [vmem:[%s295 + $0x78] sm:$0xf]
      %v327 = vld [vmem:[%s295 + $0x7c] sm:$0xf]
      %v328 = vunpack.c.l.bf16 %v296
      %v329 = vunpack.c.l.bf16 %v297
      %v330 = vunpack.c.l.bf16 %v298
      %v331 = vunpack.c.l.bf16 %v299
      %v332 = vunpack.c.l.bf16 %v300
      %v333 = vunpack.c.l.bf16 %v301
      %v334 = vunpack.c.l.bf16 %v302
      %v335 = vunpack.c.l.bf16 %v303
      %v336 = vunpack.c.l.bf16 %v304
      %v337 = vunpack.c.l.bf16 %v305
      %v338 = vunpack.c.l.bf16 %v306
      %v339 = vunpack.c.l.bf16 %v307
      %v340 = vunpack.c.l.bf16 %v308
      %v341 = vunpack.c.l.bf16 %v309
      %v342 = vunpack.c.l.bf16 %v310
      %v343 = vunpack.c.l.bf16 %v311
      %v344 = vunpack.c.l.bf16 %v312
      %v345 = vunpack.c.l.bf16 %v313
      %v346 = vunpack.c.l.bf16 %v314
      %v347 = vunpack.c.l.bf16 %v315
      %v348 = vunpack.c.l.bf16 %v316
      %v349 = vunpack.c.l.bf16 %v317
      %v350 = vunpack.c.l.bf16 %v318
      %v351 = vunpack.c.l.bf16 %v319
      %v352 = vunpack.c.l.bf16 %v320
      %v353 = vunpack.c.l.bf16 %v321
      %v354 = vunpack.c.l.bf16 %v322
      %v355 = vunpack.c.l.bf16 %v323
      %v356 = vunpack.c.l.bf16 %v324
      %v357 = vunpack.c.l.bf16 %v325
      %v358 = vunpack.c.l.bf16 %v326
      %v359 = vunpack.c.l.bf16 %v327
      %v361 = vperm.slane %v291, 0
      %v363 = vmul.f32 %v328, %v361
      %v364 = vmul.f32 %v329, %v361
      %v365 = vmul.f32 %v330, %v361
      %v366 = vmul.f32 %v331, %v361
      %v367 = vmul.f32 %v332, %v361
      %v368 = vmul.f32 %v333, %v361
      %v369 = vmul.f32 %v334, %v361
      %v370 = vmul.f32 %v335, %v361
      %v371 = vmul.f32 %v336, %v361
      %v372 = vmul.f32 %v337, %v361
      %v373 = vmul.f32 %v338, %v361
      %v374 = vmul.f32 %v339, %v361
      %v375 = vmul.f32 %v340, %v361
      %v376 = vmul.f32 %v341, %v361
      %v377 = vmul.f32 %v342, %v361
      %v378 = vmul.f32 %v343, %v361
      %v379 = vmul.f32 %v344, %v361
      %v380 = vmul.f32 %v345, %v361
      %v381 = vmul.f32 %v346, %v361
      %v382 = vmul.f32 %v347, %v361
      %v383 = vmul.f32 %v348, %v361
      %v384 = vmul.f32 %v349, %v361
      %v385 = vmul.f32 %v350, %v361
      %v386 = vmul.f32 %v351, %v361
      %v387 = vmul.f32 %v352, %v361
      %v388 = vmul.f32 %v353, %v361
      %v389 = vmul.f32 %v354, %v361
      %v390 = vmul.f32 %v355, %v361
      %v391 = vmul.f32 %v356, %v361
      %v392 = vmul.f32 %v357, %v361
      %v393 = vmul.f32 %v358, %v361
      %v394 = vmul.f32 %v359, %v361
      %v396 = vperm.slane %v292, 0
      %v398 = vadd.f32 %v363, %v396
      %v399 = vadd.f32 %v364, %v396
      %v400 = vadd.f32 %v365, %v396
      %v401 = vadd.f32 %v366, %v396
      %v402 = vadd.f32 %v367, %v396
      %v403 = vadd.f32 %v368, %v396
      %v404 = vadd.f32 %v369, %v396
      %v405 = vadd.f32 %v370, %v396
      %v406 = vadd.f32 %v371, %v396
      %v407 = vadd.f32 %v372, %v396
      %v408 = vadd.f32 %v373, %v396
      %v409 = vadd.f32 %v374, %v396
      %v410 = vadd.f32 %v375, %v396
      %v411 = vadd.f32 %v376, %v396
      %v412 = vadd.f32 %v377, %v396
      %v413 = vadd.f32 %v378, %v396
      %v414 = vadd.f32 %v379, %v396
      %v415 = vadd.f32 %v380, %v396
      %v416 = vadd.f32 %v381, %v396
      %v417 = vadd.f32 %v382, %v396
      %v418 = vadd.f32 %v383, %v396
      %v419 = vadd.f32 %v384, %v396
      %v420 = vadd.f32 %v385, %v396
      %v421 = vadd.f32 %v386, %v396
      %v422 = vadd.f32 %v387, %v396
      %v423 = vadd.f32 %v388, %v396
      %v424 = vadd.f32 %v389, %v396
      %v425 = vadd.f32 %v390, %v396
      %v426 = vadd.f32 %v391, %v396
      %v427 = vadd.f32 %v392, %v396
      %v428 = vadd.f32 %v393, %v396
      %v429 = vadd.f32 %v394, %v396
      %v430 = vmax.f32 %v398, 0.0
      %v431 = vmax.f32 %v399, 0.0
      %v432 = vmax.f32 %v400, 0.0
      %v433 = vmax.f32 %v401, 0.0
      %v434 = vmax.f32 %v402, 0.0
      %v435 = vmax.f32 %v403, 0.0
      %v436 = vmax.f32 %v404, 0.0
      %v437 = vmax.f32 %v405, 0.0
      %v438 = vmax.f32 %v406, 0.0
      %v439 = vmax.f32 %v407, 0.0
      %v440 = vmax.f32 %v408, 0.0
      %v441 = vmax.f32 %v409, 0.0
      %v442 = vmax.f32 %v410, 0.0
      %v443 = vmax.f32 %v411, 0.0
      %v444 = vmax.f32 %v412, 0.0
      %v445 = vmax.f32 %v413, 0.0
      %v446 = vmax.f32 %v414, 0.0
      %v447 = vmax.f32 %v415, 0.0
      %v448 = vmax.f32 %v416, 0.0
      %v449 = vmax.f32 %v417, 0.0
      %v450 = vmax.f32 %v418, 0.0
      %v451 = vmax.f32 %v419, 0.0
      %v452 = vmax.f32 %v420, 0.0
      %v453 = vmax.f32 %v421, 0.0
      %v454 = vmax.f32 %v422, 0.0
      %v455 = vmax.f32 %v423, 0.0
      %v456 = vmax.f32 %v424, 0.0
      %v457 = vmax.f32 %v425, 0.0
      %v458 = vmax.f32 %v426, 0.0
      %v459 = vmax.f32 %v427, 0.0
      %v460 = vmax.f32 %v428, 0.0
      %v461 = vmax.f32 %v429, 0.0
      %s462 = scalar_lea.vmem [#allocation2], 16
      %vm463 = vcmask 261120
      %464 = vst.msk [vmem:[%s462] sm:$0xff] %vm463, %v430
      %465 = vst.msk [vmem:[%s462 + $0x8] sm:$0xff] %vm463, %v431
      %466 = vst.msk [vmem:[%s462 + $0x10] sm:$0xff] %vm463, %v432
      %467 = vst.msk [vmem:[%s462 + $0x18] sm:$0xff] %vm463, %v433
      %468 = vst.msk [vmem:[%s462 + $0x20] sm:$0xff] %vm463, %v434
      %469 = vst.msk [vmem:[%s462 + $0x28] sm:$0xff] %vm463, %v435
      %470 = vst.msk [vmem:[%s462 + $0x30] sm:$0xff] %vm463, %v436
      %471 = vst.msk [vmem:[%s462 + $0x38] sm:$0xff] %vm463, %v437
      %472 = vst.msk [vmem:[%s462 + $0x40] sm:$0xff] %vm463, %v438
      %473 = vst.msk [vmem:[%s462 + $0x48] sm:$0xff] %vm463, %v439
      %474 = vst.msk [vmem:[%s462 + $0x50] sm:$0xff] %vm463, %v440
      %475 = vst.msk [vmem:[%s462 + $0x58] sm:$0xff] %vm463, %v441
      %476 = vst.msk [vmem:[%s462 + $0x60] sm:$0xff] %vm463, %v442
      %477 = vst.msk [vmem:[%s462 + $0x68] sm:$0xff] %vm463, %v443
      %478 = vst.msk [vmem:[%s462 + $0x70] sm:$0xff] %vm463, %v444
      %479 = vst.msk [vmem:[%s462 + $0x78] sm:$0xff] %vm463, %v445
      %480 = vst.msk [vmem:[%s462 + $0x80] sm:$0xff] %vm463, %v446
      %481 = vst.msk [vmem:[%s462 + $0x88] sm:$0xff] %vm463, %v447
      %482 = vst.msk [vmem:[%s462 + $0x90] sm:$0xff] %vm463, %v448
      %483 = vst.msk [vmem:[%s462 + $0x98] sm:$0xff] %vm463, %v449
      %484 = vst.msk [vmem:[%s462 + $0xa0] sm:$0xff] %vm463, %v450
      %485 = vst.msk [vmem:[%s462 + $0xa8] sm:$0xff] %vm463, %v451
      %486 = vst.msk [vmem:[%s462 + $0xb0] sm:$0xff] %vm463, %v452
      %487 = vst.msk [vmem:[%s462 + $0xb8] sm:$0xff] %vm463, %v453
      %488 = vst.msk [vmem:[%s462 + $0xc0] sm:$0xff] %vm463, %v454
      %489 = vst.msk [vmem:[%s462 + $0xc8] sm:$0xff] %vm463, %v455
      %490 = vst.msk [vmem:[%s462 + $0xd0] sm:$0xff] %vm463, %v456
      %491 = vst.msk [vmem:[%s462 + $0xd8] sm:$0xff] %vm463, %v457
      %492 = vst.msk [vmem:[%s462 + $0xe0] sm:$0xff] %vm463, %v458
      %493 = vst.msk [vmem:[%s462 + $0xe8] sm:$0xff] %vm463, %v459
      %494 = vst.msk [vmem:[%s462 + $0xf0] sm:$0xff] %vm463, %v460
      %495 = vst.msk [vmem:[%s462 + $0xf8] sm:$0xff] %vm463, %v461
      %496 = vst.msk [vmem:[#allocation2] sm:$0xff] %vm463, 0.0
      %497 = vst.msk [vmem:[#allocation2 + $0x8] sm:$0xff] %vm463, 0.0
      %s498 = scalar_lea.vmem [#allocation2], 272
      %499 = vst.msk [vmem:[%s498] sm:$0xff] %vm463, 0.0
      %500 = vst.msk [vmem:[%s498 + $0x8] sm:$0xff] %vm463, 0.0
      %p501 = scmp.gt.s32.totalorder %s21, 0
      // Predicated region
      $region41: #{bottleneck_block_forward.5} parent=39 // pred_check
        %p502 = pneg %p501
      $region42: #{bottleneck_block_forward.5} parent=39 // pred_check_branch
        %504 = sbr.rel (%p502) target = $region44
      $region43: #{bottleneck_block_forward.5} parent=39 // pred_region
        %s505 = ssub.s32 %s290, 1
        %s506 = smul.u32 %s505, 2
        %s507 = smul.addr %s506, 4
        %s508 = scalar_lea.vmem %s266, %s507
        %v509 = vld [vmem:[%s508] sm:$0xf]
        %v510 = vld [vmem:[%s508 + $0x4] sm:$0xf]
        %v511 = vunpack.c.l.bf16 %v509
        %v512 = vunpack.c.l.bf16 %v510
        %v513 = vmul.f32 %v511, %v361
        %v514 = vmul.f32 %v512, %v361
        %v515 = vadd.f32 %v513, %v396
        %v516 = vadd.f32 %v514, %v396
        %v517 = vmax.f32 %v515, 0.0
        %v518 = vmax.f32 %v516, 0.0
        %519 = vst.msk [vmem:[#allocation2] sm:$0xff] %vm463, %v517
        %520 = vst.msk [vmem:[#allocation2 + $0x8] sm:$0xff] %vm463, %v518
      $region44: #{bottleneck_block_forward.5} parent=39 // pred_fallthru
        _
      %p521 = scmp.lt.s32.totalorder %s21, 0
      // Predicated region
      $region45: #{bottleneck_block_forward.5} parent=39 // pred_check
        %p522 = pneg %p521
      $region46: #{bottleneck_block_forward.5} parent=39 // pred_check_branch
        %524 = sbr.rel (%p522) target = $region48
      $region47: #{bottleneck_block_forward.5} parent=39 // pred_region
        %s525 = sadd.s32 %s290, 16
        %s526 = smul.u32 %s525, 2
        %s527 = smul.addr %s526, 4
        %s528 = scalar_lea.vmem %s266, %s527
        %v529 = vld [vmem:[%s528] sm:$0xf]
        %v530 = vld [vmem:[%s528 + $0x4] sm:$0xf]
        %v531 = vunpack.c.l.bf16 %v529
        %v532 = vunpack.c.l.bf16 %v530
        %v533 = vmul.f32 %v531, %v361
        %v534 = vmul.f32 %v532, %v361
        %v535 = vadd.f32 %v533, %v396
        %v536 = vadd.f32 %v534, %v396
        %v537 = vmax.f32 %v535, 0.0
        %v538 = vmax.f32 %v536, 0.0
        %539 = vst.msk [vmem:[%s498] sm:$0xff] %vm463, %v537
        %540 = vst.msk [vmem:[%s498 + $0x8] sm:$0xff] %vm463, %v538
      $region48: #{bottleneck_block_forward.5} parent=39 // pred_fallthru
        _
      %v541 = vlaneseq
      %v542 = vshrl.u32 %v541, 7
      %v543 = vadd.s32 %v542, 8
      %v544 = vld [vmem:[#allocation2] sm:$0xff]
      %v545 = vld [vmem:[#allocation2 + $0x8] sm:$0xff]
      %v546 = vld [vmem:[#allocation2 + $0x10] sm:$0xff]
      %v547 = vld [vmem:[#allocation2 + $0x18] sm:$0xff]
      %v548 = vld [vmem:[#allocation2 + $0x20] sm:$0xff]
      %v549 = vld [vmem:[#allocation2 + $0x28] sm:$0xff]
      %v550 = vld [vmem:[#allocation2 + $0x30] sm:$0xff]
      %v551 = vld [vmem:[#allocation2 + $0x38] sm:$0xff]
      %v552 = vld [vmem:[#allocation2 + $0x40] sm:$0xff]
      %v553 = vld [vmem:[#allocation2 + $0x48] sm:$0xff]
      %v554 = vld [vmem:[#allocation2 + $0x50] sm:$0xff]
      %v555 = vld [vmem:[#allocation2 + $0x58] sm:$0xff]
      %v556 = vld [vmem:[#allocation2 + $0x60] sm:$0xff]
      %v557 = vld [vmem:[#allocation2 + $0x68] sm:$0xff]
      %v558 = vld [vmem:[#allocation2 + $0x70] sm:$0xff]
      %v559 = vld [vmem:[#allocation2 + $0x78] sm:$0xff]
      %v560 = vld [vmem:[#allocation2 + $0x80] sm:$0xff]
      %v561 = vld [vmem:[#allocation2 + $0x88] sm:$0xff]
      %v562 = vld [vmem:[#allocation2 + $0x90] sm:$0xff]
      %v563 = vld [vmem:[#allocation2 + $0x98] sm:$0xff]
      %v564 = vld [vmem:[#allocation2 + $0xa0] sm:$0xff]
      %v565 = vld [vmem:[#allocation2 + $0xa8] sm:$0xff]
      %v566 = vld [vmem:[#allocation2 + $0xb0] sm:$0xff]
      %v567 = vld [vmem:[#allocation2 + $0xb8] sm:$0xff]
      %v568 = vld [vmem:[#allocation2 + $0xc0] sm:$0xff]
      %v569 = vld [vmem:[#allocation2 + $0xc8] sm:$0xff]
      %v570 = vld [vmem:[#allocation2 + $0xd0] sm:$0xff]
      %v571 = vld [vmem:[#allocation2 + $0xd8] sm:$0xff]
      %v572 = vld [vmem:[#allocation2 + $0xe0] sm:$0xff]
      %v573 = vld [vmem:[#allocation2 + $0xe8] sm:$0xff]
      %v574 = vld [vmem:[#allocation2 + $0xf0] sm:$0xff]
      %v575 = vld [vmem:[#allocation2 + $0xf8] sm:$0xff]
      %vm576 = vcmp.ge.s32.totalorder %v542, 1
      %vm577 = vcmp.ge.s32.totalorder %v543, 1
      %v578 = vrot.slane %v544, 7
      %v579 = vrot.slane %v546, 7
      %v580 = vrot.slane %v548, 7
      %v581 = vrot.slane %v550, 7
      %v582 = vrot.slane %v552, 7
      %v583 = vrot.slane %v554, 7
      %v584 = vrot.slane %v556, 7
      %v585 = vrot.slane %v558, 7
      %v586 = vrot.slane %v560, 7
      %v587 = vrot.slane %v562, 7
      %v588 = vrot.slane %v564, 7
      %v589 = vrot.slane %v566, 7
      %v590 = vrot.slane %v568, 7
      %v591 = vrot.slane %v570, 7
      %v592 = vrot.slane %v572, 7
      %v593 = vrot.slane %v574, 7
      %v594 = vrot.slane %v545, 7
      %v595 = vrot.slane %v547, 7
      %v596 = vrot.slane %v549, 7
      %v597 = vrot.slane %v551, 7
      %v598 = vrot.slane %v553, 7
      %v599 = vrot.slane %v555, 7
      %v600 = vrot.slane %v557, 7
      %v601 = vrot.slane %v559, 7
      %v602 = vrot.slane %v561, 7
      %v603 = vrot.slane %v563, 7
      %v604 = vrot.slane %v565, 7
      %v605 = vrot.slane %v567, 7
      %v606 = vrot.slane %v569, 7
      %v607 = vrot.slane %v571, 7
      %v608 = vrot.slane %v573, 7
      %v609 = vrot.slane %v575, 7
      %vm610 = vcmp.lt.s32.totalorder %v542, 1
      %v611 = vsel %vm610, %v578, %v594
      %v612 = vsel %vm610, %v579, %v595
      %v613 = vsel %vm610, %v580, %v596
      %v614 = vsel %vm610, %v581, %v597
      %v615 = vsel %vm610, %v582, %v598
      %v616 = vsel %vm610, %v583, %v599
      %v617 = vsel %vm610, %v584, %v600
      %v618 = vsel %vm610, %v585, %v601
      %v619 = vsel %vm610, %v586, %v602
      %v620 = vsel %vm610, %v587, %v603
      %v621 = vsel %vm610, %v588, %v604
      %v622 = vsel %vm610, %v589, %v605
      %v623 = vsel %vm610, %v590, %v606
      %v624 = vsel %vm610, %v591, %v607
      %v625 = vsel %vm610, %v592, %v608
      %v626 = vsel %vm610, %v593, %v609
      %v627 = vsel %vm610, %v594, %v578
      %v628 = vsel %vm610, %v595, %v579
      %v629 = vsel %vm610, %v596, %v580
      %v630 = vsel %vm610, %v597, %v581
      %v631 = vsel %vm610, %v598, %v582
      %v632 = vsel %vm610, %v599, %v583
      %v633 = vsel %vm610, %v600, %v584
      %v634 = vsel %vm610, %v601, %v585
      %v635 = vsel %vm610, %v602, %v586
      %v636 = vsel %vm610, %v603, %v587
      %v637 = vsel %vm610, %v604, %v588
      %v638 = vsel %vm610, %v605, %v589
      %v639 = vsel %vm610, %v606, %v590
      %v640 = vsel %vm610, %v607, %v591
      %v641 = vsel %vm610, %v608, %v592
      %v642 = vsel %vm610, %v609, %v593
      %v643 = vsel %vm576, %v627, 0.0
      %v644 = vsel %vm577, %v611, 0.0
      %v645 = vsel %vm576, %v628, 0.0
      %v646 = vsel %vm577, %v612, 0.0
      %v647 = vsel %vm576, %v629, 0.0
      %v648 = vsel %vm577, %v613, 0.0
      %v649 = vsel %vm576, %v630, 0.0
      %v650 = vsel %vm577, %v614, 0.0
      %v651 = vsel %vm576, %v631, 0.0
      %v652 = vsel %vm577, %v615, 0.0
      %v653 = vsel %vm576, %v632, 0.0
      %v654 = vsel %vm577, %v616, 0.0
      %v655 = vsel %vm576, %v633, 0.0
      %v656 = vsel %vm577, %v617, 0.0
      %v657 = vsel %vm576, %v634, 0.0
      %v658 = vsel %vm577, %v618, 0.0
      %v659 = vsel %vm576, %v635, 0.0
      %v660 = vsel %vm577, %v619, 0.0
      %v661 = vsel %vm576, %v636, 0.0
      %v662 = vsel %vm577, %v620, 0.0
      %v663 = vsel %vm576, %v637, 0.0
      %v664 = vsel %vm577, %v621, 0.0
      %v665 = vsel %vm576, %v638, 0.0
      %v666 = vsel %vm577, %v622, 0.0
      %v667 = vsel %vm576, %v639, 0.0
      %v668 = vsel %vm577, %v623, 0.0
      %v669 = vsel %vm576, %v640, 0.0
      %v670 = vsel %vm577, %v624, 0.0
      %v671 = vsel %vm576, %v641, 0.0
      %v672 = vsel %vm577, %v625, 0.0
      %v673 = vsel %vm576, %v642, 0.0
      %v674 = vsel %vm577, %v626, 0.0
      %vm675 = vcmp.le.s32.totalorder %v542, 14
      %vm676 = vcmp.le.s32.totalorder %v543, 14
      %v677 = vrot.slane %v544, 1
      %v678 = vrot.slane %v546, 1
      %v679 = vrot.slane %v548, 1
      %v680 = vrot.slane %v550, 1
      %v681 = vrot.slane %v552, 1
      %v682 = vrot.slane %v554, 1
      %v683 = vrot.slane %v556, 1
      %v684 = vrot.slane %v558, 1
      %v685 = vrot.slane %v560, 1
      %v686 = vrot.slane %v562, 1
      %v687 = vrot.slane %v564, 1
      %v688 = vrot.slane %v566, 1
      %v689 = vrot.slane %v568, 1
      %v690 = vrot.slane %v570, 1
      %v691 = vrot.slane %v572, 1
      %v692 = vrot.slane %v574, 1
      %v693 = vrot.slane %v545, 1
      %v694 = vrot.slane %v547, 1
      %v695 = vrot.slane %v549, 1
      %v696 = vrot.slane %v551, 1
      %v697 = vrot.slane %v553, 1
      %v698 = vrot.slane %v555, 1
      %v699 = vrot.slane %v557, 1
      %v700 = vrot.slane %v559, 1
      %v701 = vrot.slane %v561, 1
      %v702 = vrot.slane %v563, 1
      %v703 = vrot.slane %v565, 1
      %v704 = vrot.slane %v567, 1
      %v705 = vrot.slane %v569, 1
      %v706 = vrot.slane %v571, 1
      %v707 = vrot.slane %v573, 1
      %v708 = vrot.slane %v575, 1
      %vm709 = vcmp.lt.s32.totalorder %v542, 7
      %v710 = vsel %vm709, %v677, %v693
      %v711 = vsel %vm709, %v678, %v694
      %v712 = vsel %vm709, %v679, %v695
      %v713 = vsel %vm709, %v680, %v696
      %v714 = vsel %vm709, %v681, %v697
      %v715 = vsel %vm709, %v682, %v698
      %v716 = vsel %vm709, %v683, %v699
      %v717 = vsel %vm709, %v684, %v700
      %v718 = vsel %vm709, %v685, %v701
      %v719 = vsel %vm709, %v686, %v702
      %v720 = vsel %vm709, %v687, %v703
      %v721 = vsel %vm709, %v688, %v704
      %v722 = vsel %vm709, %v689, %v705
      %v723 = vsel %vm709, %v690, %v706
      %v724 = vsel %vm709, %v691, %v707
      %v725 = vsel %vm709, %v692, %v708
      %v726 = vsel %vm709, %v693, %v677
      %v727 = vsel %vm709, %v694, %v678
      %v728 = vsel %vm709, %v695, %v679
      %v729 = vsel %vm709, %v696, %v680
      %v730 = vsel %vm709, %v697, %v681
      %v731 = vsel %vm709, %v698, %v682
      %v732 = vsel %vm709, %v699, %v683
      %v733 = vsel %vm709, %v700, %v684
      %v734 = vsel %vm709, %v701, %v685
      %v735 = vsel %vm709, %v702, %v686
      %v736 = vsel %vm709, %v703, %v687
      %v737 = vsel %vm709, %v704, %v688
      %v738 = vsel %vm709, %v705, %v689
      %v739 = vsel %vm709, %v706, %v690
      %v740 = vsel %vm709, %v707, %v691
      %v741 = vsel %vm709, %v708, %v692
      %v742 = vsel %vm675, %v710, 0.0
      %v743 = vsel %vm676, %v726, 0.0
      %v744 = vsel %vm675, %v711, 0.0
      %v745 = vsel %vm676, %v727, 0.0
      %v746 = vsel %vm675, %v712, 0.0
      %v747 = vsel %vm676, %v728, 0.0
      %v748 = vsel %vm675, %v713, 0.0
      %v749 = vsel %vm676, %v729, 0.0
      %v750 = vsel %vm675, %v714, 0.0
      %v751 = vsel %vm676, %v730, 0.0
      %v752 = vsel %vm675, %v715, 0.0
      %v753 = vsel %vm676, %v731, 0.0
      %v754 = vsel %vm675, %v716, 0.0
      %v755 = vsel %vm676, %v732, 0.0
      %v756 = vsel %vm675, %v717, 0.0
      %v757 = vsel %vm676, %v733, 0.0
      %v758 = vsel %vm675, %v718, 0.0
      %v759 = vsel %vm676, %v734, 0.0
      %v760 = vsel %vm675, %v719, 0.0
      %v761 = vsel %vm676, %v735, 0.0
      %v762 = vsel %vm675, %v720, 0.0
      %v763 = vsel %vm676, %v736, 0.0
      %v764 = vsel %vm675, %v721, 0.0
      %v765 = vsel %vm676, %v737, 0.0
      %v766 = vsel %vm675, %v722, 0.0
      %v767 = vsel %vm676, %v738, 0.0
      %v768 = vsel %vm675, %v723, 0.0
      %v769 = vsel %vm676, %v739, 0.0
      %v770 = vsel %vm675, %v724, 0.0
      %v771 = vsel %vm676, %v740, 0.0
      %v772 = vsel %vm675, %v725, 0.0
      %v773 = vsel %vm676, %v741, 0.0
      %806 = vrot.lane.b32.xlu0 %v544, 32
      %v807 = vpop.permute.xlu0 %806
      %808 = vrot.lane.b32.xlu0 %v545, 32
      %v809 = vpop.permute.xlu0 %808
      %810 = vrot.lane.b32.xlu0 %v546, 32
      %v811 = vpop.permute.xlu0 %810
      %812 = vrot.lane.b32.xlu0 %v547, 32
      %v813 = vpop.permute.xlu0 %812
      %814 = vrot.lane.b32.xlu0 %v548, 32
      %v815 = vpop.permute.xlu0 %814
      %816 = vrot.lane.b32.xlu0 %v549, 32
      %v817 = vpop.permute.xlu0 %816
      %818 = vrot.lane.b32.xlu0 %v550, 32
      %v819 = vpop.permute.xlu0 %818
      %820 = vrot.lane.b32.xlu0 %v551, 32
      %v821 = vpop.permute.xlu0 %820
      %822 = vrot.lane.b32.xlu0 %v552, 32
      %v823 = vpop.permute.xlu0 %822
      %824 = vrot.lane.b32.xlu0 %v553, 32
      %v825 = vpop.permute.xlu0 %824
      %826 = vrot.lane.b32.xlu0 %v554, 32
      %v827 = vpop.permute.xlu0 %826
      %828 = vrot.lane.b32.xlu0 %v555, 32
      %v829 = vpop.permute.xlu0 %828
      %830 = vrot.lane.b32.xlu0 %v556, 32
      %v831 = vpop.permute.xlu0 %830
      %832 = vrot.lane.b32.xlu0 %v557, 32
      %v833 = vpop.permute.xlu0 %832
      %834 = vrot.lane.b32.xlu0 %v558, 32
      %v835 = vpop.permute.xlu0 %834
      %836 = vrot.lane.b32.xlu0 %v559, 32
      %v837 = vpop.permute.xlu0 %836
      %838 = vrot.lane.b32.xlu0 %v560, 32
      %v839 = vpop.permute.xlu0 %838
      %840 = vrot.lane.b32.xlu0 %v561, 32
      %v841 = vpop.permute.xlu0 %840
      %842 = vrot.lane.b32.xlu0 %v562, 32
      %v843 = vpop.permute.xlu0 %842
      %844 = vrot.lane.b32.xlu0 %v563, 32
      %v845 = vpop.permute.xlu0 %844
      %846 = vrot.lane.b32.xlu0 %v564, 32
      %v847 = vpop.permute.xlu0 %846
      %848 = vrot.lane.b32.xlu0 %v565, 32
      %v849 = vpop.permute.xlu0 %848
      %850 = vrot.lane.b32.xlu0 %v566, 32
      %v851 = vpop.permute.xlu0 %850
      %852 = vrot.lane.b32.xlu0 %v567, 32
      %v853 = vpop.permute.xlu0 %852
      %854 = vrot.lane.b32.xlu0 %v568, 32
      %v855 = vpop.permute.xlu0 %854
      %856 = vrot.lane.b32.xlu0 %v569, 32
      %v857 = vpop.permute.xlu0 %856
      %858 = vrot.lane.b32.xlu0 %v570, 32
      %v859 = vpop.permute.xlu0 %858
      %860 = vrot.lane.b32.xlu0 %v571, 32
      %v861 = vpop.permute.xlu0 %860
      %862 = vrot.lane.b32.xlu0 %v572, 32
      %v863 = vpop.permute.xlu0 %862
      %864 = vrot.lane.b32.xlu0 %v573, 32
      %v865 = vpop.permute.xlu0 %864
      %866 = vrot.lane.b32.xlu0 %v574, 32
      %v867 = vpop.permute.xlu0 %866
      %868 = vrot.lane.b32.xlu0 %v575, 32
      %v869 = vpop.permute.xlu0 %868
      %934 = vrot.lane.b32.xlu0 %v742, 64
      %v935 = vpop.permute.xlu0 %934
      %936 = vrot.lane.b32.xlu0 %v743, 64
      %v937 = vpop.permute.xlu0 %936
      %938 = vrot.lane.b32.xlu0 %v744, 64
      %v939 = vpop.permute.xlu0 %938
      %940 = vrot.lane.b32.xlu0 %v745, 64
      %v941 = vpop.permute.xlu0 %940
      %942 = vrot.lane.b32.xlu0 %v746, 64
      %v943 = vpop.permute.xlu0 %942
      %944 = vrot.lane.b32.xlu0 %v747, 64
      %v945 = vpop.permute.xlu0 %944
      %946 = vrot.lane.b32.xlu0 %v748, 64
      %v947 = vpop.permute.xlu0 %946
      %948 = vrot.lane.b32.xlu0 %v749, 64
      %v949 = vpop.permute.xlu0 %948
      %950 = vrot.lane.b32.xlu0 %v750, 64
      %v951 = vpop.permute.xlu0 %950
      %952 = vrot.lane.b32.xlu0 %v751, 64
      %v953 = vpop.permute.xlu0 %952
      %954 = vrot.lane.b32.xlu0 %v752, 64
      %v955 = vpop.permute.xlu0 %954
      %956 = vrot.lane.b32.xlu0 %v753, 64
      %v957 = vpop.permute.xlu0 %956
      %958 = vrot.lane.b32.xlu0 %v754, 64
      %v959 = vpop.permute.xlu0 %958
      %960 = vrot.lane.b32.xlu0 %v755, 64
      %v961 = vpop.permute.xlu0 %960
      %962 = vrot.lane.b32.xlu0 %v756, 64
      %v963 = vpop.permute.xlu0 %962
      %964 = vrot.lane.b32.xlu0 %v757, 64
      %v965 = vpop.permute.xlu0 %964
      %966 = vrot.lane.b32.xlu0 %v758, 64
      %v967 = vpop.permute.xlu0 %966
      %968 = vrot.lane.b32.xlu0 %v759, 64
      %v969 = vpop.permute.xlu0 %968
      %970 = vrot.lane.b32.xlu0 %v760, 64
      %v971 = vpop.permute.xlu0 %970
      %972 = vrot.lane.b32.xlu0 %v761, 64
      %v973 = vpop.permute.xlu0 %972
      %974 = vrot.lane.b32.xlu0 %v762, 64
      %v975 = vpop.permute.xlu0 %974
      %976 = vrot.lane.b32.xlu0 %v763, 64
      %v977 = vpop.permute.xlu0 %976
      %978 = vrot.lane.b32.xlu0 %v764, 64
      %v979 = vpop.permute.xlu0 %978
      %980 = vrot.lane.b32.xlu0 %v765, 64
      %v981 = vpop.permute.xlu0 %980
      %982 = vrot.lane.b32.xlu0 %v766, 64
      %v983 = vpop.permute.xlu0 %982
      %984 = vrot.lane.b32.xlu0 %v767, 64
      %v985 = vpop.permute.xlu0 %984
      %986 = vrot.lane.b32.xlu0 %v768, 64
      %v987 = vpop.permute.xlu0 %986
      %988 = vrot.lane.b32.xlu0 %v769, 64
      %v989 = vpop.permute.xlu0 %988
      %990 = vrot.lane.b32.xlu0 %v770, 64
      %v991 = vpop.permute.xlu0 %990
      %992 = vrot.lane.b32.xlu0 %v771, 64
      %v993 = vpop.permute.xlu0 %992
      %994 = vrot.lane.b32.xlu0 %v772, 64
      %v995 = vpop.permute.xlu0 %994
      %996 = vrot.lane.b32.xlu0 %v773, 64
      %v997 = vpop.permute.xlu0 %996
      %v1030 = vsel %vm463, %v643, %v807
      %v1031 = vsel %vm463, %v644, %v809
      %v1032 = vsel %vm463, %v645, %v811
      %v1033 = vsel %vm463, %v646, %v813
      %v1034 = vsel %vm463, %v647, %v815
      %v1035 = vsel %vm463, %v648, %v817
      %v1036 = vsel %vm463, %v649, %v819
      %v1037 = vsel %vm463, %v650, %v821
      %v1038 = vsel %vm463, %v651, %v823
      %v1039 = vsel %vm463, %v652, %v825
      %v1040 = vsel %vm463, %v653, %v827
      %v1041 = vsel %vm463, %v654, %v829
      %v1042 = vsel %vm463, %v655, %v831
      %v1043 = vsel %vm463, %v656, %v833
      %v1044 = vsel %vm463, %v657, %v835
      %v1045 = vsel %vm463, %v658, %v837
      %v1046 = vsel %vm463, %v659, %v839
      %v1047 = vsel %vm463, %v660, %v841
      %v1048 = vsel %vm463, %v661, %v843
      %v1049 = vsel %vm463, %v662, %v845
      %v1050 = vsel %vm463, %v663, %v847
      %v1051 = vsel %vm463, %v664, %v849
      %v1052 = vsel %vm463, %v665, %v851
      %v1053 = vsel %vm463, %v666, %v853
      %v1054 = vsel %vm463, %v667, %v855
      %v1055 = vsel %vm463, %v668, %v857
      %v1056 = vsel %vm463, %v669, %v859
      %v1057 = vsel %vm463, %v670, %v861
      %v1058 = vsel %vm463, %v671, %v863
      %v1059 = vsel %vm463, %v672, %v865
      %v1060 = vsel %vm463, %v673, %v867
      %v1061 = vsel %vm463, %v674, %v869
      %vm1062 = vcmask 523264
      %v1063 = vsel %vm1062, %v1030, %v935
      %v1064 = vsel %vm1062, %v1031, %v937
      %v1065 = vsel %vm1062, %v1032, %v939
      %v1066 = vsel %vm1062, %v1033, %v941
      %v1067 = vsel %vm1062, %v1034, %v943
      %v1068 = vsel %vm1062, %v1035, %v945
      %v1069 = vsel %vm1062, %v1036, %v947
      %v1070 = vsel %vm1062, %v1037, %v949
      %v1071 = vsel %vm1062, %v1038, %v951
      %v1072 = vsel %vm1062, %v1039, %v953
      %v1073 = vsel %vm1062, %v1040, %v955
      %v1074 = vsel %vm1062, %v1041, %v957
      %v1075 = vsel %vm1062, %v1042, %v959
      %v1076 = vsel %vm1062, %v1043, %v961
      %v1077 = vsel %vm1062, %v1044, %v963
      %v1078 = vsel %vm1062, %v1045, %v965
      %v1079 = vsel %vm1062, %v1046, %v967
      %v1080 = vsel %vm1062, %v1047, %v969
      %v1081 = vsel %vm1062, %v1048, %v971
      %v1082 = vsel %vm1062, %v1049, %v973
      %v1083 = vsel %vm1062, %v1050, %v975
      %v1084 = vsel %vm1062, %v1051, %v977
      %v1085 = vsel %vm1062, %v1052, %v979
      %v1086 = vsel %vm1062, %v1053, %v981
      %v1087 = vsel %vm1062, %v1054, %v983
      %v1088 = vsel %vm1062, %v1055, %v985
      %v1089 = vsel %vm1062, %v1056, %v987
      %v1090 = vsel %vm1062, %v1057, %v989
      %v1091 = vsel %vm1062, %v1058, %v991
      %v1092 = vsel %vm1062, %v1059, %v993
      %v1093 = vsel %vm1062, %v1060, %v995
      %v1094 = vsel %vm1062, %v1061, %v997
      %v1095 = vpack.c.bf16 %v1064, %v1063
      %v1096 = vpack.c.bf16 %v1066, %v1065
      %v1097 = vpack.c.bf16 %v1068, %v1067
      %v1098 = vpack.c.bf16 %v1070, %v1069
      %v1099 = vpack.c.bf16 %v1072, %v1071
      %v1100 = vpack.c.bf16 %v1074, %v1073
      %v1101 = vpack.c.bf16 %v1076, %v1075
      %v1102 = vpack.c.bf16 %v1078, %v1077
      %v1103 = vpack.c.bf16 %v1080, %v1079
      %v1104 = vpack.c.bf16 %v1082, %v1081
      %v1105 = vpack.c.bf16 %v1084, %v1083
      %v1106 = vpack.c.bf16 %v1086, %v1085
      %v1107 = vpack.c.bf16 %v1088, %v1087
      %v1108 = vpack.c.bf16 %v1090, %v1089
      %v1109 = vpack.c.bf16 %v1092, %v1091
      %v1110 = vpack.c.bf16 %v1094, %v1093
      %v1111 = vld [vmem:[%s4] sm:$0xf]
      %v1112 = vld [vmem:[%s4 + $0x4] sm:$0xf]
      %v1113 = vld [vmem:[%s4 + $0x8] sm:$0xf]
      %v1114 = vld [vmem:[%s4 + $0xc] sm:$0xf]
      %v1115 = vld [vmem:[%s4 + $0x10] sm:$0xf]
      %v1116 = vld [vmem:[%s4 + $0x14] sm:$0xf]
      %v1117 = vld [vmem:[%s4 + $0x18] sm:$0xf]
      %v1118 = vld [vmem:[%s4 + $0x1c] sm:$0xf]
      %v1119 = vld [vmem:[%s4 + $0x20] sm:$0xf]
      %v1120 = vld [vmem:[%s4 + $0x24] sm:$0xf]
      %v1121 = vld [vmem:[%s4 + $0x28] sm:$0xf]
      %v1122 = vld [vmem:[%s4 + $0x2c] sm:$0xf]
      %v1123 = vld [vmem:[%s462] sm:$0xff]
      %v1124 = vld [vmem:[%s462 + $0x8] sm:$0xff]
      %v1125 = vld [vmem:[%s462 + $0x10] sm:$0xff]
      %v1126 = vld [vmem:[%s462 + $0x18] sm:$0xff]
      %v1127 = vld [vmem:[%s462 + $0x20] sm:$0xff]
      %v1128 = vld [vmem:[%s462 + $0x28] sm:$0xff]
      %v1129 = vld [vmem:[%s462 + $0x30] sm:$0xff]
      %v1130 = vld [vmem:[%s462 + $0x38] sm:$0xff]
      %v1131 = vld [vmem:[%s462 + $0x40] sm:$0xff]
      %v1132 = vld [vmem:[%s462 + $0x48] sm:$0xff]
      %v1133 = vld [vmem:[%s462 + $0x50] sm:$0xff]
      %v1134 = vld [vmem:[%s462 + $0x58] sm:$0xff]
      %v1135 = vld [vmem:[%s462 + $0x60] sm:$0xff]
      %v1136 = vld [vmem:[%s462 + $0x68] sm:$0xff]
      %v1137 = vld [vmem:[%s462 + $0x70] sm:$0xff]
      %v1138 = vld [vmem:[%s462 + $0x78] sm:$0xff]
      %v1139 = vld [vmem:[%s462 + $0x80] sm:$0xff]
      %v1140 = vld [vmem:[%s462 + $0x88] sm:$0xff]
      %v1141 = vld [vmem:[%s462 + $0x90] sm:$0xff]
      %v1142 = vld [vmem:[%s462 + $0x98] sm:$0xff]
      %v1143 = vld [vmem:[%s462 + $0xa0] sm:$0xff]
      %v1144 = vld [vmem:[%s462 + $0xa8] sm:$0xff]
      %v1145 = vld [vmem:[%s462 + $0xb0] sm:$0xff]
      %v1146 = vld [vmem:[%s462 + $0xb8] sm:$0xff]
      %v1147 = vld [vmem:[%s462 + $0xc0] sm:$0xff]
      %v1148 = vld [vmem:[%s462 + $0xc8] sm:$0xff]
      %v1149 = vld [vmem:[%s462 + $0xd0] sm:$0xff]
      %v1150 = vld [vmem:[%s462 + $0xd8] sm:$0xff]
      %v1151 = vld [vmem:[%s462 + $0xe0] sm:$0xff]
      %v1152 = vld [vmem:[%s462 + $0xe8] sm:$0xff]
      %v1153 = vld [vmem:[%s462 + $0xf0] sm:$0xff]
      %v1154 = vld [vmem:[%s462 + $0xf8] sm:$0xff]
      %v1155 = vrot.slane %v1123, 7
      %v1156 = vrot.slane %v1125, 7
      %v1157 = vrot.slane %v1127, 7
      %v1158 = vrot.slane %v1129, 7
      %v1159 = vrot.slane %v1131, 7
      %v1160 = vrot.slane %v1133, 7
      %v1161 = vrot.slane %v1135, 7
      %v1162 = vrot.slane %v1137, 7
      %v1163 = vrot.slane %v1139, 7
      %v1164 = vrot.slane %v1141, 7
      %v1165 = vrot.slane %v1143, 7
      %v1166 = vrot.slane %v1145, 7
      %v1167 = vrot.slane %v1147, 7
      %v1168 = vrot.slane %v1149, 7
      %v1169 = vrot.slane %v1151, 7
      %v1170 = vrot.slane %v1153, 7
      %v1171 = vrot.slane %v1124, 7
      %v1172 = vrot.slane %v1126, 7
      %v1173 = vrot.slane %v1128, 7
      %v1174 = vrot.slane %v1130, 7
      %v1175 = vrot.slane %v1132, 7
      %v1176 = vrot.slane %v1134, 7
      %v1177 = vrot.slane %v1136, 7
      %v1178 = vrot.slane %v1138, 7
      %v1179 = vrot.slane %v1140, 7
      %v1180 = vrot.slane %v1142, 7
      %v1181 = vrot.slane %v1144, 7
      %v1182 = vrot.slane %v1146, 7
      %v1183 = vrot.slane %v1148, 7
      %v1184 = vrot.slane %v1150, 7
      %v1185 = vrot.slane %v1152, 7
      %v1186 = vrot.slane %v1154, 7
      %v1187 = vsel %vm610, %v1155, %v1171
      %v1188 = vsel %vm610, %v1156, %v1172
      %v1189 = vsel %vm610, %v1157, %v1173
      %v1190 = vsel %vm610, %v1158, %v1174
      %v1191 = vsel %vm610, %v1159, %v1175
      %v1192 = vsel %vm610, %v1160, %v1176
      %v1193 = vsel %vm610, %v1161, %v1177
      %v1194 = vsel %vm610, %v1162, %v1178
      %v1195 = vsel %vm610, %v1163, %v1179
      %v1196 = vsel %vm610, %v1164, %v1180
      %v1197 = vsel %vm610, %v1165, %v1181
      %v1198 = vsel %vm610, %v1166, %v1182
      %v1199 = vsel %vm610, %v1167, %v1183
      %v1200 = vsel %vm610, %v1168, %v1184
      %v1201 = vsel %vm610, %v1169, %v1185
      %v1202 = vsel %vm610, %v1170, %v1186
      %v1203 = vsel %vm610, %v1171, %v1155
      %v1204 = vsel %vm610, %v1172, %v1156
      %v1205 = vsel %vm610, %v1173, %v1157
      %v1206 = vsel %vm610, %v1174, %v1158
      %v1207 = vsel %vm610, %v1175, %v1159
      %v1208 = vsel %vm610, %v1176, %v1160
      %v1209 = vsel %vm610, %v1177, %v1161
      %v1210 = vsel %vm610, %v1178, %v1162
      %v1211 = vsel %vm610, %v1179, %v1163
      %v1212 = vsel %vm610, %v1180, %v1164
      %v1213 = vsel %vm610, %v1181, %v1165
      %v1214 = vsel %vm610, %v1182, %v1166
      %v1215 = vsel %vm610, %v1183, %v1167
      %v1216 = vsel %vm610, %v1184, %v1168
      %v1217 = vsel %vm610, %v1185, %v1169
      %v1218 = vsel %vm610, %v1186, %v1170
      %v1219 = vsel %vm576, %v1203, 0.0
      %v1220 = vsel %vm577, %v1187, 0.0
      %v1221 = vsel %vm576, %v1204, 0.0
      %v1222 = vsel %vm577, %v1188, 0.0
      %v1223 = vsel %vm576, %v1205, 0.0
      %v1224 = vsel %vm577, %v1189, 0.0
      %v1225 = vsel %vm576, %v1206, 0.0
      %v1226 = vsel %vm577, %v1190, 0.0
      %v1227 = vsel %vm576, %v1207, 0.0
      %v1228 = vsel %vm577, %v1191, 0.0
      %v1229 = vsel %vm576, %v1208, 0.0
      %v1230 = vsel %vm577, %v1192, 0.0
      %v1231 = vsel %vm576, %v1209, 0.0
      %v1232 = vsel %vm577, %v1193, 0.0
      %v1233 = vsel %vm576, %v1210, 0.0
      %v1234 = vsel %vm577, %v1194, 0.0
      %v1235 = vsel %vm576, %v1211, 0.0
      %v1236 = vsel %vm577, %v1195, 0.0
      %v1237 = vsel %vm576, %v1212, 0.0
      %v1238 = vsel %vm577, %v1196, 0.0
      %v1239 = vsel %vm576, %v1213, 0.0
      %v1240 = vsel %vm577, %v1197, 0.0
      %v1241 = vsel %vm576, %v1214, 0.0
      %v1242 = vsel %vm577, %v1198, 0.0
      %v1243 = vsel %vm576, %v1215, 0.0
      %v1244 = vsel %vm577, %v1199, 0.0
      %v1245 = vsel %vm576, %v1216, 0.0
      %v1246 = vsel %vm577, %v1200, 0.0
      %v1247 = vsel %vm576, %v1217, 0.0
      %v1248 = vsel %vm577, %v1201, 0.0
      %v1249 = vsel %vm576, %v1218, 0.0
      %v1250 = vsel %vm577, %v1202, 0.0
      %v1251 = vrot.slane %v1123, 1
      %v1252 = vrot.slane %v1125, 1
      %v1253 = vrot.slane %v1127, 1
      %v1254 = vrot.slane %v1129, 1
      %v1255 = vrot.slane %v1131, 1
      %v1256 = vrot.slane %v1133, 1
      %v1257 = vrot.slane %v1135, 1
      %v1258 = vrot.slane %v1137, 1
      %v1259 = vrot.slane %v1139, 1
      %v1260 = vrot.slane %v1141, 1
      %v1261 = vrot.slane %v1143, 1
      %v1262 = vrot.slane %v1145, 1
      %v1263 = vrot.slane %v1147, 1
      %v1264 = vrot.slane %v1149, 1
      %v1265 = vrot.slane %v1151, 1
      %v1266 = vrot.slane %v1153, 1
      %v1267 = vrot.slane %v1124, 1
      %v1268 = vrot.slane %v1126, 1
      %v1269 = vrot.slane %v1128, 1
      %v1270 = vrot.slane %v1130, 1
      %v1271 = vrot.slane %v1132, 1
      %v1272 = vrot.slane %v1134, 1
      %v1273 = vrot.slane %v1136, 1
      %v1274 = vrot.slane %v1138, 1
      %v1275 = vrot.slane %v1140, 1
      %v1276 = vrot.slane %v1142, 1
      %v1277 = vrot.slane %v1144, 1
      %v1278 = vrot.slane %v1146, 1
      %v1279 = vrot.slane %v1148, 1
      %v1280 = vrot.slane %v1150, 1
      %v1281 = vrot.slane %v1152, 1
      %v1282 = vrot.slane %v1154, 1
      %v1283 = vsel %vm709, %v1251, %v1267
      %v1284 = vsel %vm709, %v1252, %v1268
      %v1285 = vsel %vm709, %v1253, %v1269
      %v1286 = vsel %vm709, %v1254, %v1270
      %v1287 = vsel %vm709, %v1255, %v1271
      %v1288 = vsel %vm709, %v1256, %v1272
      %v1289 = vsel %vm709, %v1257, %v1273
      %v1290 = vsel %vm709, %v1258, %v1274
      %v1291 = vsel %vm709, %v1259, %v1275
      %v1292 = vsel %vm709, %v1260, %v1276
      %v1293 = vsel %vm709, %v1261, %v1277
      %v1294 = vsel %vm709, %v1262, %v1278
      %v1295 = vsel %vm709, %v1263, %v1279
      %v1296 = vsel %vm709, %v1264, %v1280
      %v1297 = vsel %vm709, %v1265, %v1281
      %v1298 = vsel %vm709, %v1266, %v1282
      %v1299 = vsel %vm709, %v1267, %v1251
      %v1300 = vsel %vm709, %v1268, %v1252
      %v1301 = vsel %vm709, %v1269, %v1253
      %v1302 = vsel %vm709, %v1270, %v1254
      %v1303 = vsel %vm709, %v1271, %v1255
      %v1304 = vsel %vm709, %v1272, %v1256
      %v1305 = vsel %vm709, %v1273, %v1257
      %v1306 = vsel %vm709, %v1274, %v1258
      %v1307 = vsel %vm709, %v1275, %v1259
      %v1308 = vsel %vm709, %v1276, %v1260
      %v1309 = vsel %vm709, %v1277, %v1261
      %v1310 = vsel %vm709, %v1278, %v1262
      %v1311 = vsel %vm709, %v1279, %v1263
      %v1312 = vsel %vm709, %v1280, %v1264
      %v1313 = vsel %vm709, %v1281, %v1265
      %v1314 = vsel %vm709, %v1282, %v1266
      %v1315 = vsel %vm675, %v1283, 0.0
      %v1316 = vsel %vm676, %v1299, 0.0
      %v1317 = vsel %vm675, %v1284, 0.0
      %v1318 = vsel %vm676, %v1300, 0.0
      %v1319 = vsel %vm675, %v1285, 0.0
      %v1320 = vsel %vm676, %v1301, 0.0
      %v1321 = vsel %vm675, %v1286, 0.0
      %v1322 = vsel %vm676, %v1302, 0.0
      %v1323 = vsel %vm675, %v1287, 0.0
      %v1324 = vsel %vm676, %v1303, 0.0
      %v1325 = vsel %vm675, %v1288, 0.0
      %v1326 = vsel %vm676, %v1304, 0.0
      %v1327 = vsel %vm675, %v1289, 0.0
      %v1328 = vsel %vm676, %v1305, 0.0
      %v1329 = vsel %vm675, %v1290, 0.0
      %v1330 = vsel %vm676, %v1306, 0.0
      %v1331 = vsel %vm675, %v1291, 0.0
      %v1332 = vsel %vm676, %v1307, 0.0
      %v1333 = vsel %vm675, %v1292, 0.0
      %v1334 = vsel %vm676, %v1308, 0.0
      %v1335 = vsel %vm675, %v1293, 0.0
      %v1336 = vsel %vm676, %v1309, 0.0
      %v1337 = vsel %vm675, %v1294, 0.0
      %v1338 = vsel %vm676, %v1310, 0.0
      %v1339 = vsel %vm675, %v1295, 0.0
      %v1340 = vsel %vm676, %v1311, 0.0
      %v1341 = vsel %vm675, %v1296, 0.0
      %v1342 = vsel %vm676, %v1312, 0.0
      %v1343 = vsel %vm675, %v1297, 0.0
      %v1344 = vsel %vm676, %v1313, 0.0
      %v1345 = vsel %vm675, %v1298, 0.0
      %v1346 = vsel %vm676, %v1314, 0.0
      %1379 = vrot.lane.b32.xlu0 %v1123, 32
      %v1380 = vpop.permute.xlu0 %1379
      %1381 = vrot.lane.b32.xlu0 %v1124, 32
      %v1382 = vpop.permute.xlu0 %1381
      %1383 = vrot.lane.b32.xlu0 %v1125, 32
      %v1384 = vpop.permute.xlu0 %1383
      %1385 = vrot.lane.b32.xlu0 %v1126, 32
      %v1386 = vpop.permute.xlu0 %1385
      %1387 = vrot.lane.b32.xlu0 %v1127, 32
      %v1388 = vpop.permute.xlu0 %1387
      %1389 = vrot.lane.b32.xlu0 %v1128, 32
      %v1390 = vpop.permute.xlu0 %1389
      %1391 = vrot.lane.b32.xlu0 %v1129, 32
      %v1392 = vpop.permute.xlu0 %1391
      %1393 = vrot.lane.b32.xlu0 %v1130, 32
      %v1394 = vpop.permute.xlu0 %1393
      %1395 = vrot.lane.b32.xlu0 %v1131, 32
      %v1396 = vpop.permute.xlu0 %1395
      %1397 = vrot.lane.b32.xlu0 %v1132, 32
      %v1398 = vpop.permute.xlu0 %1397
      %1399 = vrot.lane.b32.xlu0 %v1133, 32
      %v1400 = vpop.permute.xlu0 %1399
      %1401 = vrot.lane.b32.xlu0 %v1134, 32
      %v1402 = vpop.permute.xlu0 %1401
      %1403 = vrot.lane.b32.xlu0 %v1135, 32
      %v1404 = vpop.permute.xlu0 %1403
      %1405 = vrot.lane.b32.xlu0 %v1136, 32
      %v1406 = vpop.permute.xlu0 %1405
      %1407 = vrot.lane.b32.xlu0 %v1137, 32
      %v1408 = vpop.permute.xlu0 %1407
      %1409 = vrot.lane.b32.xlu0 %v1138, 32
      %v1410 = vpop.permute.xlu0 %1409
      %1411 = vrot.lane.b32.xlu0 %v1139, 32
      %v1412 = vpop.permute.xlu0 %1411
      %1413 = vrot.lane.b32.xlu0 %v1140, 32
      %v1414 = vpop.permute.xlu0 %1413
      %1415 = vrot.lane.b32.xlu0 %v1141, 32
      %v1416 = vpop.permute.xlu0 %1415
      %1417 = vrot.lane.b32.xlu0 %v1142, 32
      %v1418 = vpop.permute.xlu0 %1417
      %1419 = vrot.lane.b32.xlu0 %v1143, 32
      %v1420 = vpop.permute.xlu0 %1419
      %1421 = vrot.lane.b32.xlu0 %v1144, 32
      %v1422 = vpop.permute.xlu0 %1421
      %1423 = vrot.lane.b32.xlu0 %v1145, 32
      %v1424 = vpop.permute.xlu0 %1423
      %1425 = vrot.lane.b32.xlu0 %v1146, 32
      %v1426 = vpop.permute.xlu0 %1425
      %1427 = vrot.lane.b32.xlu0 %v1147, 32
      %v1428 = vpop.permute.xlu0 %1427
      %1429 = vrot.lane.b32.xlu0 %v1148, 32
      %v1430 = vpop.permute.xlu0 %1429
      %1431 = vrot.lane.b32.xlu0 %v1149, 32
      %v1432 = vpop.permute.xlu0 %1431
      %1433 = vrot.lane.b32.xlu0 %v1150, 32
      %v1434 = vpop.permute.xlu0 %1433
      %1435 = vrot.lane.b32.xlu0 %v1151, 32
      %v1436 = vpop.permute.xlu0 %1435
      %1437 = vrot.lane.b32.xlu0 %v1152, 32
      %v1438 = vpop.permute.xlu0 %1437
      %1439 = vrot.lane.b32.xlu0 %v1153, 32
      %v1440 = vpop.permute.xlu0 %1439
      %1441 = vrot.lane.b32.xlu0 %v1154, 32
      %v1442 = vpop.permute.xlu0 %1441
      %1507 = vrot.lane.b32.xlu0 %v1315, 64
      %v1508 = vpop.permute.xlu0 %1507
      %1509 = vrot.lane.b32.xlu0 %v1316, 64
      %v1510 = vpop.permute.xlu0 %1509
      %1511 = vrot.lane.b32.xlu0 %v1317, 64
      %v1512 = vpop.permute.xlu0 %1511
      %1513 = vrot.lane.b32.xlu0 %v1318, 64
      %v1514 = vpop.permute.xlu0 %1513
      %1515 = vrot.lane.b32.xlu0 %v1319, 64
      %v1516 = vpop.permute.xlu0 %1515
      %1517 = vrot.lane.b32.xlu0 %v1320, 64
      %v1518 = vpop.permute.xlu0 %1517
      %1519 = vrot.lane.b32.xlu0 %v1321, 64
      %v1520 = vpop.permute.xlu0 %1519
      %1521 = vrot.lane.b32.xlu0 %v1322, 64
      %v1522 = vpop.permute.xlu0 %1521
      %1523 = vrot.lane.b32.xlu0 %v1323, 64
      %v1524 = vpop.permute.xlu0 %1523
      %1525 = vrot.lane.b32.xlu0 %v1324, 64
      %v1526 = vpop.permute.xlu0 %1525
      %1527 = vrot.lane.b32.xlu0 %v1325, 64
      %v1528 = vpop.permute.xlu0 %1527
      %1529 = vrot.lane.b32.xlu0 %v1326, 64
      %v1530 = vpop.permute.xlu0 %1529
      %1531 = vrot.lane.b32.xlu0 %v1327, 64
      %v1532 = vpop.permute.xlu0 %1531
      %1533 = vrot.lane.b32.xlu0 %v1328, 64
      %v1534 = vpop.permute.xlu0 %1533
      %1535 = vrot.lane.b32.xlu0 %v1329, 64
      %v1536 = vpop.permute.xlu0 %1535
      %1537 = vrot.lane.b32.xlu0 %v1330, 64
      %v1538 = vpop.permute.xlu0 %1537
      %1539 = vrot.lane.b32.xlu0 %v1331, 64
      %v1540 = vpop.permute.xlu0 %1539
      %1541 = vrot.lane.b32.xlu0 %v1332, 64
      %v1542 = vpop.permute.xlu0 %1541
      %1543 = vrot.lane.b32.xlu0 %v1333, 64
      %v1544 = vpop.permute.xlu0 %1543
      %1545 = vrot.lane.b32.xlu0 %v1334, 64
      %v1546 = vpop.permute.xlu0 %1545
      %1547 = vrot.lane.b32.xlu0 %v1335, 64
      %v1548 = vpop.permute.xlu0 %1547
      %1549 = vrot.lane.b32.xlu0 %v1336, 64
      %v1550 = vpop.permute.xlu0 %1549
      %1551 = vrot.lane.b32.xlu0 %v1337, 64
      %v1552 = vpop.permute.xlu0 %1551
      %1553 = vrot.lane.b32.xlu0 %v1338, 64
      %v1554 = vpop.permute.xlu0 %1553
      %1555 = vrot.lane.b32.xlu0 %v1339, 64
      %v1556 = vpop.permute.xlu0 %1555
      %1557 = vrot.lane.b32.xlu0 %v1340, 64
      %v1558 = vpop.permute.xlu0 %1557
      %1559 = vrot.lane.b32.xlu0 %v1341, 64
      %v1560 = vpop.permute.xlu0 %1559
      %1561 = vrot.lane.b32.xlu0 %v1342, 64
      %v1562 = vpop.permute.xlu0 %1561
      %1563 = vrot.lane.b32.xlu0 %v1343, 64
      %v1564 = vpop.permute.xlu0 %1563
      %1565 = vrot.lane.b32.xlu0 %v1344, 64
      %v1566 = vpop.permute.xlu0 %1565
      %1567 = vrot.lane.b32.xlu0 %v1345, 64
      %v1568 = vpop.permute.xlu0 %1567
      %1569 = vrot.lane.b32.xlu0 %v1346, 64
      %v1570 = vpop.permute.xlu0 %1569
      %v1603 = vsel %vm463, %v1219, %v1380
      %v1604 = vsel %vm463, %v1220, %v1382
      %v1605 = vsel %vm463, %v1221, %v1384
      %v1606 = vsel %vm463, %v1222, %v1386
      %v1607 = vsel %vm463, %v1223, %v1388
      %v1608 = vsel %vm463, %v1224, %v1390
      %v1609 = vsel %vm463, %v1225, %v1392
      %v1610 = vsel %vm463, %v1226, %v1394
      %v1611 = vsel %vm463, %v1227, %v1396
      %v1612 = vsel %vm463, %v1228, %v1398
      %v1613 = vsel %vm463, %v1229, %v1400
      %v1614 = vsel %vm463, %v1230, %v1402
      %v1615 = vsel %vm463, %v1231, %v1404
      %v1616 = vsel %vm463, %v1232, %v1406
      %v1617 = vsel %vm463, %v1233, %v1408
      %v1618 = vsel %vm463, %v1234, %v1410
      %v1619 = vsel %vm463, %v1235, %v1412
      %v1620 = vsel %vm463, %v1236, %v1414
      %v1621 = vsel %vm463, %v1237, %v1416
      %v1622 = vsel %vm463, %v1238, %v1418
      %v1623 = vsel %vm463, %v1239, %v1420
      %v1624 = vsel %vm463, %v1240, %v1422
      %v1625 = vsel %vm463, %v1241, %v1424
      %v1626 = vsel %vm463, %v1242, %v1426
      %v1627 = vsel %vm463, %v1243, %v1428
      %v1628 = vsel %vm463, %v1244, %v1430
      %v1629 = vsel %vm463, %v1245, %v1432
      %v1630 = vsel %vm463, %v1246, %v1434
      %v1631 = vsel %vm463, %v1247, %v1436
      %v1632 = vsel %vm463, %v1248, %v1438
      %v1633 = vsel %vm463, %v1249, %v1440
      %v1634 = vsel %vm463, %v1250, %v1442
      %v1635 = vsel %vm1062, %v1603, %v1508
      %v1636 = vsel %vm1062, %v1604, %v1510
      %v1637 = vsel %vm1062, %v1605, %v1512
      %v1638 = vsel %vm1062, %v1606, %v1514
      %v1639 = vsel %vm1062, %v1607, %v1516
      %v1640 = vsel %vm1062, %v1608, %v1518
      %v1641 = vsel %vm1062, %v1609, %v1520
      %v1642 = vsel %vm1062, %v1610, %v1522
      %v1643 = vsel %vm1062, %v1611, %v1524
      %v1644 = vsel %vm1062, %v1612, %v1526
      %v1645 = vsel %vm1062, %v1613, %v1528
      %v1646 = vsel %vm1062, %v1614, %v1530
      %v1647 = vsel %vm1062, %v1615, %v1532
      %v1648 = vsel %vm1062, %v1616, %v1534
      %v1649 = vsel %vm1062, %v1617, %v1536
      %v1650 = vsel %vm1062, %v1618, %v1538
      %v1651 = vsel %vm1062, %v1619, %v1540
      %v1652 = vsel %vm1062, %v1620, %v1542
      %v1653 = vsel %vm1062, %v1621, %v1544
      %v1654 = vsel %vm1062, %v1622, %v1546
      %v1655 = vsel %vm1062, %v1623, %v1548
      %v1656 = vsel %vm1062, %v1624, %v1550
      %v1657 = vsel %vm1062, %v1625, %v1552
      %v1658 = vsel %vm1062, %v1626, %v1554
      %v1659 = vsel %vm1062, %v1627, %v1556
      %v1660 = vsel %vm1062, %v1628, %v1558
      %v1661 = vsel %vm1062, %v1629, %v1560
      %v1662 = vsel %vm1062, %v1630, %v1562
      %v1663 = vsel %vm1062, %v1631, %v1564
      %v1664 = vsel %vm1062, %v1632, %v1566
      %v1665 = vsel %vm1062, %v1633, %v1568
      %v1666 = vsel %vm1062, %v1634, %v1570
      %v1667 = vpack.c.bf16 %v1636, %v1635
      %v1668 = vpack.c.bf16 %v1638, %v1637
      %v1669 = vpack.c.bf16 %v1640, %v1639
      %v1670 = vpack.c.bf16 %v1642, %v1641
      %v1671 = vpack.c.bf16 %v1644, %v1643
      %v1672 = vpack.c.bf16 %v1646, %v1645
      %v1673 = vpack.c.bf16 %v1648, %v1647
      %v1674 = vpack.c.bf16 %v1650, %v1649
      %v1675 = vpack.c.bf16 %v1652, %v1651
      %v1676 = vpack.c.bf16 %v1654, %v1653
      %v1677 = vpack.c.bf16 %v1656, %v1655
      %v1678 = vpack.c.bf16 %v1658, %v1657
      %v1679 = vpack.c.bf16 %v1660, %v1659
      %v1680 = vpack.c.bf16 %v1662, %v1661
      %v1681 = vpack.c.bf16 %v1664, %v1663
      %v1682 = vpack.c.bf16 %v1666, %v1665
      %s1683 = scalar_lea.vmem %s4, 48
      %v1684 = vld [vmem:[%s1683] sm:$0xf]
      %v1685 = vld [vmem:[%s1683 + $0x4] sm:$0xf]
      %v1686 = vld [vmem:[%s1683 + $0x8] sm:$0xf]
      %v1687 = vld [vmem:[%s1683 + $0xc] sm:$0xf]
      %v1688 = vld [vmem:[%s1683 + $0x10] sm:$0xf]
      %v1689 = vld [vmem:[%s1683 + $0x14] sm:$0xf]
      %v1690 = vld [vmem:[%s1683 + $0x18] sm:$0xf]
      %v1691 = vld [vmem:[%s1683 + $0x1c] sm:$0xf]
      %v1692 = vld [vmem:[%s1683 + $0x20] sm:$0xf]
      %v1693 = vld [vmem:[%s1683 + $0x24] sm:$0xf]
      %v1694 = vld [vmem:[%s1683 + $0x28] sm:$0xf]
      %v1695 = vld [vmem:[%s1683 + $0x2c] sm:$0xf]
      %v1708 = vunpack.c.l.b16 %v1684
      %v1709 = vunpack.c.l.b16 %v1685
      %v1710 = vunpack.c.l.b16 %v1686
      %v1711 = vunpack.c.l.b16 %v1687
      %v1712 = vunpack.c.l.b16 %v1688
      %v1713 = vunpack.c.l.b16 %v1689
      %v1714 = vunpack.c.l.b16 %v1690
      %v1715 = vunpack.c.l.b16 %v1691
      %v1716 = vunpack.c.l.b16 %v1692
      %v1717 = vunpack.c.l.b16 %v1693
      %v1718 = vunpack.c.l.b16 %v1694
      %v1719 = vunpack.c.l.b16 %v1695
      %v1720 = vpack.c.b16 %v1709, %v1708
      %v1721 = vpack.c.b16 %v1711, %v1710
      %v1722 = vpack.c.b16 %v1713, %v1712
      %v1723 = vpack.c.b16 %v1715, %v1714
      %v1724 = vpack.c.b16 %v1717, %v1716
      %v1725 = vpack.c.b16 %v1719, %v1718
      %vm1732 = vcmask 785408
      %v1734 = vsel %vm1732, %v1667, 0
      %v1737 = vsel %vm1732, %v1668, 0
      %v1740 = vsel %vm1732, %v1669, 0
      %v1743 = vsel %vm1732, %v1670, 0
      %v1746 = vsel %vm1732, %v1671, 0
      %v1749 = vsel %vm1732, %v1672, 0
      %v1752 = vsel %vm1732, %v1673, 0
      %v1755 = vsel %vm1732, %v1674, 0
      %v1758 = vsel %vm1732, %v1675, 0
      %v1761 = vsel %vm1732, %v1676, 0
      %v1764 = vsel %vm1732, %v1677, 0
      %v1767 = vsel %vm1732, %v1678, 0
      %v1770 = vsel %vm1732, %v1679, 0
      %v1773 = vsel %vm1732, %v1680, 0
      %v1776 = vsel %vm1732, %v1681, 0
      %v1779 = vsel %vm1732, %v1682, 0
      %1781 = vmatpush.bf16.msra.mxu0 0
      %1782 = vmatpush.bf16.msra.mxu0 0
      %1783 = vmatpush.bf16.msra.mxu0 %v1725
      %1784 = vmatpush.bf16.msra.mxu0 %v1724
      %1785 = vmatpush.bf16.msra.mxu0 %v1723
      %1786 = vmatpush.bf16.msra.mxu0 %v1722
      %1787 = vmatpush.bf16.msra.mxu0 %v1721
      %1788 = vmatpush.bf16.msra.mxu0 %v1720
      %1789 = vmatmul.bf16.gmra.mxu0 %v1734
      %v1790 = vpop.f32.mrf.mxu0
      %v1791 = vadd.f32 0.0, %v1790
      %v1792 = vpop.f32.mrf.mxu0
      %v1793 = vadd.f32 0.0, %v1792
      %1794 = vmatmul.bf16.gmra.mxu0 %v1737
      %v1795 = vpop.f32.mrf.mxu0
      %v1796 = vadd.f32 0.0, %v1795
      %v1797 = vpop.f32.mrf.mxu0
      %v1798 = vadd.f32 0.0, %v1797
      %1799 = vmatmul.bf16.gmra.mxu0 %v1740
      %v1800 = vpop.f32.mrf.mxu0
      %v1801 = vadd.f32 0.0, %v1800
      %v1802 = vpop.f32.mrf.mxu0
      %v1803 = vadd.f32 0.0, %v1802
      %1804 = vmatmul.bf16.gmra.mxu0 %v1743
      %v1805 = vpop.f32.mrf.mxu0
      %v1806 = vadd.f32 0.0, %v1805
      %v1807 = vpop.f32.mrf.mxu0
      %v1808 = vadd.f32 0.0, %v1807
      %1809 = vmatmul.bf16.gmra.mxu0 %v1746
      %v1810 = vpop.f32.mrf.mxu0
      %v1811 = vadd.f32 0.0, %v1810
      %v1812 = vpop.f32.mrf.mxu0
      %v1813 = vadd.f32 0.0, %v1812
      %1814 = vmatmul.bf16.gmra.mxu0 %v1749
      %v1815 = vpop.f32.mrf.mxu0
      %v1816 = vadd.f32 0.0, %v1815
      %v1817 = vpop.f32.mrf.mxu0
      %v1818 = vadd.f32 0.0, %v1817
      %1819 = vmatmul.bf16.gmra.mxu0 %v1752
      %v1820 = vpop.f32.mrf.mxu0
      %v1821 = vadd.f32 0.0, %v1820
      %v1822 = vpop.f32.mrf.mxu0
      %v1823 = vadd.f32 0.0, %v1822
      %1824 = vmatmul.bf16.gmra.mxu0 %v1755
      %v1825 = vpop.f32.mrf.mxu0
      %v1826 = vadd.f32 0.0, %v1825
      %v1827 = vpop.f32.mrf.mxu0
      %v1828 = vadd.f32 0.0, %v1827
      %1829 = vmatmul.bf16.gmra.mxu0 %v1758
      %v1830 = vpop.f32.mrf.mxu0
      %v1831 = vadd.f32 0.0, %v1830
      %v1832 = vpop.f32.mrf.mxu0
      %v1833 = vadd.f32 0.0, %v1832
      %1834 = vmatmul.bf16.gmra.mxu0 %v1761
      %v1835 = vpop.f32.mrf.mxu0
      %v1836 = vadd.f32 0.0, %v1835
      %v1837 = vpop.f32.mrf.mxu0
      %v1838 = vadd.f32 0.0, %v1837
      %1839 = vmatmul.bf16.gmra.mxu0 %v1764
      %v1840 = vpop.f32.mrf.mxu0
      %v1841 = vadd.f32 0.0, %v1840
      %v1842 = vpop.f32.mrf.mxu0
      %v1843 = vadd.f32 0.0, %v1842
      %1844 = vmatmul.bf16.gmra.mxu0 %v1767
      %v1845 = vpop.f32.mrf.mxu0
      %v1846 = vadd.f32 0.0, %v1845
      %v1847 = vpop.f32.mrf.mxu0
      %v1848 = vadd.f32 0.0, %v1847
      %1849 = vmatmul.bf16.gmra.mxu0 %v1770
      %v1850 = vpop.f32.mrf.mxu0
      %v1851 = vadd.f32 0.0, %v1850
      %v1852 = vpop.f32.mrf.mxu0
      %v1853 = vadd.f32 0.0, %v1852
      %1854 = vmatmul.bf16.gmra.mxu0 %v1773
      %v1855 = vpop.f32.mrf.mxu0
      %v1856 = vadd.f32 0.0, %v1855
      %v1857 = vpop.f32.mrf.mxu0
      %v1858 = vadd.f32 0.0, %v1857
      %1859 = vmatmul.bf16.gmra.mxu0 %v1776
      %v1860 = vpop.f32.mrf.mxu0
      %v1861 = vadd.f32 0.0, %v1860
      %v1862 = vpop.f32.mrf.mxu0
      %v1863 = vadd.f32 0.0, %v1862
      %1864 = vmatmul.bf16.gmra.mxu0 %v1779
      %v1865 = vpop.f32.mrf.mxu0
      %v1866 = vadd.f32 0.0, %v1865
      %v1867 = vpop.f32.mrf.mxu0
      %v1868 = vadd.f32 0.0, %v1867
      %1869 = vdwg.mxu0
      %v1882 = vunpack.c.l.b16 %v1111
      %v1883 = vunpack.c.l.b16 %v1112
      %v1884 = vunpack.c.l.b16 %v1113
      %v1885 = vunpack.c.l.b16 %v1114
      %v1886 = vunpack.c.l.b16 %v1115
      %v1887 = vunpack.c.l.b16 %v1116
      %v1888 = vunpack.c.l.b16 %v1117
      %v1889 = vunpack.c.l.b16 %v1118
      %v1890 = vunpack.c.l.b16 %v1119
      %v1891 = vunpack.c.l.b16 %v1120
      %v1892 = vunpack.c.l.b16 %v1121
      %v1893 = vunpack.c.l.b16 %v1122
      %v1894 = vpack.c.b16 %v1883, %v1882
      %v1895 = vpack.c.b16 %v1885, %v1884
      %v1896 = vpack.c.b16 %v1887, %v1886
      %v1897 = vpack.c.b16 %v1889, %v1888
      %v1898 = vpack.c.b16 %v1891, %v1890
      %v1899 = vpack.c.b16 %v1893, %v1892
      %v1907 = vsel %vm1732, %v1095, 0
      %v1910 = vsel %vm1732, %v1096, 0
      %v1913 = vsel %vm1732, %v1097, 0
      %v1916 = vsel %vm1732, %v1098, 0
      %v1919 = vsel %vm1732, %v1099, 0
      %v1922 = vsel %vm1732, %v1100, 0
      %v1925 = vsel %vm1732, %v1101, 0
      %v1928 = vsel %vm1732, %v1102, 0
      %v1931 = vsel %vm1732, %v1103, 0
      %v1934 = vsel %vm1732, %v1104, 0
      %v1937 = vsel %vm1732, %v1105, 0
      %v1940 = vsel %vm1732, %v1106, 0
      %v1943 = vsel %vm1732, %v1107, 0
      %v1946 = vsel %vm1732, %v1108, 0
      %v1949 = vsel %vm1732, %v1109, 0
      %v1952 = vsel %vm1732, %v1110, 0
      %1954 = vmatpush.bf16.msra.mxu0 0
      %1955 = vmatpush.bf16.msra.mxu0 0
      %1956 = vmatpush.bf16.msra.mxu0 %v1899
      %1957 = vmatpush.bf16.msra.mxu0 %v1898
      %1958 = vmatpush.bf16.msra.mxu0 %v1897
      %1959 = vmatpush.bf16.msra.mxu0 %v1896
      %1960 = vmatpush.bf16.msra.mxu0 %v1895
      %1961 = vmatpush.bf16.msra.mxu0 %v1894
      %1962 = vmatmul.bf16.gmra.mxu0 %v1907
      %v1963 = vpop.f32.mrf.mxu0
      %v1964 = vadd.f32 %v1791, %v1963
      %v1965 = vpop.f32.mrf.mxu0
      %v1966 = vadd.f32 %v1793, %v1965
      %1967 = vmatmul.bf16.gmra.mxu0 %v1910
      %v1968 = vpop.f32.mrf.mxu0
      %v1969 = vadd.f32 %v1796, %v1968
      %v1970 = vpop.f32.mrf.mxu0
      %v1971 = vadd.f32 %v1798, %v1970
      %1972 = vmatmul.bf16.gmra.mxu0 %v1913
      %v1973 = vpop.f32.mrf.mxu0
      %v1974 = vadd.f32 %v1801, %v1973
      %v1975 = vpop.f32.mrf.mxu0
      %v1976 = vadd.f32 %v1803, %v1975
      %1977 = vmatmul.bf16.gmra.mxu0 %v1916
      %v1978 = vpop.f32.mrf.mxu0
      %v1979 = vadd.f32 %v1806, %v1978
      %v1980 = vpop.f32.mrf.mxu0
      %v1981 = vadd.f32 %v1808, %v1980
      %1982 = vmatmul.bf16.gmra.mxu0 %v1919
      %v1983 = vpop.f32.mrf.mxu0
      %v1984 = vadd.f32 %v1811, %v1983
      %v1985 = vpop.f32.mrf.mxu0
      %v1986 = vadd.f32 %v1813, %v1985
      %1987 = vmatmul.bf16.gmra.mxu0 %v1922
      %v1988 = vpop.f32.mrf.mxu0
      %v1989 = vadd.f32 %v1816, %v1988
      %v1990 = vpop.f32.mrf.mxu0
      %v1991 = vadd.f32 %v1818, %v1990
      %1992 = vmatmul.bf16.gmra.mxu0 %v1925
      %v1993 = vpop.f32.mrf.mxu0
      %v1994 = vadd.f32 %v1821, %v1993
      %v1995 = vpop.f32.mrf.mxu0
      %v1996 = vadd.f32 %v1823, %v1995
      %1997 = vmatmul.bf16.gmra.mxu0 %v1928
      %v1998 = vpop.f32.mrf.mxu0
      %v1999 = vadd.f32 %v1826, %v1998
      %v2000 = vpop.f32.mrf.mxu0
      %v2001 = vadd.f32 %v1828, %v2000
      %2002 = vmatmul.bf16.gmra.mxu0 %v1931
      %v2003 = vpop.f32.mrf.mxu0
      %v2004 = vadd.f32 %v1831, %v2003
      %v2005 = vpop.f32.mrf.mxu0
      %v2006 = vadd.f32 %v1833, %v2005
      %2007 = vmatmul.bf16.gmra.mxu0 %v1934
      %v2008 = vpop.f32.mrf.mxu0
      %v2009 = vadd.f32 %v1836, %v2008
      %v2010 = vpop.f32.mrf.mxu0
      %v2011 = vadd.f32 %v1838, %v2010
      %2012 = vmatmul.bf16.gmra.mxu0 %v1937
      %v2013 = vpop.f32.mrf.mxu0
      %v2014 = vadd.f32 %v1841, %v2013
      %v2015 = vpop.f32.mrf.mxu0
      %v2016 = vadd.f32 %v1843, %v2015
      %2017 = vmatmul.bf16.gmra.mxu0 %v1940
      %v2018 = vpop.f32.mrf.mxu0
      %v2019 = vadd.f32 %v1846, %v2018
      %v2020 = vpop.f32.mrf.mxu0
      %v2021 = vadd.f32 %v1848, %v2020
      %2022 = vmatmul.bf16.gmra.mxu0 %v1943
      %v2023 = vpop.f32.mrf.mxu0
      %v2024 = vadd.f32 %v1851, %v2023
      %v2025 = vpop.f32.mrf.mxu0
      %v2026 = vadd.f32 %v1853, %v2025
      %2027 = vmatmul.bf16.gmra.mxu0 %v1946
      %v2028 = vpop.f32.mrf.mxu0
      %v2029 = vadd.f32 %v1856, %v2028
      %v2030 = vpop.f32.mrf.mxu0
      %v2031 = vadd.f32 %v1858, %v2030
      %2032 = vmatmul.bf16.gmra.mxu0 %v1949
      %v2033 = vpop.f32.mrf.mxu0
      %v2034 = vadd.f32 %v1861, %v2033
      %v2035 = vpop.f32.mrf.mxu0
      %v2036 = vadd.f32 %v1863, %v2035
      %2037 = vmatmul.bf16.gmra.mxu0 %v1952
      %v2038 = vpop.f32.mrf.mxu0
      %v2039 = vadd.f32 %v1866, %v2038
      %v2040 = vpop.f32.mrf.mxu0
      %v2041 = vadd.f32 %v1868, %v2040
      %2042 = vdwg.mxu0
      %s2043 = scalar_lea.vmem [#allocation2], 32
      %v2044 = vld [vmem:[%s2043] sm:$0xff]
      %v2045 = vld [vmem:[%s2043 + $0x8] sm:$0xff]
      %v2046 = vld [vmem:[%s2043 + $0x10] sm:$0xff]
      %v2047 = vld [vmem:[%s2043 + $0x18] sm:$0xff]
      %v2048 = vld [vmem:[%s2043 + $0x20] sm:$0xff]
      %v2049 = vld [vmem:[%s2043 + $0x28] sm:$0xff]
      %v2050 = vld [vmem:[%s2043 + $0x30] sm:$0xff]
      %v2051 = vld [vmem:[%s2043 + $0x38] sm:$0xff]
      %v2052 = vld [vmem:[%s2043 + $0x40] sm:$0xff]
      %v2053 = vld [vmem:[%s2043 + $0x48] sm:$0xff]
      %v2054 = vld [vmem:[%s2043 + $0x50] sm:$0xff]
      %v2055 = vld [vmem:[%s2043 + $0x58] sm:$0xff]
      %v2056 = vld [vmem:[%s2043 + $0x60] sm:$0xff]
      %v2057 = vld [vmem:[%s2043 + $0x68] sm:$0xff]
      %v2058 = vld [vmem:[%s2043 + $0x70] sm:$0xff]
      %v2059 = vld [vmem:[%s2043 + $0x78] sm:$0xff]
      %v2060 = vld [vmem:[%s2043 + $0x80] sm:$0xff]
      %v2061 = vld [vmem:[%s2043 + $0x88] sm:$0xff]
      %v2062 = vld [vmem:[%s2043 + $0x90] sm:$0xff]
      %v2063 = vld [vmem:[%s2043 + $0x98] sm:$0xff]
      %v2064 = vld [vmem:[%s2043 + $0xa0] sm:$0xff]
      %v2065 = vld [vmem:[%s2043 + $0xa8] sm:$0xff]
      %v2066 = vld [vmem:[%s2043 + $0xb0] sm:$0xff]
      %v2067 = vld [vmem:[%s2043 + $0xb8] sm:$0xff]
      %v2068 = vld [vmem:[%s2043 + $0xc0] sm:$0xff]
      %v2069 = vld [vmem:[%s2043 + $0xc8] sm:$0xff]
      %v2070 = vld [vmem:[%s2043 + $0xd0] sm:$0xff]
      %v2071 = vld [vmem:[%s2043 + $0xd8] sm:$0xff]
      %v2072 = vld [vmem:[%s2043 + $0xe0] sm:$0xff]
      %v2073 = vld [vmem:[%s2043 + $0xe8] sm:$0xff]
      %v2074 = vld [vmem:[%s2043 + $0xf0] sm:$0xff]
      %v2075 = vld [vmem:[%s2043 + $0xf8] sm:$0xff]
      %v2076 = vrot.slane %v2044, 7
      %v2077 = vrot.slane %v2046, 7
      %v2078 = vrot.slane %v2048, 7
      %v2079 = vrot.slane %v2050, 7
      %v2080 = vrot.slane %v2052, 7
      %v2081 = vrot.slane %v2054, 7
      %v2082 = vrot.slane %v2056, 7
      %v2083 = vrot.slane %v2058, 7
      %v2084 = vrot.slane %v2060, 7
      %v2085 = vrot.slane %v2062, 7
      %v2086 = vrot.slane %v2064, 7
      %v2087 = vrot.slane %v2066, 7
      %v2088 = vrot.slane %v2068, 7
      %v2089 = vrot.slane %v2070, 7
      %v2090 = vrot.slane %v2072, 7
      %v2091 = vrot.slane %v2074, 7
      %v2092 = vrot.slane %v2045, 7
      %v2093 = vrot.slane %v2047, 7
      %v2094 = vrot.slane %v2049, 7
      %v2095 = vrot.slane %v2051, 7
      %v2096 = vrot.slane %v2053, 7
      %v2097 = vrot.slane %v2055, 7
      %v2098 = vrot.slane %v2057, 7
      %v2099 = vrot.slane %v2059, 7
      %v2100 = vrot.slane %v2061, 7
      %v2101 = vrot.slane %v2063, 7
      %v2102 = vrot.slane %v2065, 7
      %v2103 = vrot.slane %v2067, 7
      %v2104 = vrot.slane %v2069, 7
      %v2105 = vrot.slane %v2071, 7
      %v2106 = vrot.slane %v2073, 7
      %v2107 = vrot.slane %v2075, 7
      %v2108 = vsel %vm610, %v2076, %v2092
      %v2109 = vsel %vm610, %v2077, %v2093
      %v2110 = vsel %vm610, %v2078, %v2094
      %v2111 = vsel %vm610, %v2079, %v2095
      %v2112 = vsel %vm610, %v2080, %v2096
      %v2113 = vsel %vm610, %v2081, %v2097
      %v2114 = vsel %vm610, %v2082, %v2098
      %v2115 = vsel %vm610, %v2083, %v2099
      %v2116 = vsel %vm610, %v2084, %v2100
      %v2117 = vsel %vm610, %v2085, %v2101
      %v2118 = vsel %vm610, %v2086, %v2102
      %v2119 = vsel %vm610, %v2087, %v2103
      %v2120 = vsel %vm610, %v2088, %v2104
      %v2121 = vsel %vm610, %v2089, %v2105
      %v2122 = vsel %vm610, %v2090, %v2106
      %v2123 = vsel %vm610, %v2091, %v2107
      %v2124 = vsel %vm610, %v2092, %v2076
      %v2125 = vsel %vm610, %v2093, %v2077
      %v2126 = vsel %vm610, %v2094, %v2078
      %v2127 = vsel %vm610, %v2095, %v2079
      %v2128 = vsel %vm610, %v2096, %v2080
      %v2129 = vsel %vm610, %v2097, %v2081
      %v2130 = vsel %vm610, %v2098, %v2082
      %v2131 = vsel %vm610, %v2099, %v2083
      %v2132 = vsel %vm610, %v2100, %v2084
      %v2133 = vsel %vm610, %v2101, %v2085
      %v2134 = vsel %vm610, %v2102, %v2086
      %v2135 = vsel %vm610, %v2103, %v2087
      %v2136 = vsel %vm610, %v2104, %v2088
      %v2137 = vsel %vm610, %v2105, %v2089
      %v2138 = vsel %vm610, %v2106, %v2090
      %v2139 = vsel %vm610, %v2107, %v2091
      %v2140 = vsel %vm576, %v2124, 0.0
      %v2141 = vsel %vm577, %v2108, 0.0
      %v2142 = vsel %vm576, %v2125, 0.0
      %v2143 = vsel %vm577, %v2109, 0.0
      %v2144 = vsel %vm576, %v2126, 0.0
      %v2145 = vsel %vm577, %v2110, 0.0
      %v2146 = vsel %vm576, %v2127, 0.0
      %v2147 = vsel %vm577, %v2111, 0.0
      %v2148 = vsel %vm576, %v2128, 0.0
      %v2149 = vsel %vm577, %v2112, 0.0
      %v2150 = vsel %vm576, %v2129, 0.0
      %v2151 = vsel %vm577, %v2113, 0.0
      %v2152 = vsel %vm576, %v2130, 0.0
      %v2153 = vsel %vm577, %v2114, 0.0
      %v2154 = vsel %vm576, %v2131, 0.0
      %v2155 = vsel %vm577, %v2115, 0.0
      %v2156 = vsel %vm576, %v2132, 0.0
      %v2157 = vsel %vm577, %v2116, 0.0
      %v2158 = vsel %vm576, %v2133, 0.0
      %v2159 = vsel %vm577, %v2117, 0.0
      %v2160 = vsel %vm576, %v2134, 0.0
      %v2161 = vsel %vm577, %v2118, 0.0
      %v2162 = vsel %vm576, %v2135, 0.0
      %v2163 = vsel %vm577, %v2119, 0.0
      %v2164 = vsel %vm576, %v2136, 0.0
      %v2165 = vsel %vm577, %v2120, 0.0
      %v2166 = vsel %vm576, %v2137, 0.0
      %v2167 = vsel %vm577, %v2121, 0.0
      %v2168 = vsel %vm576, %v2138, 0.0
      %v2169 = vsel %vm577, %v2122, 0.0
      %v2170 = vsel %vm576, %v2139, 0.0
      %v2171 = vsel %vm577, %v2123, 0.0
      %v2172 = vrot.slane %v2044, 1
      %v2173 = vrot.slane %v2046, 1
      %v2174 = vrot.slane %v2048, 1
      %v2175 = vrot.slane %v2050, 1
      %v2176 = vrot.slane %v2052, 1
      %v2177 = vrot.slane %v2054, 1
      %v2178 = vrot.slane %v2056, 1
      %v2179 = vrot.slane %v2058, 1
      %v2180 = vrot.slane %v2060, 1
      %v2181 = vrot.slane %v2062, 1
      %v2182 = vrot.slane %v2064, 1
      %v2183 = vrot.slane %v2066, 1
      %v2184 = vrot.slane %v2068, 1
      %v2185 = vrot.slane %v2070, 1
      %v2186 = vrot.slane %v2072, 1
      %v2187 = vrot.slane %v2074, 1
      %v2188 = vrot.slane %v2045, 1
      %v2189 = vrot.slane %v2047, 1
      %v2190 = vrot.slane %v2049, 1
      %v2191 = vrot.slane %v2051, 1
      %v2192 = vrot.slane %v2053, 1
      %v2193 = vrot.slane %v2055, 1
      %v2194 = vrot.slane %v2057, 1
      %v2195 = vrot.slane %v2059, 1
      %v2196 = vrot.slane %v2061, 1
      %v2197 = vrot.slane %v2063, 1
      %v2198 = vrot.slane %v2065, 1
      %v2199 = vrot.slane %v2067, 1
      %v2200 = vrot.slane %v2069, 1
      %v2201 = vrot.slane %v2071, 1
      %v2202 = vrot.slane %v2073, 1
      %v2203 = vrot.slane %v2075, 1
      %v2204 = vsel %vm709, %v2172, %v2188
      %v2205 = vsel %vm709, %v2173, %v2189
      %v2206 = vsel %vm709, %v2174, %v2190
      %v2207 = vsel %vm709, %v2175, %v2191
      %v2208 = vsel %vm709, %v2176, %v2192
      %v2209 = vsel %vm709, %v2177, %v2193
      %v2210 = vsel %vm709, %v2178, %v2194
      %v2211 = vsel %vm709, %v2179, %v2195
      %v2212 = vsel %vm709, %v2180, %v2196
      %v2213 = vsel %vm709, %v2181, %v2197
      %v2214 = vsel %vm709, %v2182, %v2198
      %v2215 = vsel %vm709, %v2183, %v2199
      %v2216 = vsel %vm709, %v2184, %v2200
      %v2217 = vsel %vm709, %v2185, %v2201
      %v2218 = vsel %vm709, %v2186, %v2202
      %v2219 = vsel %vm709, %v2187, %v2203
      %v2220 = vsel %vm709, %v2188, %v2172
      %v2221 = vsel %vm709, %v2189, %v2173
      %v2222 = vsel %vm709, %v2190, %v2174
      %v2223 = vsel %vm709, %v2191, %v2175
      %v2224 = vsel %vm709, %v2192, %v2176
      %v2225 = vsel %vm709, %v2193, %v2177
      %v2226 = vsel %vm709, %v2194, %v2178
      %v2227 = vsel %vm709, %v2195, %v2179
      %v2228 = vsel %vm709, %v2196, %v2180
      %v2229 = vsel %vm709, %v2197, %v2181
      %v2230 = vsel %vm709, %v2198, %v2182
      %v2231 = vsel %vm709, %v2199, %v2183
      %v2232 = vsel %vm709, %v2200, %v2184
      %v2233 = vsel %vm709, %v2201, %v2185
      %v2234 = vsel %vm709, %v2202, %v2186
      %v2235 = vsel %vm709, %v2203, %v2187
      %v2236 = vsel %vm675, %v2204, 0.0
      %v2237 = vsel %vm676, %v2220, 0.0
      %v2238 = vsel %vm675, %v2205, 0.0
      %v2239 = vsel %vm676, %v2221, 0.0
      %v2240 = vsel %vm675, %v2206, 0.0
      %v2241 = vsel %vm676, %v2222, 0.0
      %v2242 = vsel %vm675, %v2207, 0.0
      %v2243 = vsel %vm676, %v2223, 0.0
      %v2244 = vsel %vm675, %v2208, 0.0
      %v2245 = vsel %vm676, %v2224, 0.0
      %v2246 = vsel %vm675, %v2209, 0.0
      %v2247 = vsel %vm676, %v2225, 0.0
      %v2248 = vsel %vm675, %v2210, 0.0
      %v2249 = vsel %vm676, %v2226, 0.0
      %v2250 = vsel %vm675, %v2211, 0.0
      %v2251 = vsel %vm676, %v2227, 0.0
      %v2252 = vsel %vm675, %v2212, 0.0
      %v2253 = vsel %vm676, %v2228, 0.0
      %v2254 = vsel %vm675, %v2213, 0.0
      %v2255 = vsel %vm676, %v2229, 0.0
      %v2256 = vsel %vm675, %v2214, 0.0
      %v2257 = vsel %vm676, %v2230, 0.0
      %v2258 = vsel %vm675, %v2215, 0.0
      %v2259 = vsel %vm676, %v2231, 0.0
      %v2260 = vsel %vm675, %v2216, 0.0
      %v2261 = vsel %vm676, %v2232, 0.0
      %v2262 = vsel %vm675, %v2217, 0.0
      %v2263 = vsel %vm676, %v2233, 0.0
      %v2264 = vsel %vm675, %v2218, 0.0
      %v2265 = vsel %vm676, %v2234, 0.0
      %v2266 = vsel %vm675, %v2219, 0.0
      %v2267 = vsel %vm676, %v2235, 0.0
      %2300 = vrot.lane.b32.xlu0 %v2044, 32
      %v2301 = vpop.permute.xlu0 %2300
      %2302 = vrot.lane.b32.xlu0 %v2045, 32
      %v2303 = vpop.permute.xlu0 %2302
      %2304 = vrot.lane.b32.xlu0 %v2046, 32
      %v2305 = vpop.permute.xlu0 %2304
      %2306 = vrot.lane.b32.xlu0 %v2047, 32
      %v2307 = vpop.permute.xlu0 %2306
      %2308 = vrot.lane.b32.xlu0 %v2048, 32
      %v2309 = vpop.permute.xlu0 %2308
      %2310 = vrot.lane.b32.xlu0 %v2049, 32
      %v2311 = vpop.permute.xlu0 %2310
      %2312 = vrot.lane.b32.xlu0 %v2050, 32
      %v2313 = vpop.permute.xlu0 %2312
      %2314 = vrot.lane.b32.xlu0 %v2051, 32
      %v2315 = vpop.permute.xlu0 %2314
      %2316 = vrot.lane.b32.xlu0 %v2052, 32
      %v2317 = vpop.permute.xlu0 %2316
      %2318 = vrot.lane.b32.xlu0 %v2053, 32
      %v2319 = vpop.permute.xlu0 %2318
      %2320 = vrot.lane.b32.xlu0 %v2054, 32
      %v2321 = vpop.permute.xlu0 %2320
      %2322 = vrot.lane.b32.xlu0 %v2055, 32
      %v2323 = vpop.permute.xlu0 %2322
      %2324 = vrot.lane.b32.xlu0 %v2056, 32
      %v2325 = vpop.permute.xlu0 %2324
      %2326 = vrot.lane.b32.xlu0 %v2057, 32
      %v2327 = vpop.permute.xlu0 %2326
      %2328 = vrot.lane.b32.xlu0 %v2058, 32
      %v2329 = vpop.permute.xlu0 %2328
      %2330 = vrot.lane.b32.xlu0 %v2059, 32
      %v2331 = vpop.permute.xlu0 %2330
      %2332 = vrot.lane.b32.xlu0 %v2060, 32
      %v2333 = vpop.permute.xlu0 %2332
      %2334 = vrot.lane.b32.xlu0 %v2061, 32
      %v2335 = vpop.permute.xlu0 %2334
      %2336 = vrot.lane.b32.xlu0 %v2062, 32
      %v2337 = vpop.permute.xlu0 %2336
      %2338 = vrot.lane.b32.xlu0 %v2063, 32
      %v2339 = vpop.permute.xlu0 %2338
      %2340 = vrot.lane.b32.xlu0 %v2064, 32
      %v2341 = vpop.permute.xlu0 %2340
      %2342 = vrot.lane.b32.xlu0 %v2065, 32
      %v2343 = vpop.permute.xlu0 %2342
      %2344 = vrot.lane.b32.xlu0 %v2066, 32
      %v2345 = vpop.permute.xlu0 %2344
      %2346 = vrot.lane.b32.xlu0 %v2067, 32
      %v2347 = vpop.permute.xlu0 %2346
      %2348 = vrot.lane.b32.xlu0 %v2068, 32
      %v2349 = vpop.permute.xlu0 %2348
      %2350 = vrot.lane.b32.xlu0 %v2069, 32
      %v2351 = vpop.permute.xlu0 %2350
      %2352 = vrot.lane.b32.xlu0 %v2070, 32
      %v2353 = vpop.permute.xlu0 %2352
      %2354 = vrot.lane.b32.xlu0 %v2071, 32
      %v2355 = vpop.permute.xlu0 %2354
      %2356 = vrot.lane.b32.xlu0 %v2072, 32
      %v2357 = vpop.permute.xlu0 %2356
      %2358 = vrot.lane.b32.xlu0 %v2073, 32
      %v2359 = vpop.permute.xlu0 %2358
      %2360 = vrot.lane.b32.xlu0 %v2074, 32
      %v2361 = vpop.permute.xlu0 %2360
      %2362 = vrot.lane.b32.xlu0 %v2075, 32
      %v2363 = vpop.permute.xlu0 %2362
      %2428 = vrot.lane.b32.xlu0 %v2236, 64
      %v2429 = vpop.permute.xlu0 %2428
      %2430 = vrot.lane.b32.xlu0 %v2237, 64
      %v2431 = vpop.permute.xlu0 %2430
      %2432 = vrot.lane.b32.xlu0 %v2238, 64
      %v2433 = vpop.permute.xlu0 %2432
      %2434 = vrot.lane.b32.xlu0 %v2239, 64
      %v2435 = vpop.permute.xlu0 %2434
      %2436 = vrot.lane.b32.xlu0 %v2240, 64
      %v2437 = vpop.permute.xlu0 %2436
      %2438 = vrot.lane.b32.xlu0 %v2241, 64
      %v2439 = vpop.permute.xlu0 %2438
      %2440 = vrot.lane.b32.xlu0 %v2242, 64
      %v2441 = vpop.permute.xlu0 %2440
      %2442 = vrot.lane.b32.xlu0 %v2243, 64
      %v2443 = vpop.permute.xlu0 %2442
      %2444 = vrot.lane.b32.xlu0 %v2244, 64
      %v2445 = vpop.permute.xlu0 %2444
      %2446 = vrot.lane.b32.xlu0 %v2245, 64
      %v2447 = vpop.permute.xlu0 %2446
      %2448 = vrot.lane.b32.xlu0 %v2246, 64
      %v2449 = vpop.permute.xlu0 %2448
      %2450 = vrot.lane.b32.xlu0 %v2247, 64
      %v2451 = vpop.permute.xlu0 %2450
      %2452 = vrot.lane.b32.xlu0 %v2248, 64
      %v2453 = vpop.permute.xlu0 %2452
      %2454 = vrot.lane.b32.xlu0 %v2249, 64
      %v2455 = vpop.permute.xlu0 %2454
      %2456 = vrot.lane.b32.xlu0 %v2250, 64
      %v2457 = vpop.permute.xlu0 %2456
      %2458 = vrot.lane.b32.xlu0 %v2251, 64
      %v2459 = vpop.permute.xlu0 %2458
      %2460 = vrot.lane.b32.xlu0 %v2252, 64
      %v2461 = vpop.permute.xlu0 %2460
      %2462 = vrot.lane.b32.xlu0 %v2253, 64
      %v2463 = vpop.permute.xlu0 %2462
      %2464 = vrot.lane.b32.xlu0 %v2254, 64
      %v2465 = vpop.permute.xlu0 %2464
      %2466 = vrot.lane.b32.xlu0 %v2255, 64
      %v2467 = vpop.permute.xlu0 %2466
      %2468 = vrot.lane.b32.xlu0 %v2256, 64
      %v2469 = vpop.permute.xlu0 %2468
      %2470 = vrot.lane.b32.xlu0 %v2257, 64
      %v2471 = vpop.permute.xlu0 %2470
      %2472 = vrot.lane.b32.xlu0 %v2258, 64
      %v2473 = vpop.permute.xlu0 %2472
      %2474 = vrot.lane.b32.xlu0 %v2259, 64
      %v2475 = vpop.permute.xlu0 %2474
      %2476 = vrot.lane.b32.xlu0 %v2260, 64
      %v2477 = vpop.permute.xlu0 %2476
      %2478 = vrot.lane.b32.xlu0 %v2261, 64
      %v2479 = vpop.permute.xlu0 %2478
      %2480 = vrot.lane.b32.xlu0 %v2262, 64
      %v2481 = vpop.permute.xlu0 %2480
      %2482 = vrot.lane.b32.xlu0 %v2263, 64
      %v2483 = vpop.permute.xlu0 %2482
      %2484 = vrot.lane.b32.xlu0 %v2264, 64
      %v2485 = vpop.permute.xlu0 %2484
      %2486 = vrot.lane.b32.xlu0 %v2265, 64
      %v2487 = vpop.permute.xlu0 %2486
      %2488 = vrot.lane.b32.xlu0 %v2266, 64
      %v2489 = vpop.permute.xlu0 %2488
      %2490 = vrot.lane.b32.xlu0 %v2267, 64
      %v2491 = vpop.permute.xlu0 %2490
      %v2524 = vsel %vm463, %v2140, %v2301
      %v2525 = vsel %vm463, %v2141, %v2303
      %v2526 = vsel %vm463, %v2142, %v2305
      %v2527 = vsel %vm463, %v2143, %v2307
      %v2528 = vsel %vm463, %v2144, %v2309
      %v2529 = vsel %vm463, %v2145, %v2311
      %v2530 = vsel %vm463, %v2146, %v2313
      %v2531 = vsel %vm463, %v2147, %v2315
      %v2532 = vsel %vm463, %v2148, %v2317
      %v2533 = vsel %vm463, %v2149, %v2319
      %v2534 = vsel %vm463, %v2150, %v2321
      %v2535 = vsel %vm463, %v2151, %v2323
      %v2536 = vsel %vm463, %v2152, %v2325
      %v2537 = vsel %vm463, %v2153, %v2327
      %v2538 = vsel %vm463, %v2154, %v2329
      %v2539 = vsel %vm463, %v2155, %v2331
      %v2540 = vsel %vm463, %v2156, %v2333
      %v2541 = vsel %vm463, %v2157, %v2335
      %v2542 = vsel %vm463, %v2158, %v2337
      %v2543 = vsel %vm463, %v2159, %v2339
      %v2544 = vsel %vm463, %v2160, %v2341
      %v2545 = vsel %vm463, %v2161, %v2343
      %v2546 = vsel %vm463, %v2162, %v2345
      %v2547 = vsel %vm463, %v2163, %v2347
      %v2548 = vsel %vm463, %v2164, %v2349
      %v2549 = vsel %vm463, %v2165, %v2351
      %v2550 = vsel %vm463, %v2166, %v2353
      %v2551 = vsel %vm463, %v2167, %v2355
      %v2552 = vsel %vm463, %v2168, %v2357
      %v2553 = vsel %vm463, %v2169, %v2359
      %v2554 = vsel %vm463, %v2170, %v2361
      %v2555 = vsel %vm463, %v2171, %v2363
      %v2556 = vsel %vm1062, %v2524, %v2429
      %v2557 = vsel %vm1062, %v2525, %v2431
      %v2558 = vsel %vm1062, %v2526, %v2433
      %v2559 = vsel %vm1062, %v2527, %v2435
      %v2560 = vsel %vm1062, %v2528, %v2437
      %v2561 = vsel %vm1062, %v2529, %v2439
      %v2562 = vsel %vm1062, %v2530, %v2441
      %v2563 = vsel %vm1062, %v2531, %v2443
      %v2564 = vsel %vm1062, %v2532, %v2445
      %v2565 = vsel %vm1062, %v2533, %v2447
      %v2566 = vsel %vm1062, %v2534, %v2449
      %v2567 = vsel %vm1062, %v2535, %v2451
      %v2568 = vsel %vm1062, %v2536, %v2453
      %v2569 = vsel %vm1062, %v2537, %v2455
      %v2570 = vsel %vm1062, %v2538, %v2457
      %v2571 = vsel %vm1062, %v2539, %v2459
      %v2572 = vsel %vm1062, %v2540, %v2461
      %v2573 = vsel %vm1062, %v2541, %v2463
      %v2574 = vsel %vm1062, %v2542, %v2465
      %v2575 = vsel %vm1062, %v2543, %v2467
      %v2576 = vsel %vm1062, %v2544, %v2469
      %v2577 = vsel %vm1062, %v2545, %v2471
      %v2578 = vsel %vm1062, %v2546, %v2473
      %v2579 = vsel %vm1062, %v2547, %v2475
      %v2580 = vsel %vm1062, %v2548, %v2477
      %v2581 = vsel %vm1062, %v2549, %v2479
      %v2582 = vsel %vm1062, %v2550, %v2481
      %v2583 = vsel %vm1062, %v2551, %v2483
      %v2584 = vsel %vm1062, %v2552, %v2485
      %v2585 = vsel %vm1062, %v2553, %v2487
      %v2586 = vsel %vm1062, %v2554, %v2489
      %v2587 = vsel %vm1062, %v2555, %v2491
      %v2588 = vpack.c.bf16 %v2557, %v2556
      %v2589 = vpack.c.bf16 %v2559, %v2558
      %v2590 = vpack.c.bf16 %v2561, %v2560
      %v2591 = vpack.c.bf16 %v2563, %v2562
      %v2592 = vpack.c.bf16 %v2565, %v2564
      %v2593 = vpack.c.bf16 %v2567, %v2566
      %v2594 = vpack.c.bf16 %v2569, %v2568
      %v2595 = vpack.c.bf16 %v2571, %v2570
      %v2596 = vpack.c.bf16 %v2573, %v2572
      %v2597 = vpack.c.bf16 %v2575, %v2574
      %v2598 = vpack.c.bf16 %v2577, %v2576
      %v2599 = vpack.c.bf16 %v2579, %v2578
      %v2600 = vpack.c.bf16 %v2581, %v2580
      %v2601 = vpack.c.bf16 %v2583, %v2582
      %v2602 = vpack.c.bf16 %v2585, %v2584
      %v2603 = vpack.c.bf16 %v2587, %v2586
      %s2604 = scalar_lea.vmem %s4, 96
      %v2605 = vld [vmem:[%s2604] sm:$0xf]
      %v2606 = vld [vmem:[%s2604 + $0x4] sm:$0xf]
      %v2607 = vld [vmem:[%s2604 + $0x8] sm:$0xf]
      %v2608 = vld [vmem:[%s2604 + $0xc] sm:$0xf]
      %v2609 = vld [vmem:[%s2604 + $0x10] sm:$0xf]
      %v2610 = vld [vmem:[%s2604 + $0x14] sm:$0xf]
      %v2611 = vld [vmem:[%s2604 + $0x18] sm:$0xf]
      %v2612 = vld [vmem:[%s2604 + $0x1c] sm:$0xf]
      %v2613 = vld [vmem:[%s2604 + $0x20] sm:$0xf]
      %v2614 = vld [vmem:[%s2604 + $0x24] sm:$0xf]
      %v2615 = vld [vmem:[%s2604 + $0x28] sm:$0xf]
      %v2616 = vld [vmem:[%s2604 + $0x2c] sm:$0xf]
      %v2629 = vunpack.c.l.b16 %v2605
      %v2630 = vunpack.c.l.b16 %v2606
      %v2631 = vunpack.c.l.b16 %v2607
      %v2632 = vunpack.c.l.b16 %v2608
      %v2633 = vunpack.c.l.b16 %v2609
      %v2634 = vunpack.c.l.b16 %v2610
      %v2635 = vunpack.c.l.b16 %v2611
      %v2636 = vunpack.c.l.b16 %v2612
      %v2637 = vunpack.c.l.b16 %v2613
      %v2638 = vunpack.c.l.b16 %v2614
      %v2639 = vunpack.c.l.b16 %v2615
      %v2640 = vunpack.c.l.b16 %v2616
      %v2641 = vpack.c.b16 %v2630, %v2629
      %v2642 = vpack.c.b16 %v2632, %v2631
      %v2643 = vpack.c.b16 %v2634, %v2633
      %v2644 = vpack.c.b16 %v2636, %v2635
      %v2645 = vpack.c.b16 %v2638, %v2637
      %v2646 = vpack.c.b16 %v2640, %v2639
      %v2654 = vsel %vm1732, %v2588, 0
      %v2657 = vsel %vm1732, %v2589, 0
      %v2660 = vsel %vm1732, %v2590, 0
      %v2663 = vsel %vm1732, %v2591, 0
      %v2666 = vsel %vm1732, %v2592, 0
      %v2669 = vsel %vm1732, %v2593, 0
      %v2672 = vsel %vm1732, %v2594, 0
      %v2675 = vsel %vm1732, %v2595, 0
      %v2678 = vsel %vm1732, %v2596, 0
      %v2681 = vsel %vm1732, %v2597, 0
      %v2684 = vsel %vm1732, %v2598, 0
      %v2687 = vsel %vm1732, %v2599, 0
      %v2690 = vsel %vm1732, %v2600, 0
      %v2693 = vsel %vm1732, %v2601, 0
      %v2696 = vsel %vm1732, %v2602, 0
      %v2699 = vsel %vm1732, %v2603, 0
      %2701 = vmatpush.bf16.msra.mxu0 0
      %2702 = vmatpush.bf16.msra.mxu0 0
      %2703 = vmatpush.bf16.msra.mxu0 %v2646
      %2704 = vmatpush.bf16.msra.mxu0 %v2645
      %2705 = vmatpush.bf16.msra.mxu0 %v2644
      %2706 = vmatpush.bf16.msra.mxu0 %v2643
      %2707 = vmatpush.bf16.msra.mxu0 %v2642
      %2708 = vmatpush.bf16.msra.mxu0 %v2641
      %2709 = vmatmul.bf16.gmra.mxu0 %v2654
      %v2710 = vpop.f32.mrf.mxu0
      %v2711 = vadd.f32 0.0, %v2710
      %v2712 = vpop.f32.mrf.mxu0
      %v2713 = vadd.f32 0.0, %v2712
      %2714 = vmatmul.bf16.gmra.mxu0 %v2657
      %v2715 = vpop.f32.mrf.mxu0
      %v2716 = vadd.f32 0.0, %v2715
      %v2717 = vpop.f32.mrf.mxu0
      %v2718 = vadd.f32 0.0, %v2717
      %2719 = vmatmul.bf16.gmra.mxu0 %v2660
      %v2720 = vpop.f32.mrf.mxu0
      %v2721 = vadd.f32 0.0, %v2720
      %v2722 = vpop.f32.mrf.mxu0
      %v2723 = vadd.f32 0.0, %v2722
      %2724 = vmatmul.bf16.gmra.mxu0 %v2663
      %v2725 = vpop.f32.mrf.mxu0
      %v2726 = vadd.f32 0.0, %v2725
      %v2727 = vpop.f32.mrf.mxu0
      %v2728 = vadd.f32 0.0, %v2727
      %2729 = vmatmul.bf16.gmra.mxu0 %v2666
      %v2730 = vpop.f32.mrf.mxu0
      %v2731 = vadd.f32 0.0, %v2730
      %v2732 = vpop.f32.mrf.mxu0
      %v2733 = vadd.f32 0.0, %v2732
      %2734 = vmatmul.bf16.gmra.mxu0 %v2669
      %v2735 = vpop.f32.mrf.mxu0
      %v2736 = vadd.f32 0.0, %v2735
      %v2737 = vpop.f32.mrf.mxu0
      %v2738 = vadd.f32 0.0, %v2737
      %2739 = vmatmul.bf16.gmra.mxu0 %v2672
      %v2740 = vpop.f32.mrf.mxu0
      %v2741 = vadd.f32 0.0, %v2740
      %v2742 = vpop.f32.mrf.mxu0
      %v2743 = vadd.f32 0.0, %v2742
      %2744 = vmatmul.bf16.gmra.mxu0 %v2675
      %v2745 = vpop.f32.mrf.mxu0
      %v2746 = vadd.f32 0.0, %v2745
      %v2747 = vpop.f32.mrf.mxu0
      %v2748 = vadd.f32 0.0, %v2747
      %2749 = vmatmul.bf16.gmra.mxu0 %v2678
      %v2750 = vpop.f32.mrf.mxu0
      %v2751 = vadd.f32 0.0, %v2750
      %v2752 = vpop.f32.mrf.mxu0
      %v2753 = vadd.f32 0.0, %v2752
      %2754 = vmatmul.bf16.gmra.mxu0 %v2681
      %v2755 = vpop.f32.mrf.mxu0
      %v2756 = vadd.f32 0.0, %v2755
      %v2757 = vpop.f32.mrf.mxu0
      %v2758 = vadd.f32 0.0, %v2757
      %2759 = vmatmul.bf16.gmra.mxu0 %v2684
      %v2760 = vpop.f32.mrf.mxu0
      %v2761 = vadd.f32 0.0, %v2760
      %v2762 = vpop.f32.mrf.mxu0
      %v2763 = vadd.f32 0.0, %v2762
      %2764 = vmatmul.bf16.gmra.mxu0 %v2687
      %v2765 = vpop.f32.mrf.mxu0
      %v2766 = vadd.f32 0.0, %v2765
      %v2767 = vpop.f32.mrf.mxu0
      %v2768 = vadd.f32 0.0, %v2767
      %2769 = vmatmul.bf16.gmra.mxu0 %v2690
      %v2770 = vpop.f32.mrf.mxu0
      %v2771 = vadd.f32 0.0, %v2770
      %v2772 = vpop.f32.mrf.mxu0
      %v2773 = vadd.f32 0.0, %v2772
      %2774 = vmatmul.bf16.gmra.mxu0 %v2693
      %v2775 = vpop.f32.mrf.mxu0
      %v2776 = vadd.f32 0.0, %v2775
      %v2777 = vpop.f32.mrf.mxu0
      %v2778 = vadd.f32 0.0, %v2777
      %2779 = vmatmul.bf16.gmra.mxu0 %v2696
      %v2780 = vpop.f32.mrf.mxu0
      %v2781 = vadd.f32 0.0, %v2780
      %v2782 = vpop.f32.mrf.mxu0
      %v2783 = vadd.f32 0.0, %v2782
      %2784 = vmatmul.bf16.gmra.mxu0 %v2699
      %v2785 = vpop.f32.mrf.mxu0
      %v2786 = vadd.f32 0.0, %v2785
      %v2787 = vpop.f32.mrf.mxu0
      %v2788 = vadd.f32 0.0, %v2787
      %2789 = vdwg.mxu0
      %v2790 = vadd.f32 %v1964, %v2711
      %v2791 = vadd.f32 %v1966, %v2713
      %v2792 = vadd.f32 %v1969, %v2716
      %v2793 = vadd.f32 %v1971, %v2718
      %v2794 = vadd.f32 %v1974, %v2721
      %v2795 = vadd.f32 %v1976, %v2723
      %v2796 = vadd.f32 %v1979, %v2726
      %v2797 = vadd.f32 %v1981, %v2728
      %v2798 = vadd.f32 %v1984, %v2731
      %v2799 = vadd.f32 %v1986, %v2733
      %v2800 = vadd.f32 %v1989, %v2736
      %v2801 = vadd.f32 %v1991, %v2738
      %v2802 = vadd.f32 %v1994, %v2741
      %v2803 = vadd.f32 %v1996, %v2743
      %v2804 = vadd.f32 %v1999, %v2746
      %v2805 = vadd.f32 %v2001, %v2748
      %v2806 = vadd.f32 %v2004, %v2751
      %v2807 = vadd.f32 %v2006, %v2753
      %v2808 = vadd.f32 %v2009, %v2756
      %v2809 = vadd.f32 %v2011, %v2758
      %v2810 = vadd.f32 %v2014, %v2761
      %v2811 = vadd.f32 %v2016, %v2763
      %v2812 = vadd.f32 %v2019, %v2766
      %v2813 = vadd.f32 %v2021, %v2768
      %v2814 = vadd.f32 %v2024, %v2771
      %v2815 = vadd.f32 %v2026, %v2773
      %v2816 = vadd.f32 %v2029, %v2776
      %v2817 = vadd.f32 %v2031, %v2778
      %v2818 = vadd.f32 %v2034, %v2781
      %v2819 = vadd.f32 %v2036, %v2783
      %v2820 = vadd.f32 %v2039, %v2786
      %v2821 = vadd.f32 %v2041, %v2788
      %v2822 = vld [vmem:[%s276] sm:$0xff]
      %v2823 = vld [vmem:[%s276 + $0x8] sm:$0xff]
      %v2824 = vld [vmem:[%s276 + $0x10] sm:$0xff]
      %v2825 = vld [vmem:[%s276 + $0x18] sm:$0xff]
      %v2826 = vld [vmem:[%s276 + $0x20] sm:$0xff]
      %v2827 = vld [vmem:[%s276 + $0x28] sm:$0xff]
      %v2828 = vld [vmem:[%s276 + $0x30] sm:$0xff]
      %v2829 = vld [vmem:[%s276 + $0x38] sm:$0xff]
      %v2830 = vld [vmem:[%s276 + $0x40] sm:$0xff]
      %v2831 = vld [vmem:[%s276 + $0x48] sm:$0xff]
      %v2832 = vld [vmem:[%s276 + $0x50] sm:$0xff]
      %v2833 = vld [vmem:[%s276 + $0x58] sm:$0xff]
      %v2834 = vld [vmem:[%s276 + $0x60] sm:$0xff]
      %v2835 = vld [vmem:[%s276 + $0x68] sm:$0xff]
      %v2836 = vld [vmem:[%s276 + $0x70] sm:$0xff]
      %v2837 = vld [vmem:[%s276 + $0x78] sm:$0xff]
      %v2838 = vld [vmem:[%s276 + $0x80] sm:$0xff]
      %v2839 = vld [vmem:[%s276 + $0x88] sm:$0xff]
      %v2840 = vld [vmem:[%s276 + $0x90] sm:$0xff]
      %v2841 = vld [vmem:[%s276 + $0x98] sm:$0xff]
      %v2842 = vld [vmem:[%s276 + $0xa0] sm:$0xff]
      %v2843 = vld [vmem:[%s276 + $0xa8] sm:$0xff]
      %v2844 = vld [vmem:[%s276 + $0xb0] sm:$0xff]
      %v2845 = vld [vmem:[%s276 + $0xb8] sm:$0xff]
      %v2846 = vld [vmem:[%s276 + $0xc0] sm:$0xff]
      %v2847 = vld [vmem:[%s276 + $0xc8] sm:$0xff]
      %v2848 = vld [vmem:[%s276 + $0xd0] sm:$0xff]
      %v2849 = vld [vmem:[%s276 + $0xd8] sm:$0xff]
      %v2850 = vld [vmem:[%s276 + $0xe0] sm:$0xff]
      %v2851 = vld [vmem:[%s276 + $0xe8] sm:$0xff]
      %v2852 = vld [vmem:[%s276 + $0xf0] sm:$0xff]
      %v2853 = vld [vmem:[%s276 + $0xf8] sm:$0xff]
      %2886 = vrot.lane.b32.xlu0 %v2790, 4
      %v2887 = vpop.permute.xlu0 %2886
      %2888 = vrot.lane.b32.xlu0 %v2791, 4
      %v2889 = vpop.permute.xlu0 %2888
      %2890 = vrot.lane.b32.xlu0 %v2792, 4
      %v2891 = vpop.permute.xlu0 %2890
      %2892 = vrot.lane.b32.xlu0 %v2793, 4
      %v2893 = vpop.permute.xlu0 %2892
      %2894 = vrot.lane.b32.xlu0 %v2794, 4
      %v2895 = vpop.permute.xlu0 %2894
      %2896 = vrot.lane.b32.xlu0 %v2795, 4
      %v2897 = vpop.permute.xlu0 %2896
      %2898 = vrot.lane.b32.xlu0 %v2796, 4
      %v2899 = vpop.permute.xlu0 %2898
      %2900 = vrot.lane.b32.xlu0 %v2797, 4
      %v2901 = vpop.permute.xlu0 %2900
      %2902 = vrot.lane.b32.xlu0 %v2798, 4
      %v2903 = vpop.permute.xlu0 %2902
      %2904 = vrot.lane.b32.xlu0 %v2799, 4
      %v2905 = vpop.permute.xlu0 %2904
      %2906 = vrot.lane.b32.xlu0 %v2800, 4
      %v2907 = vpop.permute.xlu0 %2906
      %2908 = vrot.lane.b32.xlu0 %v2801, 4
      %v2909 = vpop.permute.xlu0 %2908
      %2910 = vrot.lane.b32.xlu0 %v2802, 4
      %v2911 = vpop.permute.xlu0 %2910
      %2912 = vrot.lane.b32.xlu0 %v2803, 4
      %v2913 = vpop.permute.xlu0 %2912
      %2914 = vrot.lane.b32.xlu0 %v2804, 4
      %v2915 = vpop.permute.xlu0 %2914
      %2916 = vrot.lane.b32.xlu0 %v2805, 4
      %v2917 = vpop.permute.xlu0 %2916
      %2918 = vrot.lane.b32.xlu0 %v2806, 4
      %v2919 = vpop.permute.xlu0 %2918
      %2920 = vrot.lane.b32.xlu0 %v2807, 4
      %v2921 = vpop.permute.xlu0 %2920
      %2922 = vrot.lane.b32.xlu0 %v2808, 4
      %v2923 = vpop.permute.xlu0 %2922
      %2924 = vrot.lane.b32.xlu0 %v2809, 4
      %v2925 = vpop.permute.xlu0 %2924
      %2926 = vrot.lane.b32.xlu0 %v2810, 4
      %v2927 = vpop.permute.xlu0 %2926
      %2928 = vrot.lane.b32.xlu0 %v2811, 4
      %v2929 = vpop.permute.xlu0 %2928
      %2930 = vrot.lane.b32.xlu0 %v2812, 4
      %v2931 = vpop.permute.xlu0 %2930
      %2932 = vrot.lane.b32.xlu0 %v2813, 4
      %v2933 = vpop.permute.xlu0 %2932
      %2934 = vrot.lane.b32.xlu0 %v2814, 4
      %v2935 = vpop.permute.xlu0 %2934
      %2936 = vrot.lane.b32.xlu0 %v2815, 4
      %v2937 = vpop.permute.xlu0 %2936
      %2938 = vrot.lane.b32.xlu0 %v2816, 4
      %v2939 = vpop.permute.xlu0 %2938
      %2940 = vrot.lane.b32.xlu0 %v2817, 4
      %v2941 = vpop.permute.xlu0 %2940
      %2942 = vrot.lane.b32.xlu0 %v2818, 4
      %v2943 = vpop.permute.xlu0 %2942
      %2944 = vrot.lane.b32.xlu0 %v2819, 4
      %v2945 = vpop.permute.xlu0 %2944
      %2946 = vrot.lane.b32.xlu0 %v2820, 4
      %v2947 = vpop.permute.xlu0 %2946
      %2948 = vrot.lane.b32.xlu0 %v2821, 4
      %v2949 = vpop.permute.xlu0 %2948
      %vm2982 = vcmask 31744
      %v2983 = vsel %vm2982, %v2822, %v2887
      %v2984 = vsel %vm2982, %v2823, %v2889
      %v2985 = vsel %vm2982, %v2824, %v2891
      %v2986 = vsel %vm2982, %v2825, %v2893
      %v2987 = vsel %vm2982, %v2826, %v2895
      %v2988 = vsel %vm2982, %v2827, %v2897
      %v2989 = vsel %vm2982, %v2828, %v2899
      %v2990 = vsel %vm2982, %v2829, %v2901
      %v2991 = vsel %vm2982, %v2830, %v2903
      %v2992 = vsel %vm2982, %v2831, %v2905
      %v2993 = vsel %vm2982, %v2832, %v2907
      %v2994 = vsel %vm2982, %v2833, %v2909
      %v2995 = vsel %vm2982, %v2834, %v2911
      %v2996 = vsel %vm2982, %v2835, %v2913
      %v2997 = vsel %vm2982, %v2836, %v2915
      %v2998 = vsel %vm2982, %v2837, %v2917
      %v2999 = vsel %vm2982, %v2838, %v2919
      %v3000 = vsel %vm2982, %v2839, %v2921
      %v3001 = vsel %vm2982, %v2840, %v2923
      %v3002 = vsel %vm2982, %v2841, %v2925
      %v3003 = vsel %vm2982, %v2842, %v2927
      %v3004 = vsel %vm2982, %v2843, %v2929
      %v3005 = vsel %vm2982, %v2844, %v2931
      %v3006 = vsel %vm2982, %v2845, %v2933
      %v3007 = vsel %vm2982, %v2846, %v2935
      %v3008 = vsel %vm2982, %v2847, %v2937
      %v3009 = vsel %vm2982, %v2848, %v2939
      %v3010 = vsel %vm2982, %v2849, %v2941
      %v3011 = vsel %vm2982, %v2850, %v2943
      %v3012 = vsel %vm2982, %v2851, %v2945
      %v3013 = vsel %vm2982, %v2852, %v2947
      %v3014 = vsel %vm2982, %v2853, %v2949
      %vm3015 = vcmask 97280
      %3016 = vst.msk [vmem:[%s287] sm:$0xff] %vm3015, %v2983
      %3017 = vst.msk [vmem:[%s287 + $0x8] sm:$0xff] %vm3015, %v2984
      %3018 = vst.msk [vmem:[%s287 + $0x10] sm:$0xff] %vm3015, %v2985
      %3019 = vst.msk [vmem:[%s287 + $0x18] sm:$0xff] %vm3015, %v2986
      %3020 = vst.msk [vmem:[%s287 + $0x20] sm:$0xff] %vm3015, %v2987
      %3021 = vst.msk [vmem:[%s287 + $0x28] sm:$0xff] %vm3015, %v2988
      %3022 = vst.msk [vmem:[%s287 + $0x30] sm:$0xff] %vm3015, %v2989
      %3023 = vst.msk [vmem:[%s287 + $0x38] sm:$0xff] %vm3015, %v2990
      %3024 = vst.msk [vmem:[%s287 + $0x40] sm:$0xff] %vm3015, %v2991
      %3025 = vst.msk [vmem:[%s287 + $0x48] sm:$0xff] %vm3015, %v2992
      %3026 = vst.msk [vmem:[%s287 + $0x50] sm:$0xff] %vm3015, %v2993
      %3027 = vst.msk [vmem:[%s287 + $0x58] sm:$0xff] %vm3015, %v2994
      %3028 = vst.msk [vmem:[%s287 + $0x60] sm:$0xff] %vm3015, %v2995
      %3029 = vst.msk [vmem:[%s287 + $0x68] sm:$0xff] %vm3015, %v2996
      %3030 = vst.msk [vmem:[%s287 + $0x70] sm:$0xff] %vm3015, %v2997
      %3031 = vst.msk [vmem:[%s287 + $0x78] sm:$0xff] %vm3015, %v2998
      %3032 = vst.msk [vmem:[%s287 + $0x80] sm:$0xff] %vm3015, %v2999
      %3033 = vst.msk [vmem:[%s287 + $0x88] sm:$0xff] %vm3015, %v3000
      %3034 = vst.msk [vmem:[%s287 + $0x90] sm:$0xff] %vm3015, %v3001
      %3035 = vst.msk [vmem:[%s287 + $0x98] sm:$0xff] %vm3015, %v3002
      %3036 = vst.msk [vmem:[%s287 + $0xa0] sm:$0xff] %vm3015, %v3003
      %3037 = vst.msk [vmem:[%s287 + $0xa8] sm:$0xff] %vm3015, %v3004
      %3038 = vst.msk [vmem:[%s287 + $0xb0] sm:$0xff] %vm3015, %v3005
      %3039 = vst.msk [vmem:[%s287 + $0xb8] sm:$0xff] %vm3015, %v3006
      %3040 = vst.msk [vmem:[%s287 + $0xc0] sm:$0xff] %vm3015, %v3007
      %3041 = vst.msk [vmem:[%s287 + $0xc8] sm:$0xff] %vm3015, %v3008
      %3042 = vst.msk [vmem:[%s287 + $0xd0] sm:$0xff] %vm3015, %v3009
      %3043 = vst.msk [vmem:[%s287 + $0xd8] sm:$0xff] %vm3015, %v3010
      %3044 = vst.msk [vmem:[%s287 + $0xe0] sm:$0xff] %vm3015, %v3011
      %3045 = vst.msk [vmem:[%s287 + $0xe8] sm:$0xff] %vm3015, %v3012
      %3046 = vst.msk [vmem:[%s287 + $0xf0] sm:$0xff] %vm3015, %v3013
      %3047 = vst.msk [vmem:[%s287 + $0xf8] sm:$0xff] %vm3015, %v3014
      %s3048 = smul.u32 16, %s21
      %p3049 = scmp.lt.s32.totalorder %s20, 1
      %s3050 = scalar_select %p3049, %s20, 1
      %p3051 = scmp.lt.s32.totalorder %s3048, 15
      %s3052 = scalar_select %p3051, %s3048, 15
      %s3053 = smul.addr %s3052, 2
      %s3054 = smul.addr %s3050, 32
      %s3055 = sadd.s32 %s3053, %s3054
      %s3056 = smul.addr %s3055, 8
      %s3057 = scalar_lea.vmem %s5, %s3056
      // Predicated region
      $region49: #{bottleneck_block_forward.5} parent=39 // pred_check
        %p3058 = pneg %p165
      $region50: #{bottleneck_block_forward.5} parent=39 // pred_check_branch
        %3060 = sbr.rel (%p3058) target = $region52
      $region51: #{bottleneck_block_forward.5} parent=39 // pred_region
        %s3061 = smul.u32 16, %s21
      $region52: #{bottleneck_block_forward.5} parent=39 // pred_fallthru
        _
    $region40: #{bottleneck_block_forward.5} parent=5 // pred_fallthru
      _
    %p3062 = scmp.le.s32.totalorder 2, %s11
    // Predicated region
    $region53: #{bottleneck_block_forward.5} parent=5 // pred_check
      %p3063 = pneg %p3062
    $region54: #{bottleneck_block_forward.5} parent=5 // pred_check_branch
      %3065 = sbr.rel (%p3063) target = $region56
    $region55: #{bottleneck_block_forward.5} parent=5 // pred_region
      %s3066 = ssub.s32 %s11, 2
      // Predicated region
      $region57: #{bottleneck_block_forward.5} parent=55 // pred_check
        %p3067 = pneg %p171
      $region58: #{bottleneck_block_forward.5} parent=55 // pred_check_branch
        %3069 = sbr.rel (%p3067) target = $region60
      $region59: #{bottleneck_block_forward.5} parent=55 // pred_region
        %s3070 = smul.u32 16, %s23
        %p3071 = scmp.lt.s32.totalorder %s22, 1
        %s3072 = scalar_select %p3071, %s22, 1
        %p3073 = scmp.lt.s32.totalorder %s3070, 15
        %s3074 = scalar_select %p3073, %s3070, 15
        %s3075 = smul.addr %s3074, 2
        %s3076 = smul.addr %s3072, 32
        %s3077 = sadd.s32 %s3075, %s3076
        %s3078 = smul.addr %s3077, 8
        %s3079 = scalar_lea.vmem %s5, %s3078
      $region60: #{bottleneck_block_forward.5} parent=55 // pred_fallthru
        _
    $region56: #{bottleneck_block_forward.5} parent=5 // pred_fallthru
      _
  $region6: #{bottleneck_block_forward.5} parent=0 // loop_footer
    %s15 = sadd.s32 1, %s11
  $region7: #{bottleneck_block_forward.5} parent=0 // loop_footer_branch
    %10 = sbr.rel target = $region3
  $region8: #{bottleneck_block_forward.5} parent=0 // loop_exit
    _

</llo_original>
